<compile_context>
chip_gen: v6e
topology: v6e:2x2x1
jax: 0.10.0
libtpu: 0.0.40
codegen_flags: <defaults>
</compile_context>

<pallas_src>
import functools

import jax
import jax.numpy as jnp
import numpy as np
from jax.experimental import pallas as pl
from jax.experimental.pallas import tpu as pltpu


# ---------------------------------------------------------------------------
# LSTM recurrence kernel: one grid step == one chunk of Tc timesteps.
# ---------------------------------------------------------------------------
def _lstm_recurrence_kernel(
    gi_ref, gf_ref, gg_ref, go_ref,          # per-gate input projections (Tc, B, H)
    whi_ref, whf_ref, whg_ref, who_ref,      # per-gate W_hh^T              (H, H)
    h0_ref, c0_ref,                          # initial state                (B, H)
    out_ref,                                 # hidden outputs, time-major   (Tc, B, H)
    hN_ref, cN_ref,                          # final state                  (B, H)
    h_carry, c_carry,                        # VMEM scratch carry           (B, H)
    *, seq_len, chunk_len, needs_mask):
    chunk = pl.program_id(0)

    @pl.when(chunk == 0)
    def _():
        h_carry[...] = h0_ref[...]
        c_carry[...] = c0_ref[...]

    def step(t, carry_token):
        h_prev = h_carry[...]
        c_prev = c_carry[...]

        # Only the unavoidable h_{t-1} @ W_hh stays on the recurrent path.
        i_pre = gi_ref[t] + jnp.dot(h_prev, whi_ref[...],
                                    preferred_element_type=jnp.float32)
        f_pre = gf_ref[t] + jnp.dot(h_prev, whf_ref[...],
                                    preferred_element_type=jnp.float32)
        g_pre = gg_ref[t] + jnp.dot(h_prev, whg_ref[...],
                                    preferred_element_type=jnp.float32)
        o_pre = go_ref[t] + jnp.dot(h_prev, who_ref[...],
                                    preferred_element_type=jnp.float32)

        i_g = jax.nn.sigmoid(i_pre)
        f_g = jax.nn.sigmoid(f_pre)
        g_g = jnp.tanh(g_pre)
        o_g = jax.nn.sigmoid(o_pre)

        c_new = f_g * c_prev + i_g * g_g
        h_new = o_g * jnp.tanh(c_new)

        if needs_mask:  # only traced when T was padded up to a chunk multiple
            valid = (chunk * chunk_len + t) < seq_len
            h_new = jnp.where(valid, h_new, h_prev)
            c_new = jnp.where(valid, c_new, c_prev)

        h_carry[...] = h_new
        c_carry[...] = c_new
        out_ref[t] = h_new
        return carry_token

    jax.lax.fori_loop(0, chunk_len, step, 0, unroll=(chunk_len <= 16))

    @pl.when(chunk == pl.num_programs(0) - 1)
    def _():
        hN_ref[...] = h_carry[...]
        cN_ref[...] = c_carry[...]


# ---------------------------------------------------------------------------
# Output projection kernel: logits = x @ W_out^T + b_out (single block).
# ---------------------------------------------------------------------------
def _fc_kernel(x_ref, w_ref, b_ref, o_ref):
    o_ref[...] = (
        jnp.dot(x_ref[...], w_ref[...], preferred_element_type=jnp.float32)
        + b_ref[...]
    )


# ---------------------------------------------------------------------------
# Wrapper mirroring CommentDecoder.forward(input_tokens, hidden, cell)
# ---------------------------------------------------------------------------
def comment_decoder_forward(input_tokens, hidden, cell,
                            emb_weight, w_ih, w_hh, b_ih, b_hh,
                            w_out, b_out, *, time_chunk=128):
    B, T = input_tokens.shape
    vocab_size, embed_dim = emb_weight.shape
    H = w_hh.shape[1]

    f32 = jnp.float32

    # --- Embedding + hoisted input projection (one batched matmul per gate).
    # Produced directly in time-major (T, B, H), split per gate [i, f, g, o],
    # so the recurrence kernel never slices the 4H axis.
    embedded = jnp.take(emb_weight.astype(f32), input_tokens, axis=0)  # (B, T, E)
    bias = (b_ih.astype(f32) + b_hh.astype(f32))                       # (4H,)
    gate_pre = []
    for k in range(4):
        w_k = w_ih[k * H:(k + 1) * H].astype(f32)                      # (H, E)
        g_k = jnp.einsum('bte,he->tbh', embedded, w_k) + bias[k * H:(k + 1) * H]
        gate_pre.append(g_k)                                           # (T, B, H)

    # Per-gate recurrent weights, pre-transposed to (H, H) for h @ W_hh^T.
    whh_t = [w_hh[k * H:(k + 1) * H].astype(f32).T for k in range(4)]

    h0 = hidden.reshape(B, H).astype(f32)
    c0 = cell.reshape(B, H).astype(f32)

    # --- Time chunking: coarse chunks kept VMEM-resident, fori_loop inside.
    Tc = min(T, time_chunk)
    num_chunks = pl.cdiv(T, Tc)
    T_pad = num_chunks * Tc
    needs_mask = (T_pad != T)
    if needs_mask:
        pad = [(0, T_pad - T), (0, 0), (0, 0)]
        gate_pre = [jnp.pad(g, pad) for g in gate_pre]

    kernel = functools.partial(
        _lstm_recurrence_kernel,
        seq_len=T, chunk_len=Tc, needs_mask=needs_mask)

    def gate_spec():
        return pl.BlockSpec((Tc, B, H), lambda c: (c, 0, 0))

    def mat_spec():
        return pl.BlockSpec((H, H), lambda c: (0, 0))

    def state_spec():
        return pl.BlockSpec((B, H), lambda c: (0, 0))

    out_tm, h_n, c_n = pl.pallas_call(
        kernel,
        out_shape=(
            jax.ShapeDtypeStruct((T_pad, B, H), f32),
            jax.ShapeDtypeStruct((B, H), f32),
            jax.ShapeDtypeStruct((B, H), f32),
        ),
        grid_spec=pltpu.PrefetchScalarGridSpec(
            num_scalar_prefetch=0,
            grid=(num_chunks,),
            in_specs=(
                [gate_spec() for _ in range(4)]      # gi, gf, gg, go
                + [mat_spec() for _ in range(4)]     # W_hh^T per gate (resident)
                + [state_spec(), state_spec()]       # h0, c0
            ),
            out_specs=(gate_spec(), state_spec(), state_spec()),
            scratch_shapes=[pltpu.VMEM((B, H), f32),   # h carry
                            pltpu.VMEM((B, H), f32)],  # c carry
        ),
        compiler_params=pltpu.CompilerParams(
            # Time is recurrent -> "arbitrary". For v7x, a leading "parallel"
            # batch-group axis would engage the second TensorCore.
            dimension_semantics=("arbitrary",),
        ),
    )(*gate_pre, *whh_t, h0, c0)

    # (T, B, H) -> (B, T, H), dropping any time padding.
    out_bt = jnp.transpose(out_tm[:T], (1, 0, 2))

    # --- Output FC as a single-block Pallas matmul.
    x2d = out_bt.reshape(B * T, H)
    w_fc = w_out.astype(f32).T                 # (H, V)
    b_fc = b_out.astype(f32).reshape(1, vocab_size)

    logits2d = pl.pallas_call(
        _fc_kernel,
        out_shape=jax.ShapeDtypeStruct((B * T, vocab_size), f32),
        grid_spec=pltpu.PrefetchScalarGridSpec(
            num_scalar_prefetch=0,
            grid=(1,),
            in_specs=[
                pl.BlockSpec((B * T, H), lambda i: (0, 0)),
                pl.BlockSpec((H, vocab_size), lambda i: (0, 0)),
                pl.BlockSpec((1, vocab_size), lambda i: (0, 0)),
            ],
            out_specs=pl.BlockSpec((B * T, vocab_size), lambda i: (0, 0)),
        ),
        compiler_params=pltpu.CompilerParams(
            dimension_semantics=("arbitrary",),
        ),
    )(x2d, w_fc, b_fc)

    logits = logits2d.reshape(B, T, vocab_size)
    return logits, (h_n[None, :, :], c_n[None, :, :])


# ---------------------------------------------------------------------------
# Pure-JAX reference matching the PyTorch module's forward.
# ---------------------------------------------------------------------------
def _reference_forward(input_tokens, hidden, cell,
                       emb_weight, w_ih, w_hh, b_ih, b_hh, w_out, b_out):
    B, T = input_tokens.shape
    H = w_hh.shape[1]
    emb = jnp.take(emb_weight, input_tokens, axis=0)   # (B, T, E)

    def step(carry, x_t):
        h, c = carry
        gates = x_t @ w_ih.T + b_ih + h @ w_hh.T + b_hh
        i = jax.nn.sigmoid(gates[:, 0 * H:1 * H])
        f = jax.nn.sigmoid(gates[:, 1 * H:2 * H])
        g = jnp.tanh(gates[:, 2 * H:3 * H])
        o = jax.nn.sigmoid(gates[:, 3 * H:4 * H])
        c = f * c + i * g
        h = o * jnp.tanh(c)
        return (h, c), h

    h0 = hidden.reshape(B, H)
    c0 = cell.reshape(B, H)
    (h, c), out_tm = jax.lax.scan(step, (h0, c0), jnp.transpose(emb, (1, 0, 2)))
    out = jnp.transpose(out_tm, (1, 0, 2))             # (B, T, H)
    logits = out @ w_out.T + b_out
    return logits, (h[None], c[None])


if __name__ == "__main__":
    B, T = 2, 8
    vocab_size, embed_dim, hidden_dim = 50, 16, 32

    key = jax.random.PRNGKey(0)
    keys = jax.random.split(key, 10)

    bound = 1.0 / np.sqrt(hidden_dim)
    emb_w = jax.random.normal(keys[0], (vocab_size, embed_dim), jnp.float32)
    w_ih = jax.random.uniform(keys[1], (4 * hidden_dim, embed_dim), jnp.float32, -bound, bound)
    w_hh = jax.random.uniform(keys[2], (4 * hidden_dim, hidden_dim), jnp.float32, -bound, bound)
    b_ih = jax.random.uniform(keys[3], (4 * hidden_dim,), jnp.float32, -bound, bound)
    b_hh = jax.random.uniform(keys[4], (4 * hidden_dim,), jnp.float32, -bound, bound)
    w_out = jax.random.uniform(keys[5], (vocab_size, hidden_dim), jnp.float32, -bound, bound)
    b_out = jax.random.uniform(keys[6], (vocab_size,), jnp.float32, -bound, bound)

    tokens = jax.random.randint(keys[7], (B, T), 0, vocab_size, dtype=jnp.int32)
    hidden = 0.1 * jax.random.normal(keys[8], (1, B, hidden_dim), jnp.float32)
    cell = 0.1 * jax.random.normal(keys[9], (1, B, hidden_dim), jnp.float32)

    logits, (h, c) = comment_decoder_forward(
        tokens, hidden, cell, emb_w, w_ih, w_hh, b_ih, b_hh, w_out, b_out)
    logits = jax.block_until_ready(logits)
    h, c = jax.block_until_ready(h), jax.block_until_ready(c)

    logits_ref, (h_ref, c_ref) = _reference_forward(
        tokens, hidden, cell, emb_w, w_ih, w_hh, b_ih, b_hh, w_out, b_out)

    assert logits.shape == (B, T, vocab_size)
    assert h.shape == (1, B, hidden_dim) and c.shape == (1, B, hidden_dim)
    np.testing.assert_allclose(np.asarray(h), np.asarray(h_ref), rtol=2e-5, atol=2e-5)
    np.testing.assert_allclose(np.asarray(c), np.asarray(c_ref), rtol=2e-5, atol=2e-5)
    np.testing.assert_allclose(np.asarray(logits), np.asarray(logits_ref), rtol=2e-5, atol=2e-5)

    print("KERNEL_OK")
</pallas_src>

<mosaic_0001>
module attributes {stable_mosaic.version = 11 : i64} {
  func.func @_lstm_recurrence_kernel(%arg0: i32, %arg1: memref<8x2x32xf32, #tpu.memory_space<vmem>>, %arg2: memref<8x2x32xf32, #tpu.memory_space<vmem>>, %arg3: memref<8x2x32xf32, #tpu.memory_space<vmem>>, %arg4: memref<8x2x32xf32, #tpu.memory_space<vmem>>, %arg5: memref<32x32xf32, #tpu.memory_space<vmem>>, %arg6: memref<32x32xf32, #tpu.memory_space<vmem>>, %arg7: memref<32x32xf32, #tpu.memory_space<vmem>>, %arg8: memref<32x32xf32, #tpu.memory_space<vmem>>, %arg9: memref<2x32xf32, #tpu.memory_space<vmem>>, %arg10: memref<2x32xf32, #tpu.memory_space<vmem>>, %arg11: memref<8x2x32xf32, #tpu.memory_space<vmem>>, %arg12: memref<2x32xf32, #tpu.memory_space<vmem>>, %arg13: memref<2x32xf32, #tpu.memory_space<vmem>>, %arg14: memref<2x32xf32, #tpu.memory_space<vmem>>, %arg15: memref<2x32xf32, #tpu.memory_space<vmem>>) attributes {dimension_semantics = [#tpu.dimension_semantics<arbitrary>], iteration_bounds = array<i64: 1>, scalar_prefetch = 0 : i64, scratch_operands = 2 : i64, tpu.core_type = #tpu.core_type<tc>, window_params = [{transform_indices = @transform_0, window_bounds = array<i64: 8, 2, 32>}, {transform_indices = @transform_1, window_bounds = array<i64: 8, 2, 32>}, {transform_indices = @transform_2, window_bounds = array<i64: 8, 2, 32>}, {transform_indices = @transform_3, window_bounds = array<i64: 8, 2, 32>}, {pipeline_mode = #tpu.pipeline_mode<synchronous>, transform_indices = @transform_4, window_bounds = array<i64: 32, 32>}, {pipeline_mode = #tpu.pipeline_mode<synchronous>, transform_indices = @transform_5, window_bounds = array<i64: 32, 32>}, {pipeline_mode = #tpu.pipeline_mode<synchronous>, transform_indices = @transform_6, window_bounds = array<i64: 32, 32>}, {pipeline_mode = #tpu.pipeline_mode<synchronous>, transform_indices = @transform_7, window_bounds = array<i64: 32, 32>}, {pipeline_mode = #tpu.pipeline_mode<synchronous>, transform_indices = @transform_8, window_bounds = array<i64: 2, 32>}, {pipeline_mode = #tpu.pipeline_mode<synchronous>, transform_indices = @transform_9, window_bounds = array<i64: 2, 32>}, {transform_indices = @transform_10, window_bounds = array<i64: 8, 2, 32>}, {pipeline_mode = #tpu.pipeline_mode<synchronous>, transform_indices = @transform_11, window_bounds = array<i64: 2, 32>}, {pipeline_mode = #tpu.pipeline_mode<synchronous>, transform_indices = @transform_12, window_bounds = array<i64: 2, 32>}]} {
    %c0_i32 = arith.constant 0 : i32
    %0 = arith.cmpi eq, %arg0, %c0_i32 : i32
    %1 = arith.extui %0 : i1 to i32
    %c0_i32_0 = arith.constant 0 : i32
    %2 = arith.cmpi ne, %1, %c0_i32_0 : i32
    scf.if %2 {
      %c0_266 = arith.constant 0 : index
      %c0_267 = arith.constant 0 : index
      %430 = vector.load %arg9[%c0_266, %c0_267] : memref<2x32xf32, #tpu.memory_space<vmem>>, vector<2x32xf32>
      %c0_268 = arith.constant 0 : index
      %c0_269 = arith.constant 0 : index
      %431 = vector.load %arg14[%c0_268, %c0_269] : memref<2x32xf32, #tpu.memory_space<vmem>>, vector<2x32xf32>
      tpu.vector_store %arg14[%c0_268, %c0_269], %430 {strides = array<i32>} : memref<2x32xf32, #tpu.memory_space<vmem>>, vector<2x32xf32>,
      %c0_270 = arith.constant 0 : index
      %c0_271 = arith.constant 0 : index
      %432 = vector.load %arg10[%c0_270, %c0_271] : memref<2x32xf32, #tpu.memory_space<vmem>>, vector<2x32xf32>
      %c0_272 = arith.constant 0 : index
      %c0_273 = arith.constant 0 : index
      %433 = vector.load %arg15[%c0_272, %c0_273] : memref<2x32xf32, #tpu.memory_space<vmem>>, vector<2x32xf32>
      tpu.vector_store %arg15[%c0_272, %c0_273], %432 {strides = array<i32>} : memref<2x32xf32, #tpu.memory_space<vmem>>, vector<2x32xf32>,
    } else {
    }
    %c0_i32_1 = arith.constant 0 : i32
    %c0 = arith.constant 0 : index
    %c0_2 = arith.constant 0 : index
    %3 = vector.load %arg14[%c0, %c0_2] : memref<2x32xf32, #tpu.memory_space<vmem>>, vector<2x32xf32>
    %c0_3 = arith.constant 0 : index
    %c0_4 = arith.constant 0 : index
    %4 = vector.load %arg15[%c0_3, %c0_4] : memref<2x32xf32, #tpu.memory_space<vmem>>, vector<2x32xf32>
    %5 = arith.index_cast %c0_i32_1 : i32 to index
    %c0_5 = arith.constant 0 : index
    %c0_6 = arith.constant 0 : index
    %6 = vector.load %arg1[%5, %c0_5, %c0_6] : memref<8x2x32xf32, #tpu.memory_space<vmem>>, vector<1x2x32xf32>
    %7 = vector.shape_cast %6 : vector<1x2x32xf32> to vector<2x32xf32>
    %c0_7 = arith.constant 0 : index
    %c0_8 = arith.constant 0 : index
    %8 = vector.load %arg5[%c0_7, %c0_8] : memref<32x32xf32, #tpu.memory_space<vmem>>, vector<32x32xf32>
    %cst = arith.constant dense<0.000000e+00> : vector<2x32xf32>
    %9 = tpu.matmul %3, %8, %cst {dimension_numbers = #tpu.dot_dimension_numbers<[1], [0], [0], [1], [0, 0, 1, 1], [], []>} : vector<2x32xf32>, vector<32x32xf32>, vector<2x32xf32> -> vector<2x32xf32>
    %10 = arith.addf %7, %9 : vector<2x32xf32>
    %11 = arith.index_cast %c0_i32_1 : i32 to index
    %c0_9 = arith.constant 0 : index
    %c0_10 = arith.constant 0 : index
    %12 = vector.load %arg2[%11, %c0_9, %c0_10] : memref<8x2x32xf32, #tpu.memory_space<vmem>>, vector<1x2x32xf32>
    %13 = vector.shape_cast %12 : vector<1x2x32xf32> to vector<2x32xf32>
    %c0_11 = arith.constant 0 : index
    %c0_12 = arith.constant 0 : index
    %14 = vector.load %arg6[%c0_11, %c0_12] : memref<32x32xf32, #tpu.memory_space<vmem>>, vector<32x32xf32>
    %cst_13 = arith.constant dense<0.000000e+00> : vector<2x32xf32>
    %15 = tpu.matmul %3, %14, %cst_13 {dimension_numbers = #tpu.dot_dimension_numbers<[1], [0], [0], [1], [0, 0, 1, 1], [], []>} : vector<2x32xf32>, vector<32x32xf32>, vector<2x32xf32> -> vector<2x32xf32>
    %16 = arith.addf %13, %15 : vector<2x32xf32>
    %17 = arith.index_cast %c0_i32_1 : i32 to index
    %c0_14 = arith.constant 0 : index
    %c0_15 = arith.constant 0 : index
    %18 = vector.load %arg3[%17, %c0_14, %c0_15] : memref<8x2x32xf32, #tpu.memory_space<vmem>>, vector<1x2x32xf32>
    %19 = vector.shape_cast %18 : vector<1x2x32xf32> to vector<2x32xf32>
    %c0_16 = arith.constant 0 : index
    %c0_17 = arith.constant 0 : index
    %20 = vector.load %arg7[%c0_16, %c0_17] : memref<32x32xf32, #tpu.memory_space<vmem>>, vector<32x32xf32>
    %cst_18 = arith.constant dense<0.000000e+00> : vector<2x32xf32>
    %21 = tpu.matmul %3, %20, %cst_18 {dimension_numbers = #tpu.dot_dimension_numbers<[1], [0], [0], [1], [0, 0, 1, 1], [], []>} : vector<2x32xf32>, vector<32x32xf32>, vector<2x32xf32> -> vector<2x32xf32>
    %22 = arith.addf %19, %21 : vector<2x32xf32>
    %23 = arith.index_cast %c0_i32_1 : i32 to index
    %c0_19 = arith.constant 0 : index
    %c0_20 = arith.constant 0 : index
    %24 = vector.load %arg4[%23, %c0_19, %c0_20] : memref<8x2x32xf32, #tpu.memory_space<vmem>>, vector<1x2x32xf32>
    %25 = vector.shape_cast %24 : vector<1x2x32xf32> to vector<2x32xf32>
    %c0_21 = arith.constant 0 : index
    %c0_22 = arith.constant 0 : index
    %26 = vector.load %arg8[%c0_21, %c0_22] : memref<32x32xf32, #tpu.memory_space<vmem>>, vector<32x32xf32>
    %cst_23 = arith.constant dense<0.000000e+00> : vector<2x32xf32>
    %27 = tpu.matmul %3, %26, %cst_23 {dimension_numbers = #tpu.dot_dimension_numbers<[1], [0], [0], [1], [0, 0, 1, 1], [], []>} : vector<2x32xf32>, vector<32x32xf32>, vector<2x32xf32> -> vector<2x32xf32>
    %28 = arith.addf %25, %27 : vector<2x32xf32>
    %29 = arith.negf %10 : vector<2x32xf32>
    %30 = math.exp %29 : vector<2x32xf32>
    %cst_24 = arith.constant 1.000000e+00 : f32
    %31 = vector.broadcast %cst_24 : f32 to vector<2x32xf32>
    %32 = arith.addf %31, %30 : vector<2x32xf32>
    %33 = arith.divf %31, %32 : vector<2x32xf32>
    %34 = arith.negf %16 : vector<2x32xf32>
    %35 = math.exp %34 : vector<2x32xf32>
    %cst_25 = arith.constant 1.000000e+00 : f32
    %36 = vector.broadcast %cst_25 : f32 to vector<2x32xf32>
    %37 = arith.addf %36, %35 : vector<2x32xf32>
    %38 = arith.divf %36, %37 : vector<2x32xf32>
    %39 = math.tanh %22 : vector<2x32xf32>
    %40 = arith.negf %28 : vector<2x32xf32>
    %41 = math.exp %40 : vector<2x32xf32>
    %cst_26 = arith.constant 1.000000e+00 : f32
    %42 = vector.broadcast %cst_26 : f32 to vector<2x32xf32>
    %43 = arith.addf %42, %41 : vector<2x32xf32>
    %44 = arith.divf %42, %43 : vector<2x32xf32>
    %45 = arith.mulf %38, %4 : vector<2x32xf32>
    %46 = arith.mulf %33, %39 : vector<2x32xf32>
    %47 = arith.addf %45, %46 : vector<2x32xf32>
    %48 = math.tanh %47 : vector<2x32xf32>
    %49 = arith.mulf %44, %48 : vector<2x32xf32>
    %c0_27 = arith.constant 0 : index
    %c0_28 = arith.constant 0 : index
    %50 = vector.load %arg14[%c0_27, %c0_28] : memref<2x32xf32, #tpu.memory_space<vmem>>, vector<2x32xf32>
    tpu.vector_store %arg14[%c0_27, %c0_28], %49 {strides = array<i32>} : memref<2x32xf32, #tpu.memory_space<vmem>>, vector<2x32xf32>,
    %c0_29 = arith.constant 0 : index
    %c0_30 = arith.constant 0 : index
    %51 = vector.load %arg15[%c0_29, %c0_30] : memref<2x32xf32, #tpu.memory_space<vmem>>, vector<2x32xf32>
    tpu.vector_store %arg15[%c0_29, %c0_30], %47 {strides = array<i32>} : memref<2x32xf32, #tpu.memory_space<vmem>>, vector<2x32xf32>,
    %52 = arith.index_cast %c0_i32_1 : i32 to index
    %c0_31 = arith.constant 0 : index
    %c0_32 = arith.constant 0 : index
    %53 = vector.load %arg11[%52, %c0_31, %c0_32] : memref<8x2x32xf32, #tpu.memory_space<vmem>>, vector<1x2x32xf32>
    %54 = vector.shape_cast %53 : vector<1x2x32xf32> to vector<2x32xf32>
    %55 = vector.shape_cast %49 : vector<2x32xf32> to vector<1x2x32xf32>
    tpu.vector_store %arg11[%52, %c0_31, %c0_32], %55 {strides = array<i32>} : memref<8x2x32xf32, #tpu.memory_space<vmem>>, vector<1x2x32xf32>,
    %c1_i32 = arith.constant 1 : i32
    %c0_33 = arith.constant 0 : index
    %c0_34 = arith.constant 0 : index
    %56 = vector.load %arg14[%c0_33, %c0_34] : memref<2x32xf32, #tpu.memory_space<vmem>>, vector<2x32xf32>
    %c0_35 = arith.constant 0 : index
    %c0_36 = arith.constant 0 : index
    %57 = vector.load %arg15[%c0_35, %c0_36] : memref<2x32xf32, #tpu.memory_space<vmem>>, vector<2x32xf32>
    %58 = arith.index_cast %c1_i32 : i32 to index
    %c0_37 = arith.constant 0 : index
    %c0_38 = arith.constant 0 : index
    %59 = vector.load %arg1[%58, %c0_37, %c0_38] : memref<8x2x32xf32, #tpu.memory_space<vmem>>, vector<1x2x32xf32>
    %60 = vector.shape_cast %59 : vector<1x2x32xf32> to vector<2x32xf32>
    %c0_39 = arith.constant 0 : index
    %c0_40 = arith.constant 0 : index
    %61 = vector.load %arg5[%c0_39, %c0_40] : memref<32x32xf32, #tpu.memory_space<vmem>>, vector<32x32xf32>
    %cst_41 = arith.constant dense<0.000000e+00> : vector<2x32xf32>
    %62 = tpu.matmul %56, %61, %cst_41 {dimension_numbers = #tpu.dot_dimension_numbers<[1], [0], [0], [1], [0, 0, 1, 1], [], []>} : vector<2x32xf32>, vector<32x32xf32>, vector<2x32xf32> -> vector<2x32xf32>
    %63 = arith.addf %60, %62 : vector<2x32xf32>
    %64 = arith.index_cast %c1_i32 : i32 to index
    %c0_42 = arith.constant 0 : index
    %c0_43 = arith.constant 0 : index
    %65 = vector.load %arg2[%64, %c0_42, %c0_43] : memref<8x2x32xf32, #tpu.memory_space<vmem>>, vector<1x2x32xf32>
    %66 = vector.shape_cast %65 : vector<1x2x32xf32> to vector<2x32xf32>
    %c0_44 = arith.constant 0 : index
    %c0_45 = arith.constant 0 : index
    %67 = vector.load %arg6[%c0_44, %c0_45] : memref<32x32xf32, #tpu.memory_space<vmem>>, vector<32x32xf32>
    %cst_46 = arith.constant dense<0.000000e+00> : vector<2x32xf32>
    %68 = tpu.matmul %56, %67, %cst_46 {dimension_numbers = #tpu.dot_dimension_numbers<[1], [0], [0], [1], [0, 0, 1, 1], [], []>} : vector<2x32xf32>, vector<32x32xf32>, vector<2x32xf32> -> vector<2x32xf32>
    %69 = arith.addf %66, %68 : vector<2x32xf32>
    %70 = arith.index_cast %c1_i32 : i32 to index
    %c0_47 = arith.constant 0 : index
    %c0_48 = arith.constant 0 : index
    %71 = vector.load %arg3[%70, %c0_47, %c0_48] : memref<8x2x32xf32, #tpu.memory_space<vmem>>, vector<1x2x32xf32>
    %72 = vector.shape_cast %71 : vector<1x2x32xf32> to vector<2x32xf32>
    %c0_49 = arith.constant 0 : index
    %c0_50 = arith.constant 0 : index
    %73 = vector.load %arg7[%c0_49, %c0_50] : memref<32x32xf32, #tpu.memory_space<vmem>>, vector<32x32xf32>
    %cst_51 = arith.constant dense<0.000000e+00> : vector<2x32xf32>
    %74 = tpu.matmul %56, %73, %cst_51 {dimension_numbers = #tpu.dot_dimension_numbers<[1], [0], [0], [1], [0, 0, 1, 1], [], []>} : vector<2x32xf32>, vector<32x32xf32>, vector<2x32xf32> -> vector<2x32xf32>
    %75 = arith.addf %72, %74 : vector<2x32xf32>
    %76 = arith.index_cast %c1_i32 : i32 to index
    %c0_52 = arith.constant 0 : index
    %c0_53 = arith.constant 0 : index
    %77 = vector.load %arg4[%76, %c0_52, %c0_53] : memref<8x2x32xf32, #tpu.memory_space<vmem>>, vector<1x2x32xf32>
    %78 = vector.shape_cast %77 : vector<1x2x32xf32> to vector<2x32xf32>
    %c0_54 = arith.constant 0 : index
    %c0_55 = arith.constant 0 : index
    %79 = vector.load %arg8[%c0_54, %c0_55] : memref<32x32xf32, #tpu.memory_space<vmem>>, vector<32x32xf32>
    %cst_56 = arith.constant dense<0.000000e+00> : vector<2x32xf32>
    %80 = tpu.matmul %56, %79, %cst_56 {dimension_numbers = #tpu.dot_dimension_numbers<[1], [0], [0], [1], [0, 0, 1, 1], [], []>} : vector<2x32xf32>, vector<32x32xf32>, vector<2x32xf32> -> vector<2x32xf32>
    %81 = arith.addf %78, %80 : vector<2x32xf32>
    %82 = arith.negf %63 : vector<2x32xf32>
    %83 = math.exp %82 : vector<2x32xf32>
    %cst_57 = arith.constant 1.000000e+00 : f32
    %84 = vector.broadcast %cst_57 : f32 to vector<2x32xf32>
    %85 = arith.addf %84, %83 : vector<2x32xf32>
    %86 = arith.divf %84, %85 : vector<2x32xf32>
    %87 = arith.negf %69 : vector<2x32xf32>
    %88 = math.exp %87 : vector<2x32xf32>
    %cst_58 = arith.constant 1.000000e+00 : f32
    %89 = vector.broadcast %cst_58 : f32 to vector<2x32xf32>
    %90 = arith.addf %89, %88 : vector<2x32xf32>
    %91 = arith.divf %89, %90 : vector<2x32xf32>
    %92 = math.tanh %75 : vector<2x32xf32>
    %93 = arith.negf %81 : vector<2x32xf32>
    %94 = math.exp %93 : vector<2x32xf32>
    %cst_59 = arith.constant 1.000000e+00 : f32
    %95 = vector.broadcast %cst_59 : f32 to vector<2x32xf32>
    %96 = arith.addf %95, %94 : vector<2x32xf32>
    %97 = arith.divf %95, %96 : vector<2x32xf32>
    %98 = arith.mulf %91, %57 : vector<2x32xf32>
    %99 = arith.mulf %86, %92 : vector<2x32xf32>
    %100 = arith.addf %98, %99 : vector<2x32xf32>
    %101 = math.tanh %100 : vector<2x32xf32>
    %102 = arith.mulf %97, %101 : vector<2x32xf32>
    %c0_60 = arith.constant 0 : index
    %c0_61 = arith.constant 0 : index
    %103 = vector.load %arg14[%c0_60, %c0_61] : memref<2x32xf32, #tpu.memory_space<vmem>>, vector<2x32xf32>
    tpu.vector_store %arg14[%c0_60, %c0_61], %102 {strides = array<i32>} : memref<2x32xf32, #tpu.memory_space<vmem>>, vector<2x32xf32>,
    %c0_62 = arith.constant 0 : index
    %c0_63 = arith.constant 0 : index
    %104 = vector.load %arg15[%c0_62, %c0_63] : memref<2x32xf32, #tpu.memory_space<vmem>>, vector<2x32xf32>
    tpu.vector_store %arg15[%c0_62, %c0_63], %100 {strides = array<i32>} : memref<2x32xf32, #tpu.memory_space<vmem>>, vector<2x32xf32>,
    %105 = arith.index_cast %c1_i32 : i32 to index
    %c0_64 = arith.constant 0 : index
    %c0_65 = arith.constant 0 : index
    %106 = vector.load %arg11[%105, %c0_64, %c0_65] : memref<8x2x32xf32, #tpu.memory_space<vmem>>, vector<1x2x32xf32>
    %107 = vector.shape_cast %106 : vector<1x2x32xf32> to vector<2x32xf32>
    %108 = vector.shape_cast %102 : vector<2x32xf32> to vector<1x2x32xf32>
    tpu.vector_store %arg11[%105, %c0_64, %c0_65], %108 {strides = array<i32>} : memref<8x2x32xf32, #tpu.memory_space<vmem>>, vector<1x2x32xf32>,
    %c2_i32 = arith.constant 2 : i32
    %c0_66 = arith.constant 0 : index
    %c0_67 = arith.constant 0 : index
    %109 = vector.load %arg14[%c0_66, %c0_67] : memref<2x32xf32, #tpu.memory_space<vmem>>, vector<2x32xf32>
    %c0_68 = arith.constant 0 : index
    %c0_69 = arith.constant 0 : index
    %110 = vector.load %arg15[%c0_68, %c0_69] : memref<2x32xf32, #tpu.memory_space<vmem>>, vector<2x32xf32>
    %111 = arith.index_cast %c2_i32 : i32 to index
    %c0_70 = arith.constant 0 : index
    %c0_71 = arith.constant 0 : index
    %112 = vector.load %arg1[%111, %c0_70, %c0_71] : memref<8x2x32xf32, #tpu.memory_space<vmem>>, vector<1x2x32xf32>
    %113 = vector.shape_cast %112 : vector<1x2x32xf32> to vector<2x32xf32>
    %c0_72 = arith.constant 0 : index
    %c0_73 = arith.constant 0 : index
    %114 = vector.load %arg5[%c0_72, %c0_73] : memref<32x32xf32, #tpu.memory_space<vmem>>, vector<32x32xf32>
    %cst_74 = arith.constant dense<0.000000e+00> : vector<2x32xf32>
    %115 = tpu.matmul %109, %114, %cst_74 {dimension_numbers = #tpu.dot_dimension_numbers<[1], [0], [0], [1], [0, 0, 1, 1], [], []>} : vector<2x32xf32>, vector<32x32xf32>, vector<2x32xf32> -> vector<2x32xf32>
    %116 = arith.addf %113, %115 : vector<2x32xf32>
    %117 = arith.index_cast %c2_i32 : i32 to index
    %c0_75 = arith.constant 0 : index
    %c0_76 = arith.constant 0 : index
    %118 = vector.load %arg2[%117, %c0_75, %c0_76] : memref<8x2x32xf32, #tpu.memory_space<vmem>>, vector<1x2x32xf32>
    %119 = vector.shape_cast %118 : vector<1x2x32xf32> to vector<2x32xf32>
    %c0_77 = arith.constant 0 : index
    %c0_78 = arith.constant 0 : index
    %120 = vector.load %arg6[%c0_77, %c0_78] : memref<32x32xf32, #tpu.memory_space<vmem>>, vector<32x32xf32>
    %cst_79 = arith.constant dense<0.000000e+00> : vector<2x32xf32>
    %121 = tpu.matmul %109, %120, %cst_79 {dimension_numbers = #tpu.dot_dimension_numbers<[1], [0], [0], [1], [0, 0, 1, 1], [], []>} : vector<2x32xf32>, vector<32x32xf32>, vector<2x32xf32> -> vector<2x32xf32>
    %122 = arith.addf %119, %121 : vector<2x32xf32>
    %123 = arith.index_cast %c2_i32 : i32 to index
    %c0_80 = arith.constant 0 : index
    %c0_81 = arith.constant 0 : index
    %124 = vector.load %arg3[%123, %c0_80, %c0_81] : memref<8x2x32xf32, #tpu.memory_space<vmem>>, vector<1x2x32xf32>
    %125 = vector.shape_cast %124 : vector<1x2x32xf32> to vector<2x32xf32>
    %c0_82 = arith.constant 0 : index
    %c0_83 = arith.constant 0 : index
    %126 = vector.load %arg7[%c0_82, %c0_83] : memref<32x32xf32, #tpu.memory_space<vmem>>, vector<32x32xf32>
    %cst_84 = arith.constant dense<0.000000e+00> : vector<2x32xf32>
    %127 = tpu.matmul %109, %126, %cst_84 {dimension_numbers = #tpu.dot_dimension_numbers<[1], [0], [0], [1], [0, 0, 1, 1], [], []>} : vector<2x32xf32>, vector<32x32xf32>, vector<2x32xf32> -> vector<2x32xf32>
    %128 = arith.addf %125, %127 : vector<2x32xf32>
    %129 = arith.index_cast %c2_i32 : i32 to index
    %c0_85 = arith.constant 0 : index
    %c0_86 = arith.constant 0 : index
    %130 = vector.load %arg4[%129, %c0_85, %c0_86] : memref<8x2x32xf32, #tpu.memory_space<vmem>>, vector<1x2x32xf32>
    %131 = vector.shape_cast %130 : vector<1x2x32xf32> to vector<2x32xf32>
    %c0_87 = arith.constant 0 : index
    %c0_88 = arith.constant 0 : index
    %132 = vector.load %arg8[%c0_87, %c0_88] : memref<32x32xf32, #tpu.memory_space<vmem>>, vector<32x32xf32>
    %cst_89 = arith.constant dense<0.000000e+00> : vector<2x32xf32>
    %133 = tpu.matmul %109, %132, %cst_89 {dimension_numbers = #tpu.dot_dimension_numbers<[1], [0], [0], [1], [0, 0, 1, 1], [], []>} : vector<2x32xf32>, vector<32x32xf32>, vector<2x32xf32> -> vector<2x32xf32>
    %134 = arith.addf %131, %133 : vector<2x32xf32>
    %135 = arith.negf %116 : vector<2x32xf32>
    %136 = math.exp %135 : vector<2x32xf32>
    %cst_90 = arith.constant 1.000000e+00 : f32
    %137 = vector.broadcast %cst_90 : f32 to vector<2x32xf32>
    %138 = arith.addf %137, %136 : vector<2x32xf32>
    %139 = arith.divf %137, %138 : vector<2x32xf32>
    %140 = arith.negf %122 : vector<2x32xf32>
    %141 = math.exp %140 : vector<2x32xf32>
    %cst_91 = arith.constant 1.000000e+00 : f32
    %142 = vector.broadcast %cst_91 : f32 to vector<2x32xf32>
    %143 = arith.addf %142, %141 : vector<2x32xf32>
    %144 = arith.divf %142, %143 : vector<2x32xf32>
    %145 = math.tanh %128 : vector<2x32xf32>
    %146 = arith.negf %134 : vector<2x32xf32>
    %147 = math.exp %146 : vector<2x32xf32>
    %cst_92 = arith.constant 1.000000e+00 : f32
    %148 = vector.broadcast %cst_92 : f32 to vector<2x32xf32>
    %149 = arith.addf %148, %147 : vector<2x32xf32>
    %150 = arith.divf %148, %149 : vector<2x32xf32>
    %151 = arith.mulf %144, %110 : vector<2x32xf32>
    %152 = arith.mulf %139, %145 : vector<2x32xf32>
    %153 = arith.addf %151, %152 : vector<2x32xf32>
    %154 = math.tanh %153 : vector<2x32xf32>
    %155 = arith.mulf %150, %154 : vector<2x32xf32>
    %c0_93 = arith.constant 0 : index
    %c0_94 = arith.constant 0 : index
    %156 = vector.load %arg14[%c0_93, %c0_94] : memref<2x32xf32, #tpu.memory_space<vmem>>, vector<2x32xf32>
    tpu.vector_store %arg14[%c0_93, %c0_94], %155 {strides = array<i32>} : memref<2x32xf32, #tpu.memory_space<vmem>>, vector<2x32xf32>,
    %c0_95 = arith.constant 0 : index
    %c0_96 = arith.constant 0 : index
    %157 = vector.load %arg15[%c0_95, %c0_96] : memref<2x32xf32, #tpu.memory_space<vmem>>, vector<2x32xf32>
    tpu.vector_store %arg15[%c0_95, %c0_96], %153 {strides = array<i32>} : memref<2x32xf32, #tpu.memory_space<vmem>>, vector<2x32xf32>,
    %158 = arith.index_cast %c2_i32 : i32 to index
    %c0_97 = arith.constant 0 : index
    %c0_98 = arith.constant 0 : index
    %159 = vector.load %arg11[%158, %c0_97, %c0_98] : memref<8x2x32xf32, #tpu.memory_space<vmem>>, vector<1x2x32xf32>
    %160 = vector.shape_cast %159 : vector<1x2x32xf32> to vector<2x32xf32>
    %161 = vector.shape_cast %155 : vector<2x32xf32> to vector<1x2x32xf32>
    tpu.vector_store %arg11[%158, %c0_97, %c0_98], %161 {strides = array<i32>} : memref<8x2x32xf32, #tpu.memory_space<vmem>>, vector<1x2x32xf32>,
    %c3_i32 = arith.constant 3 : i32
    %c0_99 = arith.constant 0 : index
    %c0_100 = arith.constant 0 : index
    %162 = vector.load %arg14[%c0_99, %c0_100] : memref<2x32xf32, #tpu.memory_space<vmem>>, vector<2x32xf32>
    %c0_101 = arith.constant 0 : index
    %c0_102 = arith.constant 0 : index
    %163 = vector.load %arg15[%c0_101, %c0_102] : memref<2x32xf32, #tpu.memory_space<vmem>>, vector<2x32xf32>
    %164 = arith.index_cast %c3_i32 : i32 to index
    %c0_103 = arith.constant 0 : index
    %c0_104 = arith.constant 0 : index
    %165 = vector.load %arg1[%164, %c0_103, %c0_104] : memref<8x2x32xf32, #tpu.memory_space<vmem>>, vector<1x2x32xf32>
    %166 = vector.shape_cast %165 : vector<1x2x32xf32> to vector<2x32xf32>
    %c0_105 = arith.constant 0 : index
    %c0_106 = arith.constant 0 : index
    %167 = vector.load %arg5[%c0_105, %c0_106] : memref<32x32xf32, #tpu.memory_space<vmem>>, vector<32x32xf32>
    %cst_107 = arith.constant dense<0.000000e+00> : vector<2x32xf32>
    %168 = tpu.matmul %162, %167, %cst_107 {dimension_numbers = #tpu.dot_dimension_numbers<[1], [0], [0], [1], [0, 0, 1, 1], [], []>} : vector<2x32xf32>, vector<32x32xf32>, vector<2x32xf32> -> vector<2x32xf32>
    %169 = arith.addf %166, %168 : vector<2x32xf32>
    %170 = arith.index_cast %c3_i32 : i32 to index
    %c0_108 = arith.constant 0 : index
    %c0_109 = arith.constant 0 : index
    %171 = vector.load %arg2[%170, %c0_108, %c0_109] : memref<8x2x32xf32, #tpu.memory_space<vmem>>, vector<1x2x32xf32>
    %172 = vector.shape_cast %171 : vector<1x2x32xf32> to vector<2x32xf32>
    %c0_110 = arith.constant 0 : index
    %c0_111 = arith.constant 0 : index
    %173 = vector.load %arg6[%c0_110, %c0_111] : memref<32x32xf32, #tpu.memory_space<vmem>>, vector<32x32xf32>
    %cst_112 = arith.constant dense<0.000000e+00> : vector<2x32xf32>
    %174 = tpu.matmul %162, %173, %cst_112 {dimension_numbers = #tpu.dot_dimension_numbers<[1], [0], [0], [1], [0, 0, 1, 1], [], []>} : vector<2x32xf32>, vector<32x32xf32>, vector<2x32xf32> -> vector<2x32xf32>
    %175 = arith.addf %172, %174 : vector<2x32xf32>
    %176 = arith.index_cast %c3_i32 : i32 to index
    %c0_113 = arith.constant 0 : index
    %c0_114 = arith.constant 0 : index
    %177 = vector.load %arg3[%176, %c0_113, %c0_114] : memref<8x2x32xf32, #tpu.memory_space<vmem>>, vector<1x2x32xf32>
    %178 = vector.shape_cast %177 : vector<1x2x32xf32> to vector<2x32xf32>
    %c0_115 = arith.constant 0 : index
    %c0_116 = arith.constant 0 : index
    %179 = vector.load %arg7[%c0_115, %c0_116] : memref<32x32xf32, #tpu.memory_space<vmem>>, vector<32x32xf32>
    %cst_117 = arith.constant dense<0.000000e+00> : vector<2x32xf32>
    %180 = tpu.matmul %162, %179, %cst_117 {dimension_numbers = #tpu.dot_dimension_numbers<[1], [0], [0], [1], [0, 0, 1, 1], [], []>} : vector<2x32xf32>, vector<32x32xf32>, vector<2x32xf32> -> vector<2x32xf32>
    %181 = arith.addf %178, %180 : vector<2x32xf32>
    %182 = arith.index_cast %c3_i32 : i32 to index
    %c0_118 = arith.constant 0 : index
    %c0_119 = arith.constant 0 : index
    %183 = vector.load %arg4[%182, %c0_118, %c0_119] : memref<8x2x32xf32, #tpu.memory_space<vmem>>, vector<1x2x32xf32>
    %184 = vector.shape_cast %183 : vector<1x2x32xf32> to vector<2x32xf32>
    %c0_120 = arith.constant 0 : index
    %c0_121 = arith.constant 0 : index
    %185 = vector.load %arg8[%c0_120, %c0_121] : memref<32x32xf32, #tpu.memory_space<vmem>>, vector<32x32xf32>
    %cst_122 = arith.constant dense<0.000000e+00> : vector<2x32xf32>
    %186 = tpu.matmul %162, %185, %cst_122 {dimension_numbers = #tpu.dot_dimension_numbers<[1], [0], [0], [1], [0, 0, 1, 1], [], []>} : vector<2x32xf32>, vector<32x32xf32>, vector<2x32xf32> -> vector<2x32xf32>
    %187 = arith.addf %184, %186 : vector<2x32xf32>
    %188 = arith.negf %169 : vector<2x32xf32>
    %189 = math.exp %188 : vector<2x32xf32>
    %cst_123 = arith.constant 1.000000e+00 : f32
    %190 = vector.broadcast %cst_123 : f32 to vector<2x32xf32>
    %191 = arith.addf %190, %189 : vector<2x32xf32>
    %192 = arith.divf %190, %191 : vector<2x32xf32>
    %193 = arith.negf %175 : vector<2x32xf32>
    %194 = math.exp %193 : vector<2x32xf32>
    %cst_124 = arith.constant 1.000000e+00 : f32
    %195 = vector.broadcast %cst_124 : f32 to vector<2x32xf32>
    %196 = arith.addf %195, %194 : vector<2x32xf32>
    %197 = arith.divf %195, %196 : vector<2x32xf32>
    %198 = math.tanh %181 : vector<2x32xf32>
    %199 = arith.negf %187 : vector<2x32xf32>
    %200 = math.exp %199 : vector<2x32xf32>
    %cst_125 = arith.constant 1.000000e+00 : f32
    %201 = vector.broadcast %cst_125 : f32 to vector<2x32xf32>
    %202 = arith.addf %201, %200 : vector<2x32xf32>
    %203 = arith.divf %201, %202 : vector<2x32xf32>
    %204 = arith.mulf %197, %163 : vector<2x32xf32>
    %205 = arith.mulf %192, %198 : vector<2x32xf32>
    %206 = arith.addf %204, %205 : vector<2x32xf32>
    %207 = math.tanh %206 : vector<2x32xf32>
    %208 = arith.mulf %203, %207 : vector<2x32xf32>
    %c0_126 = arith.constant 0 : index
    %c0_127 = arith.constant 0 : index
    %209 = vector.load %arg14[%c0_126, %c0_127] : memref<2x32xf32, #tpu.memory_space<vmem>>, vector<2x32xf32>
    tpu.vector_store %arg14[%c0_126, %c0_127], %208 {strides = array<i32>} : memref<2x32xf32, #tpu.memory_space<vmem>>, vector<2x32xf32>,
    %c0_128 = arith.constant 0 : index
    %c0_129 = arith.constant 0 : index
    %210 = vector.load %arg15[%c0_128, %c0_129] : memref<2x32xf32, #tpu.memory_space<vmem>>, vector<2x32xf32>
    tpu.vector_store %arg15[%c0_128, %c0_129], %206 {strides = array<i32>} : memref<2x32xf32, #tpu.memory_space<vmem>>, vector<2x32xf32>,
    %211 = arith.index_cast %c3_i32 : i32 to index
    %c0_130 = arith.constant 0 : index
    %c0_131 = arith.constant 0 : index
    %212 = vector.load %arg11[%211, %c0_130, %c0_131] : memref<8x2x32xf32, #tpu.memory_space<vmem>>, vector<1x2x32xf32>
    %213 = vector.shape_cast %212 : vector<1x2x32xf32> to vector<2x32xf32>
    %214 = vector.shape_cast %208 : vector<2x32xf32> to vector<1x2x32xf32>
    tpu.vector_store %arg11[%211, %c0_130, %c0_131], %214 {strides = array<i32>} : memref<8x2x32xf32, #tpu.memory_space<vmem>>, vector<1x2x32xf32>,
    %c4_i32 = arith.constant 4 : i32
    %c0_132 = arith.constant 0 : index
    %c0_133 = arith.constant 0 : index
    %215 = vector.load %arg14[%c0_132, %c0_133] : memref<2x32xf32, #tpu.memory_space<vmem>>, vector<2x32xf32>
    %c0_134 = arith.constant 0 : index
    %c0_135 = arith.constant 0 : index
    %216 = vector.load %arg15[%c0_134, %c0_135] : memref<2x32xf32, #tpu.memory_space<vmem>>, vector<2x32xf32>
    %217 = arith.index_cast %c4_i32 : i32 to index
    %c0_136 = arith.constant 0 : index
    %c0_137 = arith.constant 0 : index
    %218 = vector.load %arg1[%217, %c0_136, %c0_137] : memref<8x2x32xf32, #tpu.memory_space<vmem>>, vector<1x2x32xf32>
    %219 = vector.shape_cast %218 : vector<1x2x32xf32> to vector<2x32xf32>
    %c0_138 = arith.constant 0 : index
    %c0_139 = arith.constant 0 : index
    %220 = vector.load %arg5[%c0_138, %c0_139] : memref<32x32xf32, #tpu.memory_space<vmem>>, vector<32x32xf32>
    %cst_140 = arith.constant dense<0.000000e+00> : vector<2x32xf32>
    %221 = tpu.matmul %215, %220, %cst_140 {dimension_numbers = #tpu.dot_dimension_numbers<[1], [0], [0], [1], [0, 0, 1, 1], [], []>} : vector<2x32xf32>, vector<32x32xf32>, vector<2x32xf32> -> vector<2x32xf32>
    %222 = arith.addf %219, %221 : vector<2x32xf32>
    %223 = arith.index_cast %c4_i32 : i32 to index
    %c0_141 = arith.constant 0 : index
    %c0_142 = arith.constant 0 : index
    %224 = vector.load %arg2[%223, %c0_141, %c0_142] : memref<8x2x32xf32, #tpu.memory_space<vmem>>, vector<1x2x32xf32>
    %225 = vector.shape_cast %224 : vector<1x2x32xf32> to vector<2x32xf32>
    %c0_143 = arith.constant 0 : index
    %c0_144 = arith.constant 0 : index
    %226 = vector.load %arg6[%c0_143, %c0_144] : memref<32x32xf32, #tpu.memory_space<vmem>>, vector<32x32xf32>
    %cst_145 = arith.constant dense<0.000000e+00> : vector<2x32xf32>
    %227 = tpu.matmul %215, %226, %cst_145 {dimension_numbers = #tpu.dot_dimension_numbers<[1], [0], [0], [1], [0, 0, 1, 1], [], []>} : vector<2x32xf32>, vector<32x32xf32>, vector<2x32xf32> -> vector<2x32xf32>
    %228 = arith.addf %225, %227 : vector<2x32xf32>
    %229 = arith.index_cast %c4_i32 : i32 to index
    %c0_146 = arith.constant 0 : index
    %c0_147 = arith.constant 0 : index
    %230 = vector.load %arg3[%229, %c0_146, %c0_147] : memref<8x2x32xf32, #tpu.memory_space<vmem>>, vector<1x2x32xf32>
    %231 = vector.shape_cast %230 : vector<1x2x32xf32> to vector<2x32xf32>
    %c0_148 = arith.constant 0 : index
    %c0_149 = arith.constant 0 : index
    %232 = vector.load %arg7[%c0_148, %c0_149] : memref<32x32xf32, #tpu.memory_space<vmem>>, vector<32x32xf32>
    %cst_150 = arith.constant dense<0.000000e+00> : vector<2x32xf32>
    %233 = tpu.matmul %215, %232, %cst_150 {dimension_numbers = #tpu.dot_dimension_numbers<[1], [0], [0], [1], [0, 0, 1, 1], [], []>} : vector<2x32xf32>, vector<32x32xf32>, vector<2x32xf32> -> vector<2x32xf32>
    %234 = arith.addf %231, %233 : vector<2x32xf32>
    %235 = arith.index_cast %c4_i32 : i32 to index
    %c0_151 = arith.constant 0 : index
    %c0_152 = arith.constant 0 : index
    %236 = vector.load %arg4[%235, %c0_151, %c0_152] : memref<8x2x32xf32, #tpu.memory_space<vmem>>, vector<1x2x32xf32>
    %237 = vector.shape_cast %236 : vector<1x2x32xf32> to vector<2x32xf32>
    %c0_153 = arith.constant 0 : index
    %c0_154 = arith.constant 0 : index
    %238 = vector.load %arg8[%c0_153, %c0_154] : memref<32x32xf32, #tpu.memory_space<vmem>>, vector<32x32xf32>
    %cst_155 = arith.constant dense<0.000000e+00> : vector<2x32xf32>
    %239 = tpu.matmul %215, %238, %cst_155 {dimension_numbers = #tpu.dot_dimension_numbers<[1], [0], [0], [1], [0, 0, 1, 1], [], []>} : vector<2x32xf32>, vector<32x32xf32>, vector<2x32xf32> -> vector<2x32xf32>
    %240 = arith.addf %237, %239 : vector<2x32xf32>
    %241 = arith.negf %222 : vector<2x32xf32>
    %242 = math.exp %241 : vector<2x32xf32>
    %cst_156 = arith.constant 1.000000e+00 : f32
    %243 = vector.broadcast %cst_156 : f32 to vector<2x32xf32>
    %244 = arith.addf %243, %242 : vector<2x32xf32>
    %245 = arith.divf %243, %244 : vector<2x32xf32>
    %246 = arith.negf %228 : vector<2x32xf32>
    %247 = math.exp %246 : vector<2x32xf32>
    %cst_157 = arith.constant 1.000000e+00 : f32
    %248 = vector.broadcast %cst_157 : f32 to vector<2x32xf32>
    %249 = arith.addf %248, %247 : vector<2x32xf32>
    %250 = arith.divf %248, %249 : vector<2x32xf32>
    %251 = math.tanh %234 : vector<2x32xf32>
    %252 = arith.negf %240 : vector<2x32xf32>
    %253 = math.exp %252 : vector<2x32xf32>
    %cst_158 = arith.constant 1.000000e+00 : f32
    %254 = vector.broadcast %cst_158 : f32 to vector<2x32xf32>
    %255 = arith.addf %254, %253 : vector<2x32xf32>
    %256 = arith.divf %254, %255 : vector<2x32xf32>
    %257 = arith.mulf %250, %216 : vector<2x32xf32>
    %258 = arith.mulf %245, %251 : vector<2x32xf32>
    %259 = arith.addf %257, %258 : vector<2x32xf32>
    %260 = math.tanh %259 : vector<2x32xf32>
    %261 = arith.mulf %256, %260 : vector<2x32xf32>
    %c0_159 = arith.constant 0 : index
    %c0_160 = arith.constant 0 : index
    %262 = vector.load %arg14[%c0_159, %c0_160] : memref<2x32xf32, #tpu.memory_space<vmem>>, vector<2x32xf32>
    tpu.vector_store %arg14[%c0_159, %c0_160], %261 {strides = array<i32>} : memref<2x32xf32, #tpu.memory_space<vmem>>, vector<2x32xf32>,
    %c0_161 = arith.constant 0 : index
    %c0_162 = arith.constant 0 : index
    %263 = vector.load %arg15[%c0_161, %c0_162] : memref<2x32xf32, #tpu.memory_space<vmem>>, vector<2x32xf32>
    tpu.vector_store %arg15[%c0_161, %c0_162], %259 {strides = array<i32>} : memref<2x32xf32, #tpu.memory_space<vmem>>, vector<2x32xf32>,
    %264 = arith.index_cast %c4_i32 : i32 to index
    %c0_163 = arith.constant 0 : index
    %c0_164 = arith.constant 0 : index
    %265 = vector.load %arg11[%264, %c0_163, %c0_164] : memref<8x2x32xf32, #tpu.memory_space<vmem>>, vector<1x2x32xf32>
    %266 = vector.shape_cast %265 : vector<1x2x32xf32> to vector<2x32xf32>
    %267 = vector.shape_cast %261 : vector<2x32xf32> to vector<1x2x32xf32>
    tpu.vector_store %arg11[%264, %c0_163, %c0_164], %267 {strides = array<i32>} : memref<8x2x32xf32, #tpu.memory_space<vmem>>, vector<1x2x32xf32>,
    %c5_i32 = arith.constant 5 : i32
    %c0_165 = arith.constant 0 : index
    %c0_166 = arith.constant 0 : index
    %268 = vector.load %arg14[%c0_165, %c0_166] : memref<2x32xf32, #tpu.memory_space<vmem>>, vector<2x32xf32>
    %c0_167 = arith.constant 0 : index
    %c0_168 = arith.constant 0 : index
    %269 = vector.load %arg15[%c0_167, %c0_168] : memref<2x32xf32, #tpu.memory_space<vmem>>, vector<2x32xf32>
    %270 = arith.index_cast %c5_i32 : i32 to index
    %c0_169 = arith.constant 0 : index
    %c0_170 = arith.constant 0 : index
    %271 = vector.load %arg1[%270, %c0_169, %c0_170] : memref<8x2x32xf32, #tpu.memory_space<vmem>>, vector<1x2x32xf32>
    %272 = vector.shape_cast %271 : vector<1x2x32xf32> to vector<2x32xf32>
    %c0_171 = arith.constant 0 : index
    %c0_172 = arith.constant 0 : index
    %273 = vector.load %arg5[%c0_171, %c0_172] : memref<32x32xf32, #tpu.memory_space<vmem>>, vector<32x32xf32>
    %cst_173 = arith.constant dense<0.000000e+00> : vector<2x32xf32>
    %274 = tpu.matmul %268, %273, %cst_173 {dimension_numbers = #tpu.dot_dimension_numbers<[1], [0], [0], [1], [0, 0, 1, 1], [], []>} : vector<2x32xf32>, vector<32x32xf32>, vector<2x32xf32> -> vector<2x32xf32>
    %275 = arith.addf %272, %274 : vector<2x32xf32>
    %276 = arith.index_cast %c5_i32 : i32 to index
    %c0_174 = arith.constant 0 : index
    %c0_175 = arith.constant 0 : index
    %277 = vector.load %arg2[%276, %c0_174, %c0_175] : memref<8x2x32xf32, #tpu.memory_space<vmem>>, vector<1x2x32xf32>
    %278 = vector.shape_cast %277 : vector<1x2x32xf32> to vector<2x32xf32>
    %c0_176 = arith.constant 0 : index
    %c0_177 = arith.constant 0 : index
    %279 = vector.load %arg6[%c0_176, %c0_177] : memref<32x32xf32, #tpu.memory_space<vmem>>, vector<32x32xf32>
    %cst_178 = arith.constant dense<0.000000e+00> : vector<2x32xf32>
    %280 = tpu.matmul %268, %279, %cst_178 {dimension_numbers = #tpu.dot_dimension_numbers<[1], [0], [0], [1], [0, 0, 1, 1], [], []>} : vector<2x32xf32>, vector<32x32xf32>, vector<2x32xf32> -> vector<2x32xf32>
    %281 = arith.addf %278, %280 : vector<2x32xf32>
    %282 = arith.index_cast %c5_i32 : i32 to index
    %c0_179 = arith.constant 0 : index
    %c0_180 = arith.constant 0 : index
    %283 = vector.load %arg3[%282, %c0_179, %c0_180] : memref<8x2x32xf32, #tpu.memory_space<vmem>>, vector<1x2x32xf32>
    %284 = vector.shape_cast %283 : vector<1x2x32xf32> to vector<2x32xf32>
    %c0_181 = arith.constant 0 : index
    %c0_182 = arith.constant 0 : index
    %285 = vector.load %arg7[%c0_181, %c0_182] : memref<32x32xf32, #tpu.memory_space<vmem>>, vector<32x32xf32>
    %cst_183 = arith.constant dense<0.000000e+00> : vector<2x32xf32>
    %286 = tpu.matmul %268, %285, %cst_183 {dimension_numbers = #tpu.dot_dimension_numbers<[1], [0], [0], [1], [0, 0, 1, 1], [], []>} : vector<2x32xf32>, vector<32x32xf32>, vector<2x32xf32> -> vector<2x32xf32>
    %287 = arith.addf %284, %286 : vector<2x32xf32>
    %288 = arith.index_cast %c5_i32 : i32 to index
    %c0_184 = arith.constant 0 : index
    %c0_185 = arith.constant 0 : index
    %289 = vector.load %arg4[%288, %c0_184, %c0_185] : memref<8x2x32xf32, #tpu.memory_space<vmem>>, vector<1x2x32xf32>
    %290 = vector.shape_cast %289 : vector<1x2x32xf32> to vector<2x32xf32>
    %c0_186 = arith.constant 0 : index
    %c0_187 = arith.constant 0 : index
    %291 = vector.load %arg8[%c0_186, %c0_187] : memref<32x32xf32, #tpu.memory_space<vmem>>, vector<32x32xf32>
    %cst_188 = arith.constant dense<0.000000e+00> : vector<2x32xf32>
    %292 = tpu.matmul %268, %291, %cst_188 {dimension_numbers = #tpu.dot_dimension_numbers<[1], [0], [0], [1], [0, 0, 1, 1], [], []>} : vector<2x32xf32>, vector<32x32xf32>, vector<2x32xf32> -> vector<2x32xf32>
    %293 = arith.addf %290, %292 : vector<2x32xf32>
    %294 = arith.negf %275 : vector<2x32xf32>
    %295 = math.exp %294 : vector<2x32xf32>
    %cst_189 = arith.constant 1.000000e+00 : f32
    %296 = vector.broadcast %cst_189 : f32 to vector<2x32xf32>
    %297 = arith.addf %296, %295 : vector<2x32xf32>
    %298 = arith.divf %296, %297 : vector<2x32xf32>
    %299 = arith.negf %281 : vector<2x32xf32>
    %300 = math.exp %299 : vector<2x32xf32>
    %cst_190 = arith.constant 1.000000e+00 : f32
    %301 = vector.broadcast %cst_190 : f32 to vector<2x32xf32>
    %302 = arith.addf %301, %300 : vector<2x32xf32>
    %303 = arith.divf %301, %302 : vector<2x32xf32>
    %304 = math.tanh %287 : vector<2x32xf32>
    %305 = arith.negf %293 : vector<2x32xf32>
    %306 = math.exp %305 : vector<2x32xf32>
    %cst_191 = arith.constant 1.000000e+00 : f32
    %307 = vector.broadcast %cst_191 : f32 to vector<2x32xf32>
    %308 = arith.addf %307, %306 : vector<2x32xf32>
    %309 = arith.divf %307, %308 : vector<2x32xf32>
    %310 = arith.mulf %303, %269 : vector<2x32xf32>
    %311 = arith.mulf %298, %304 : vector<2x32xf32>
    %312 = arith.addf %310, %311 : vector<2x32xf32>
    %313 = math.tanh %312 : vector<2x32xf32>
    %314 = arith.mulf %309, %313 : vector<2x32xf32>
    %c0_192 = arith.constant 0 : index
    %c0_193 = arith.constant 0 : index
    %315 = vector.load %arg14[%c0_192, %c0_193] : memref<2x32xf32, #tpu.memory_space<vmem>>, vector<2x32xf32>
    tpu.vector_store %arg14[%c0_192, %c0_193], %314 {strides = array<i32>} : memref<2x32xf32, #tpu.memory_space<vmem>>, vector<2x32xf32>,
    %c0_194 = arith.constant 0 : index
    %c0_195 = arith.constant 0 : index
    %316 = vector.load %arg15[%c0_194, %c0_195] : memref<2x32xf32, #tpu.memory_space<vmem>>, vector<2x32xf32>
    tpu.vector_store %arg15[%c0_194, %c0_195], %312 {strides = array<i32>} : memref<2x32xf32, #tpu.memory_space<vmem>>, vector<2x32xf32>,
    %317 = arith.index_cast %c5_i32 : i32 to index
    %c0_196 = arith.constant 0 : index
    %c0_197 = arith.constant 0 : index
    %318 = vector.load %arg11[%317, %c0_196, %c0_197] : memref<8x2x32xf32, #tpu.memory_space<vmem>>, vector<1x2x32xf32>
    %319 = vector.shape_cast %318 : vector<1x2x32xf32> to vector<2x32xf32>
    %320 = vector.shape_cast %314 : vector<2x32xf32> to vector<1x2x32xf32>
    tpu.vector_store %arg11[%317, %c0_196, %c0_197], %320 {strides = array<i32>} : memref<8x2x32xf32, #tpu.memory_space<vmem>>, vector<1x2x32xf32>,
    %c6_i32 = arith.constant 6 : i32
    %c0_198 = arith.constant 0 : index
    %c0_199 = arith.constant 0 : index
    %321 = vector.load %arg14[%c0_198, %c0_199] : memref<2x32xf32, #tpu.memory_space<vmem>>, vector<2x32xf32>
    %c0_200 = arith.constant 0 : index
    %c0_201 = arith.constant 0 : index
    %322 = vector.load %arg15[%c0_200, %c0_201] : memref<2x32xf32, #tpu.memory_space<vmem>>, vector<2x32xf32>
    %323 = arith.index_cast %c6_i32 : i32 to index
    %c0_202 = arith.constant 0 : index
    %c0_203 = arith.constant 0 : index
    %324 = vector.load %arg1[%323, %c0_202, %c0_203] : memref<8x2x32xf32, #tpu.memory_space<vmem>>, vector<1x2x32xf32>
    %325 = vector.shape_cast %324 : vector<1x2x32xf32> to vector<2x32xf32>
    %c0_204 = arith.constant 0 : index
    %c0_205 = arith.constant 0 : index
    %326 = vector.load %arg5[%c0_204, %c0_205] : memref<32x32xf32, #tpu.memory_space<vmem>>, vector<32x32xf32>
    %cst_206 = arith.constant dense<0.000000e+00> : vector<2x32xf32>
    %327 = tpu.matmul %321, %326, %cst_206 {dimension_numbers = #tpu.dot_dimension_numbers<[1], [0], [0], [1], [0, 0, 1, 1], [], []>} : vector<2x32xf32>, vector<32x32xf32>, vector<2x32xf32> -> vector<2x32xf32>
    %328 = arith.addf %325, %327 : vector<2x32xf32>
    %329 = arith.index_cast %c6_i32 : i32 to index
    %c0_207 = arith.constant 0 : index
    %c0_208 = arith.constant 0 : index
    %330 = vector.load %arg2[%329, %c0_207, %c0_208] : memref<8x2x32xf32, #tpu.memory_space<vmem>>, vector<1x2x32xf32>
    %331 = vector.shape_cast %330 : vector<1x2x32xf32> to vector<2x32xf32>
    %c0_209 = arith.constant 0 : index
    %c0_210 = arith.constant 0 : index
    %332 = vector.load %arg6[%c0_209, %c0_210] : memref<32x32xf32, #tpu.memory_space<vmem>>, vector<32x32xf32>
    %cst_211 = arith.constant dense<0.000000e+00> : vector<2x32xf32>
    %333 = tpu.matmul %321, %332, %cst_211 {dimension_numbers = #tpu.dot_dimension_numbers<[1], [0], [0], [1], [0, 0, 1, 1], [], []>} : vector<2x32xf32>, vector<32x32xf32>, vector<2x32xf32> -> vector<2x32xf32>
    %334 = arith.addf %331, %333 : vector<2x32xf32>
    %335 = arith.index_cast %c6_i32 : i32 to index
    %c0_212 = arith.constant 0 : index
    %c0_213 = arith.constant 0 : index
    %336 = vector.load %arg3[%335, %c0_212, %c0_213] : memref<8x2x32xf32, #tpu.memory_space<vmem>>, vector<1x2x32xf32>
    %337 = vector.shape_cast %336 : vector<1x2x32xf32> to vector<2x32xf32>
    %c0_214 = arith.constant 0 : index
    %c0_215 = arith.constant 0 : index
    %338 = vector.load %arg7[%c0_214, %c0_215] : memref<32x32xf32, #tpu.memory_space<vmem>>, vector<32x32xf32>
    %cst_216 = arith.constant dense<0.000000e+00> : vector<2x32xf32>
    %339 = tpu.matmul %321, %338, %cst_216 {dimension_numbers = #tpu.dot_dimension_numbers<[1], [0], [0], [1], [0, 0, 1, 1], [], []>} : vector<2x32xf32>, vector<32x32xf32>, vector<2x32xf32> -> vector<2x32xf32>
    %340 = arith.addf %337, %339 : vector<2x32xf32>
    %341 = arith.index_cast %c6_i32 : i32 to index
    %c0_217 = arith.constant 0 : index
    %c0_218 = arith.constant 0 : index
    %342 = vector.load %arg4[%341, %c0_217, %c0_218] : memref<8x2x32xf32, #tpu.memory_space<vmem>>, vector<1x2x32xf32>
    %343 = vector.shape_cast %342 : vector<1x2x32xf32> to vector<2x32xf32>
    %c0_219 = arith.constant 0 : index
    %c0_220 = arith.constant 0 : index
    %344 = vector.load %arg8[%c0_219, %c0_220] : memref<32x32xf32, #tpu.memory_space<vmem>>, vector<32x32xf32>
    %cst_221 = arith.constant dense<0.000000e+00> : vector<2x32xf32>
    %345 = tpu.matmul %321, %344, %cst_221 {dimension_numbers = #tpu.dot_dimension_numbers<[1], [0], [0], [1], [0, 0, 1, 1], [], []>} : vector<2x32xf32>, vector<32x32xf32>, vector<2x32xf32> -> vector<2x32xf32>
    %346 = arith.addf %343, %345 : vector<2x32xf32>
    %347 = arith.negf %328 : vector<2x32xf32>
    %348 = math.exp %347 : vector<2x32xf32>
    %cst_222 = arith.constant 1.000000e+00 : f32
    %349 = vector.broadcast %cst_222 : f32 to vector<2x32xf32>
    %350 = arith.addf %349, %348 : vector<2x32xf32>
    %351 = arith.divf %349, %350 : vector<2x32xf32>
    %352 = arith.negf %334 : vector<2x32xf32>
    %353 = math.exp %352 : vector<2x32xf32>
    %cst_223 = arith.constant 1.000000e+00 : f32
    %354 = vector.broadcast %cst_223 : f32 to vector<2x32xf32>
    %355 = arith.addf %354, %353 : vector<2x32xf32>
    %356 = arith.divf %354, %355 : vector<2x32xf32>
    %357 = math.tanh %340 : vector<2x32xf32>
    %358 = arith.negf %346 : vector<2x32xf32>
    %359 = math.exp %358 : vector<2x32xf32>
    %cst_224 = arith.constant 1.000000e+00 : f32
    %360 = vector.broadcast %cst_224 : f32 to vector<2x32xf32>
    %361 = arith.addf %360, %359 : vector<2x32xf32>
    %362 = arith.divf %360, %361 : vector<2x32xf32>
    %363 = arith.mulf %356, %322 : vector<2x32xf32>
    %364 = arith.mulf %351, %357 : vector<2x32xf32>
    %365 = arith.addf %363, %364 : vector<2x32xf32>
    %366 = math.tanh %365 : vector<2x32xf32>
    %367 = arith.mulf %362, %366 : vector<2x32xf32>
    %c0_225 = arith.constant 0 : index
    %c0_226 = arith.constant 0 : index
    %368 = vector.load %arg14[%c0_225, %c0_226] : memref<2x32xf32, #tpu.memory_space<vmem>>, vector<2x32xf32>
    tpu.vector_store %arg14[%c0_225, %c0_226], %367 {strides = array<i32>} : memref<2x32xf32, #tpu.memory_space<vmem>>, vector<2x32xf32>,
    %c0_227 = arith.constant 0 : index
    %c0_228 = arith.constant 0 : index
    %369 = vector.load %arg15[%c0_227, %c0_228] : memref<2x32xf32, #tpu.memory_space<vmem>>, vector<2x32xf32>
    tpu.vector_store %arg15[%c0_227, %c0_228], %365 {strides = array<i32>} : memref<2x32xf32, #tpu.memory_space<vmem>>, vector<2x32xf32>,
    %370 = arith.index_cast %c6_i32 : i32 to index
    %c0_229 = arith.constant 0 : index
    %c0_230 = arith.constant 0 : index
    %371 = vector.load %arg11[%370, %c0_229, %c0_230] : memref<8x2x32xf32, #tpu.memory_space<vmem>>, vector<1x2x32xf32>
    %372 = vector.shape_cast %371 : vector<1x2x32xf32> to vector<2x32xf32>
    %373 = vector.shape_cast %367 : vector<2x32xf32> to vector<1x2x32xf32>
    tpu.vector_store %arg11[%370, %c0_229, %c0_230], %373 {strides = array<i32>} : memref<8x2x32xf32, #tpu.memory_space<vmem>>, vector<1x2x32xf32>,
    %c7_i32 = arith.constant 7 : i32
    %c0_231 = arith.constant 0 : index
    %c0_232 = arith.constant 0 : index
    %374 = vector.load %arg14[%c0_231, %c0_232] : memref<2x32xf32, #tpu.memory_space<vmem>>, vector<2x32xf32>
    %c0_233 = arith.constant 0 : index
    %c0_234 = arith.constant 0 : index
    %375 = vector.load %arg15[%c0_233, %c0_234] : memref<2x32xf32, #tpu.memory_space<vmem>>, vector<2x32xf32>
    %376 = arith.index_cast %c7_i32 : i32 to index
    %c0_235 = arith.constant 0 : index
    %c0_236 = arith.constant 0 : index
    %377 = vector.load %arg1[%376, %c0_235, %c0_236] : memref<8x2x32xf32, #tpu.memory_space<vmem>>, vector<1x2x32xf32>
    %378 = vector.shape_cast %377 : vector<1x2x32xf32> to vector<2x32xf32>
    %c0_237 = arith.constant 0 : index
    %c0_238 = arith.constant 0 : index
    %379 = vector.load %arg5[%c0_237, %c0_238] : memref<32x32xf32, #tpu.memory_space<vmem>>, vector<32x32xf32>
    %cst_239 = arith.constant dense<0.000000e+00> : vector<2x32xf32>
    %380 = tpu.matmul %374, %379, %cst_239 {dimension_numbers = #tpu.dot_dimension_numbers<[1], [0], [0], [1], [0, 0, 1, 1], [], []>} : vector<2x32xf32>, vector<32x32xf32>, vector<2x32xf32> -> vector<2x32xf32>
    %381 = arith.addf %378, %380 : vector<2x32xf32>
    %382 = arith.index_cast %c7_i32 : i32 to index
    %c0_240 = arith.constant 0 : index
    %c0_241 = arith.constant 0 : index
    %383 = vector.load %arg2[%382, %c0_240, %c0_241] : memref<8x2x32xf32, #tpu.memory_space<vmem>>, vector<1x2x32xf32>
    %384 = vector.shape_cast %383 : vector<1x2x32xf32> to vector<2x32xf32>
    %c0_242 = arith.constant 0 : index
    %c0_243 = arith.constant 0 : index
    %385 = vector.load %arg6[%c0_242, %c0_243] : memref<32x32xf32, #tpu.memory_space<vmem>>, vector<32x32xf32>
    %cst_244 = arith.constant dense<0.000000e+00> : vector<2x32xf32>
    %386 = tpu.matmul %374, %385, %cst_244 {dimension_numbers = #tpu.dot_dimension_numbers<[1], [0], [0], [1], [0, 0, 1, 1], [], []>} : vector<2x32xf32>, vector<32x32xf32>, vector<2x32xf32> -> vector<2x32xf32>
    %387 = arith.addf %384, %386 : vector<2x32xf32>
    %388 = arith.index_cast %c7_i32 : i32 to index
    %c0_245 = arith.constant 0 : index
    %c0_246 = arith.constant 0 : index
    %389 = vector.load %arg3[%388, %c0_245, %c0_246] : memref<8x2x32xf32, #tpu.memory_space<vmem>>, vector<1x2x32xf32>
    %390 = vector.shape_cast %389 : vector<1x2x32xf32> to vector<2x32xf32>
    %c0_247 = arith.constant 0 : index
    %c0_248 = arith.constant 0 : index
    %391 = vector.load %arg7[%c0_247, %c0_248] : memref<32x32xf32, #tpu.memory_space<vmem>>, vector<32x32xf32>
    %cst_249 = arith.constant dense<0.000000e+00> : vector<2x32xf32>
    %392 = tpu.matmul %374, %391, %cst_249 {dimension_numbers = #tpu.dot_dimension_numbers<[1], [0], [0], [1], [0, 0, 1, 1], [], []>} : vector<2x32xf32>, vector<32x32xf32>, vector<2x32xf32> -> vector<2x32xf32>
    %393 = arith.addf %390, %392 : vector<2x32xf32>
    %394 = arith.index_cast %c7_i32 : i32 to index
    %c0_250 = arith.constant 0 : index
    %c0_251 = arith.constant 0 : index
    %395 = vector.load %arg4[%394, %c0_250, %c0_251] : memref<8x2x32xf32, #tpu.memory_space<vmem>>, vector<1x2x32xf32>
    %396 = vector.shape_cast %395 : vector<1x2x32xf32> to vector<2x32xf32>
    %c0_252 = arith.constant 0 : index
    %c0_253 = arith.constant 0 : index
    %397 = vector.load %arg8[%c0_252, %c0_253] : memref<32x32xf32, #tpu.memory_space<vmem>>, vector<32x32xf32>
    %cst_254 = arith.constant dense<0.000000e+00> : vector<2x32xf32>
    %398 = tpu.matmul %374, %397, %cst_254 {dimension_numbers = #tpu.dot_dimension_numbers<[1], [0], [0], [1], [0, 0, 1, 1], [], []>} : vector<2x32xf32>, vector<32x32xf32>, vector<2x32xf32> -> vector<2x32xf32>
    %399 = arith.addf %396, %398 : vector<2x32xf32>
    %400 = arith.negf %381 : vector<2x32xf32>
    %401 = math.exp %400 : vector<2x32xf32>
    %cst_255 = arith.constant 1.000000e+00 : f32
    %402 = vector.broadcast %cst_255 : f32 to vector<2x32xf32>
    %403 = arith.addf %402, %401 : vector<2x32xf32>
    %404 = arith.divf %402, %403 : vector<2x32xf32>
    %405 = arith.negf %387 : vector<2x32xf32>
    %406 = math.exp %405 : vector<2x32xf32>
    %cst_256 = arith.constant 1.000000e+00 : f32
    %407 = vector.broadcast %cst_256 : f32 to vector<2x32xf32>
    %408 = arith.addf %407, %406 : vector<2x32xf32>
    %409 = arith.divf %407, %408 : vector<2x32xf32>
    %410 = math.tanh %393 : vector<2x32xf32>
    %411 = arith.negf %399 : vector<2x32xf32>
    %412 = math.exp %411 : vector<2x32xf32>
    %cst_257 = arith.constant 1.000000e+00 : f32
    %413 = vector.broadcast %cst_257 : f32 to vector<2x32xf32>
    %414 = arith.addf %413, %412 : vector<2x32xf32>
    %415 = arith.divf %413, %414 : vector<2x32xf32>
    %416 = arith.mulf %409, %375 : vector<2x32xf32>
    %417 = arith.mulf %404, %410 : vector<2x32xf32>
    %418 = arith.addf %416, %417 : vector<2x32xf32>
    %419 = math.tanh %418 : vector<2x32xf32>
    %420 = arith.mulf %415, %419 : vector<2x32xf32>
    %c0_258 = arith.constant 0 : index
    %c0_259 = arith.constant 0 : index
    %421 = vector.load %arg14[%c0_258, %c0_259] : memref<2x32xf32, #tpu.memory_space<vmem>>, vector<2x32xf32>
    tpu.vector_store %arg14[%c0_258, %c0_259], %420 {strides = array<i32>} : memref<2x32xf32, #tpu.memory_space<vmem>>, vector<2x32xf32>,
    %c0_260 = arith.constant 0 : index
    %c0_261 = arith.constant 0 : index
    %422 = vector.load %arg15[%c0_260, %c0_261] : memref<2x32xf32, #tpu.memory_space<vmem>>, vector<2x32xf32>
    tpu.vector_store %arg15[%c0_260, %c0_261], %418 {strides = array<i32>} : memref<2x32xf32, #tpu.memory_space<vmem>>, vector<2x32xf32>,
    %423 = arith.index_cast %c7_i32 : i32 to index
    %c0_262 = arith.constant 0 : index
    %c0_263 = arith.constant 0 : index
    %424 = vector.load %arg11[%423, %c0_262, %c0_263] : memref<8x2x32xf32, #tpu.memory_space<vmem>>, vector<1x2x32xf32>
    %425 = vector.shape_cast %424 : vector<1x2x32xf32> to vector<2x32xf32>
    %426 = vector.shape_cast %420 : vector<2x32xf32> to vector<1x2x32xf32>
    tpu.vector_store %arg11[%423, %c0_262, %c0_263], %426 {strides = array<i32>} : memref<8x2x32xf32, #tpu.memory_space<vmem>>, vector<1x2x32xf32>,
    %c8_i32 = arith.constant 8 : i32
    %c0_i32_264 = arith.constant 0 : i32
    %427 = arith.cmpi eq, %arg0, %c0_i32_264 : i32
    %428 = arith.extui %427 : i1 to i32
    %c0_i32_265 = arith.constant 0 : i32
    %429 = arith.cmpi ne, %428, %c0_i32_265 : i32
    scf.if %429 {
      %c0_266 = arith.constant 0 : index
      %c0_267 = arith.constant 0 : index
      %430 = vector.load %arg14[%c0_266, %c0_267] : memref<2x32xf32, #tpu.memory_space<vmem>>, vector<2x32xf32>
      %c0_268 = arith.constant 0 : index
      %c0_269 = arith.constant 0 : index
      %431 = vector.load %arg12[%c0_268, %c0_269] : memref<2x32xf32, #tpu.memory_space<vmem>>, vector<2x32xf32>
      tpu.vector_store %arg12[%c0_268, %c0_269], %430 {strides = array<i32>} : memref<2x32xf32, #tpu.memory_space<vmem>>, vector<2x32xf32>,
      %c0_270 = arith.constant 0 : index
      %c0_271 = arith.constant 0 : index
      %432 = vector.load %arg15[%c0_270, %c0_271] : memref<2x32xf32, #tpu.memory_space<vmem>>, vector<2x32xf32>
      %c0_272 = arith.constant 0 : index
      %c0_273 = arith.constant 0 : index
      %433 = vector.load %arg13[%c0_272, %c0_273] : memref<2x32xf32, #tpu.memory_space<vmem>>, vector<2x32xf32>
      tpu.vector_store %arg13[%c0_272, %c0_273], %432 {strides = array<i32>} : memref<2x32xf32, #tpu.memory_space<vmem>>, vector<2x32xf32>,
    } else {
    }
    return
  }
  func.func @transform_0(%arg0: i32) -> (i32, i32, i32) {
    %c0_i32 = arith.constant 0 : i32
    %c0_i32_0 = arith.constant 0 : i32
    %c0_i32_1 = arith.constant 0 : i32
    return %arg0, %c0_i32, %c0_i32_0 : i32, i32, i32
  }
  func.func @transform_1(%arg0: i32) -> (i32, i32, i32) {
    %c0_i32 = arith.constant 0 : i32
    %c0_i32_0 = arith.constant 0 : i32
    %c0_i32_1 = arith.constant 0 : i32
    return %arg0, %c0_i32, %c0_i32_0 : i32, i32, i32
  }
  func.func @transform_2(%arg0: i32) -> (i32, i32, i32) {
    %c0_i32 = arith.constant 0 : i32
    %c0_i32_0 = arith.constant 0 : i32
    %c0_i32_1 = arith.constant 0 : i32
    return %arg0, %c0_i32, %c0_i32_0 : i32, i32, i32
  }
  func.func @transform_3(%arg0: i32) -> (i32, i32, i32) {
    %c0_i32 = arith.constant 0 : i32
    %c0_i32_0 = arith.constant 0 : i32
    %c0_i32_1 = arith.constant 0 : i32
    return %arg0, %c0_i32, %c0_i32_0 : i32, i32, i32
  }
  func.func @transform_4(%arg0: i32) -> (i32, i32) {
    %c0_i32 = arith.constant 0 : i32
    %c0_i32_0 = arith.constant 0 : i32
    %c0_i32_1 = arith.constant 0 : i32
    return %c0_i32, %c0_i32_0 : i32, i32
  }
  func.func @transform_5(%arg0: i32) -> (i32, i32) {
    %c0_i32 = arith.constant 0 : i32
    %c0_i32_0 = arith.constant 0 : i32
    %c0_i32_1 = arith.constant 0 : i32
    return %c0_i32, %c0_i32_0 : i32, i32
  }
  func.func @transform_6(%arg0: i32) -> (i32, i32) {
    %c0_i32 = arith.constant 0 : i32
    %c0_i32_0 = arith.constant 0 : i32
    %c0_i32_1 = arith.constant 0 : i32
    return %c0_i32, %c0_i32_0 : i32, i32
  }
  func.func @transform_7(%arg0: i32) -> (i32, i32) {
    %c0_i32 = arith.constant 0 : i32
    %c0_i32_0 = arith.constant 0 : i32
    %c0_i32_1 = arith.constant 0 : i32
    return %c0_i32, %c0_i32_0 : i32, i32
  }
  func.func @transform_8(%arg0: i32) -> (i32, i32) {
    %c0_i32 = arith.constant 0 : i32
    %c0_i32_0 = arith.constant 0 : i32
    %c0_i32_1 = arith.constant 0 : i32
    return %c0_i32, %c0_i32_0 : i32, i32
  }
  func.func @transform_9(%arg0: i32) -> (i32, i32) {
    %c0_i32 = arith.constant 0 : i32
    %c0_i32_0 = arith.constant 0 : i32
    %c0_i32_1 = arith.constant 0 : i32
    return %c0_i32, %c0_i32_0 : i32, i32
  }
  func.func @transform_10(%arg0: i32) -> (i32, i32, i32) {
    %c0_i32 = arith.constant 0 : i32
    %c0_i32_0 = arith.constant 0 : i32
    %c0_i32_1 = arith.constant 0 : i32
    return %arg0, %c0_i32, %c0_i32_0 : i32, i32, i32
  }
  func.func @transform_11(%arg0: i32) -> (i32, i32) {
    %c0_i32 = arith.constant 0 : i32
    %c0_i32_0 = arith.constant 0 : i32
    %c0_i32_1 = arith.constant 0 : i32
    return %c0_i32, %c0_i32_0 : i32, i32
  }
  func.func @transform_12(%arg0: i32) -> (i32, i32) {
    %c0_i32 = arith.constant 0 : i32
    %c0_i32_0 = arith.constant 0 : i32
    %c0_i32_1 = arith.constant 0 : i32
    return %c0_i32, %c0_i32_0 : i32, i32
  }
}

</mosaic_0001>

<llo_original>
// kernel: tpu_custom_call.1
$region0: #{tpu_custom_call.1}
  #allocation0 [shape = 'u32[]', space=smem, size = 0x4, offset = 0x4, fixed_abs, tag = 'smem constant byte address 0x4 - core index']
  #allocation1 [shape = 'u32[144,128]{1,0:T(1,128)}', space=vmem, size = 0x12000, scoped, tag = 'internal scratch']
  #allocation2 [shape = 'f32[2,32]{1,0:T(2,128)}', space=vmem, size = 0x400, scoped, tag = 'scratch operand']
  #allocation3 [shape = 'f32[2,32]{1,0:T(2,128)}', space=vmem, size = 0x400, scoped, tag = 'scratch operand']
  %s0 = inlined_call_operand.hbm [shape: f32[8,2,32], index: 0, kind: input, shape index: {}]
  %s1 = inlined_call_operand.hbm [shape: f32[8,2,32], index: 1, kind: input, shape index: {}]
  %s2 = inlined_call_operand.hbm [shape: f32[8,2,32], index: 2, kind: input, shape index: {}]
  %s3 = inlined_call_operand.hbm [shape: f32[8,2,32], index: 3, kind: input, shape index: {}]
  %s4 = inlined_call_operand.hbm [shape: f32[32,32], index: 4, kind: input, shape index: {}]
  %s5 = inlined_call_operand.hbm [shape: f32[32,32], index: 5, kind: input, shape index: {}]
  %s6 = inlined_call_operand.hbm [shape: f32[32,32], index: 6, kind: input, shape index: {}]
  %s7 = inlined_call_operand.hbm [shape: f32[32,32], index: 7, kind: input, shape index: {}]
  %s8 = inlined_call_operand.vmem [shape: f32[2,32], index: 8, kind: input, shape index: {}]
  %s9 = inlined_call_operand.vmem [shape: f32[2,32], index: 9, kind: input, shape index: {}]
  %s10 = inlined_call_operand.hbm [shape: f32[8,2,32], index: 10, kind: output, shape index: {0}]
  %s11 = inlined_call_operand.hbm [shape: f32[2,32], index: 11, kind: output, shape index: {1}]
  %s12 = inlined_call_operand.hbm [shape: f32[2,32], index: 12, kind: output, shape index: {2}]
  %13 = xla_tuple %s10, %s11, %s12
  %s14 = sld [smem:[#allocation0]]
  $region106: #{tpu_custom_call.1} parent=0
    _
  %s16 = ssub.s32 1, %s14
  %s17 = scalar_select 0, %s16, %s14
  $region1: #{tpu_custom_call.1} parent=0
    #allocation4 [shape = 'u8[8192]{0}', space=vmem, size = 0x2000, scoped, tag = 'input window, operand 0, single buffered']
    #allocation5 [shape = 's32[1]{0}', space=sflag, size = 0x4, scoped, tag = 'scoped memory for tpu_custom_call.1']
    #allocation6 [shape = 's32[1]{0}', space=sflag, size = 0x4, scoped, tag = 'scoped memory for tpu_custom_call.1']
    #allocation7 [shape = 'u8[8192]{0}', space=vmem, size = 0x2000, scoped, tag = 'input window, operand 1, single buffered']
    #allocation8 [shape = 's32[1]{0}', space=sflag, size = 0x4, scoped, tag = 'scoped memory for tpu_custom_call.1']
    #allocation9 [shape = 'u8[8192]{0}', space=vmem, size = 0x2000, scoped, tag = 'input window, operand 2, single buffered']
    #allocation10 [shape = 'u8[8192]{0}', space=vmem, size = 0x2000, scoped, tag = 'input window, operand 3, single buffered']
    #allocation11 [shape = 's32[1]{0}', space=sflag, size = 0x4, scoped, tag = 'scoped memory for tpu_custom_call.1']
    #allocation12 [shape = 'u8[16384]{0}', space=vmem, size = 0x4000, scoped, tag = 'input window, operand 4, single buffered']
    #allocation13 [shape = 'u8[16384]{0}', space=vmem, size = 0x4000, scoped, tag = 'input window, operand 5, single buffered']
    #allocation14 [shape = 's32[1]{0}', space=sflag, size = 0x4, scoped, tag = 'scoped memory for tpu_custom_call.1']
    #allocation15 [shape = 'u8[16384]{0}', space=vmem, size = 0x4000, scoped, tag = 'input window, operand 6, single buffered']
    #allocation16 [shape = 'u8[16384]{0}', space=vmem, size = 0x4000, scoped, tag = 'input window, operand 7, single buffered']
    #allocation17 [shape = 's32[1]{0}', space=sflag, size = 0x4, scoped, tag = 'scoped memory for tpu_custom_call.1']
    #allocation18 [shape = 'u8[8192]{0}', space=vmem, size = 0x2000, scoped, tag = 'output window, operand 0, single buffered']
    #allocation19 [shape = 'u8[1024]{0}', space=vmem, size = 0x400, scoped, tag = 'output window, operand 1, single buffered']
    #allocation20 [shape = 's32[1]{0}', space=sflag, size = 0x4, scoped, tag = 'scoped memory for tpu_custom_call.1']
    #allocation21 [shape = 'u8[1024]{0}', space=vmem, size = 0x400, scoped, tag = 'output window, operand 2, single buffered']
    %18 = vsyncpa [#allocation5], 0
    %19 = vsyncpa [#allocation8], 0
    %20 = vsyncpa [#allocation11], 0
    %21 = vsyncpa [#allocation14], 0
    %22 = vsyncpa [#allocation17], 0
    %23 = vsyncpa [#allocation6], 0
    %24 = vsyncpa [#allocation20], 0
    // Predicated region
    $region2: #{tpu_custom_call.1} parent=1 // pred_check
      _
    $region3: #{tpu_custom_call.1} parent=1 // pred_check_branch
      %26 = sbr.rel (0) target = $region5
    $region4: #{tpu_custom_call.1} parent=1 // pred_region
      %s28 = ssub.s32 256, 256
      %29 = vsyncadd [#allocation5], %s28
      %s30 = sshll.u32 [#allocation4], 4
      %s31 = int_to_ptr.vmem [resolvable:$true] %s30
      %36 = dma.hbm_to_vmem [thread:$0]  %s0, 256, %s31, [#allocation5], 32, 32, 2
    $region5: #{tpu_custom_call.1} parent=1 // pred_fallthru
      _
    // Predicated region
    $region6: #{tpu_custom_call.1} parent=1 // pred_check
      _
    $region7: #{tpu_custom_call.1} parent=1 // pred_check_branch
      %38 = sbr.rel (0) target = $region9
    $region8: #{tpu_custom_call.1} parent=1 // pred_region
      %s40 = ssub.s32 256, 256
      %41 = vsyncadd [#allocation8], %s40
      %s42 = sshll.u32 [#allocation7], 4
      %s43 = int_to_ptr.vmem [resolvable:$true] %s42
      %48 = dma.hbm_to_vmem [thread:$0]  %s1, 256, %s43, [#allocation8], 32, 32, 2
    $region9: #{tpu_custom_call.1} parent=1 // pred_fallthru
      _
    // Predicated region
    $region10: #{tpu_custom_call.1} parent=1 // pred_check
      _
    $region11: #{tpu_custom_call.1} parent=1 // pred_check_branch
      %50 = sbr.rel (0) target = $region13
    $region12: #{tpu_custom_call.1} parent=1 // pred_region
      %s52 = ssub.s32 256, 256
      %53 = vsyncadd [#allocation8], %s52
      %s54 = sshll.u32 [#allocation9], 4
      %s55 = int_to_ptr.vmem [resolvable:$true] %s54
      %60 = dma.hbm_to_vmem [thread:$0]  %s2, 256, %s55, [#allocation8], 32, 32, 2
    $region13: #{tpu_custom_call.1} parent=1 // pred_fallthru
      _
    // Predicated region
    $region14: #{tpu_custom_call.1} parent=1 // pred_check
      _
    $region15: #{tpu_custom_call.1} parent=1 // pred_check_branch
      %62 = sbr.rel (0) target = $region17
    $region16: #{tpu_custom_call.1} parent=1 // pred_region
      %s64 = ssub.s32 256, 256
      %65 = vsyncadd [#allocation11], %s64
      %s66 = sshll.u32 [#allocation10], 4
      %s67 = int_to_ptr.vmem [resolvable:$true] %s66
      %72 = dma.hbm_to_vmem [thread:$0]  %s3, 256, %s67, [#allocation11], 32, 32, 2
    $region17: #{tpu_custom_call.1} parent=1 // pred_fallthru
      _
    // Predicated region
    $region18: #{tpu_custom_call.1} parent=1 // pred_check
      _
    $region19: #{tpu_custom_call.1} parent=1 // pred_check_branch
      %74 = sbr.rel (0) target = $region21
    $region20: #{tpu_custom_call.1} parent=1 // pred_region
      %s76 = ssub.s32 512, 512
      %77 = vsyncadd [#allocation11], %s76
      %s78 = sshll.u32 [#allocation12], 4
      %s79 = int_to_ptr.vmem [resolvable:$true] %s78
      %84 = dma.hbm_to_vmem [thread:$0]  %s4, 512, %s79, [#allocation11], 128, 128, 8
    $region21: #{tpu_custom_call.1} parent=1 // pred_fallthru
      _
    // Predicated region
    $region22: #{tpu_custom_call.1} parent=1 // pred_check
      _
    $region23: #{tpu_custom_call.1} parent=1 // pred_check_branch
      %86 = sbr.rel (0) target = $region25
    $region24: #{tpu_custom_call.1} parent=1 // pred_region
      %s88 = ssub.s32 512, 512
      %89 = vsyncadd [#allocation14], %s88
      %s90 = sshll.u32 [#allocation13], 4
      %s91 = int_to_ptr.vmem [resolvable:$true] %s90
      %96 = dma.hbm_to_vmem [thread:$0]  %s5, 512, %s91, [#allocation14], 128, 128, 8
    $region25: #{tpu_custom_call.1} parent=1 // pred_fallthru
      _
    // Predicated region
    $region26: #{tpu_custom_call.1} parent=1 // pred_check
      _
    $region27: #{tpu_custom_call.1} parent=1 // pred_check_branch
      %98 = sbr.rel (0) target = $region29
    $region28: #{tpu_custom_call.1} parent=1 // pred_region
      %s100 = ssub.s32 512, 512
      %101 = vsyncadd [#allocation14], %s100
      %s102 = sshll.u32 [#allocation15], 4
      %s103 = int_to_ptr.vmem [resolvable:$true] %s102
      %108 = dma.hbm_to_vmem [thread:$0]  %s6, 512, %s103, [#allocation14], 128, 128, 8
    $region29: #{tpu_custom_call.1} parent=1 // pred_fallthru
      _
    // Predicated region
    $region30: #{tpu_custom_call.1} parent=1 // pred_check
      _
    $region31: #{tpu_custom_call.1} parent=1 // pred_check_branch
      %110 = sbr.rel (0) target = $region33
    $region32: #{tpu_custom_call.1} parent=1 // pred_region
      %s112 = ssub.s32 512, 512
      %113 = vsyncadd [#allocation17], %s112
      %s114 = sshll.u32 [#allocation16], 4
      %s115 = int_to_ptr.vmem [resolvable:$true] %s114
      %120 = dma.hbm_to_vmem [thread:$0]  %s7, 512, %s115, [#allocation17], 128, 128, 8
    $region33: #{tpu_custom_call.1} parent=1 // pred_fallthru
      _
    // Predicated region
    $region34: #{tpu_custom_call.1} parent=1 // pred_check
      _
    $region35: #{tpu_custom_call.1} parent=1 // pred_check_branch
      %122 = sbr.rel (0) target = $region37
    $region36: #{tpu_custom_call.1} parent=1 // pred_region
      _
    $region37: #{tpu_custom_call.1} parent=1 // pred_fallthru
      _
    // Predicated region
    $region38: #{tpu_custom_call.1} parent=1 // pred_check
      _
    $region39: #{tpu_custom_call.1} parent=1 // pred_check_branch
      %124 = sbr.rel (0) target = $region41
    $region40: #{tpu_custom_call.1} parent=1 // pred_region
      _
    $region41: #{tpu_custom_call.1} parent=1 // pred_fallthru
      _
    // Predicated region
    $region42: #{tpu_custom_call.1} parent=1 // pred_check
      _
    $region43: #{tpu_custom_call.1} parent=1 // pred_check_branch
      %126 = sbr.rel (0) target = $region45
    $region44: #{tpu_custom_call.1} parent=1 // pred_region
      %127 = dma.done [#allocation5], 256
    $region45: #{tpu_custom_call.1} parent=1 // pred_fallthru
      _
    // Predicated region
    $region46: #{tpu_custom_call.1} parent=1 // pred_check
      _
    $region47: #{tpu_custom_call.1} parent=1 // pred_check_branch
      %129 = sbr.rel (0) target = $region49
    $region48: #{tpu_custom_call.1} parent=1 // pred_region
      %130 = dma.done [#allocation8], 256
    $region49: #{tpu_custom_call.1} parent=1 // pred_fallthru
      _
    // Predicated region
    $region50: #{tpu_custom_call.1} parent=1 // pred_check
      _
    $region51: #{tpu_custom_call.1} parent=1 // pred_check_branch
      %132 = sbr.rel (0) target = $region53
    $region52: #{tpu_custom_call.1} parent=1 // pred_region
      %133 = dma.done [#allocation8], 256
    $region53: #{tpu_custom_call.1} parent=1 // pred_fallthru
      _
    // Predicated region
    $region54: #{tpu_custom_call.1} parent=1 // pred_check
      _
    $region55: #{tpu_custom_call.1} parent=1 // pred_check_branch
      %135 = sbr.rel (0) target = $region57
    $region56: #{tpu_custom_call.1} parent=1 // pred_region
      %136 = dma.done [#allocation11], 256
    $region57: #{tpu_custom_call.1} parent=1 // pred_fallthru
      _
    // Predicated region
    $region58: #{tpu_custom_call.1} parent=1 // pred_check
      _
    $region59: #{tpu_custom_call.1} parent=1 // pred_check_branch
      %138 = sbr.rel (0) target = $region61
    $region60: #{tpu_custom_call.1} parent=1 // pred_region
      %139 = dma.done [#allocation11], 512
    $region61: #{tpu_custom_call.1} parent=1 // pred_fallthru
      _
    // Predicated region
    $region62: #{tpu_custom_call.1} parent=1 // pred_check
      _
    $region63: #{tpu_custom_call.1} parent=1 // pred_check_branch
      %141 = sbr.rel (0) target = $region65
    $region64: #{tpu_custom_call.1} parent=1 // pred_region
      %142 = dma.done [#allocation14], 512
    $region65: #{tpu_custom_call.1} parent=1 // pred_fallthru
      _
    // Predicated region
    $region66: #{tpu_custom_call.1} parent=1 // pred_check
      _
    $region67: #{tpu_custom_call.1} parent=1 // pred_check_branch
      %144 = sbr.rel (0) target = $region69
    $region68: #{tpu_custom_call.1} parent=1 // pred_region
      %145 = dma.done [#allocation14], 512
    $region69: #{tpu_custom_call.1} parent=1 // pred_fallthru
      _
    // Predicated region
    $region70: #{tpu_custom_call.1} parent=1 // pred_check
      _
    $region71: #{tpu_custom_call.1} parent=1 // pred_check_branch
      %147 = sbr.rel (0) target = $region73
    $region72: #{tpu_custom_call.1} parent=1 // pred_region
      %148 = dma.done [#allocation17], 512
    $region73: #{tpu_custom_call.1} parent=1 // pred_fallthru
      _
    %p149 = scmp.eq.s32.totalorder 0, 0
    // Predicated region
    $region74: #{tpu_custom_call.1} parent=1 // pred_check
      %p150 = pneg %p149
    $region75: #{tpu_custom_call.1} parent=1 // pred_check_branch
      %152 = sbr.rel (%p150) target = $region77
    $region76: #{tpu_custom_call.1} parent=1 // pred_region
      %v153 = vld [vmem:[%s8] sm:$0x3]
      %vm154 = vcmask 254976
      %155 = vst.msk [vmem:[#allocation2] sm:$0x3] %vm154, %v153
      %v156 = vld [vmem:[%s9] sm:$0x3]
      %157 = vst.msk [vmem:[#allocation3] sm:$0x3] %vm154, %v156
    $region77: #{tpu_custom_call.1} parent=1 // pred_fallthru
      _
    %v158 = vld [vmem:[#allocation2] sm:$0x3]
    %v159 = vld [vmem:[#allocation3] sm:$0x3]
    %v160 = vld [vmem:[#allocation4] sm:$0x3]
    %v161 = vld [vmem:[#allocation12] sm:$0xff]
    %v162 = vld [vmem:[#allocation12 + $0x8] sm:$0xff]
    %v163 = vld [vmem:[#allocation12 + $0x10] sm:$0xff]
    %v164 = vld [vmem:[#allocation12 + $0x18] sm:$0xff]
    %vm165 = vcmask 261120
    %v167 = vsel %vm165, %v158, 0
    %169 = vmatprep.subr.mxu0 0.0
    %170 = vmatpush1.msra.mxu0 0.0
    %171 = vmatprep.subr.mxu0 0.0
    %172 = vmatpush1.msra.mxu0 0.0
    %173 = vmatprep.subr.mxu0 0.0
    %174 = vmatpush1.msra.mxu0 0.0
    %175 = vmatprep.subr.mxu0 0.0
    %176 = vmatpush1.msra.mxu0 0.0
    %177 = vmatprep.subr.mxu0 0.0
    %178 = vmatpush1.msra.mxu0 0.0
    %179 = vmatprep.subr.mxu0 0.0
    %180 = vmatpush1.msra.mxu0 0.0
    %181 = vmatprep.subr.mxu0 0.0
    %182 = vmatpush1.msra.mxu0 0.0
    %183 = vmatprep.subr.mxu0 0.0
    %184 = vmatpush1.msra.mxu0 0.0
    %185 = vmatprep.subr.mxu0 0.0
    %186 = vmatpush1.msra.mxu0 0.0
    %187 = vmatprep.subr.mxu0 0.0
    %188 = vmatpush1.msra.mxu0 0.0
    %189 = vmatprep.subr.mxu0 0.0
    %190 = vmatpush1.msra.mxu0 0.0
    %191 = vmatprep.subr.mxu0 0.0
    %192 = vmatpush1.msra.mxu0 0.0
    %193 = vmatprep.subr.mxu0 0.0
    %194 = vmatpush1.msra.mxu0 %v164
    %195 = vmatprep.subr.mxu0 0.0
    %196 = vmatpush1.msra.mxu0 %v163
    %197 = vmatprep.subr.mxu0 0.0
    %198 = vmatpush1.msra.mxu0 %v162
    %199 = vmatprep.subr.mxu0 0.0
    %200 = vmatpush1.msra.mxu0 %v161
    %201 = vmatprep.subr.mxu0 0.0
    %202 = vmatpush2.msra.mxu0 0.0
    %203 = vmatprep.subr.mxu0 0.0
    %204 = vmatpush2.msra.mxu0 0.0
    %205 = vmatprep.subr.mxu0 0.0
    %206 = vmatpush2.msra.mxu0 0.0
    %207 = vmatprep.subr.mxu0 0.0
    %208 = vmatpush2.msra.mxu0 0.0
    %209 = vmatprep.subr.mxu0 0.0
    %210 = vmatpush2.msra.mxu0 0.0
    %211 = vmatprep.subr.mxu0 0.0
    %212 = vmatpush2.msra.mxu0 0.0
    %213 = vmatprep.subr.mxu0 0.0
    %214 = vmatpush2.msra.mxu0 0.0
    %215 = vmatprep.subr.mxu0 0.0
    %216 = vmatpush2.msra.mxu0 0.0
    %217 = vmatprep.subr.mxu0 0.0
    %218 = vmatpush2.msra.mxu0 0.0
    %219 = vmatprep.subr.mxu0 0.0
    %220 = vmatpush2.msra.mxu0 0.0
    %221 = vmatprep.subr.mxu0 0.0
    %222 = vmatpush2.msra.mxu0 0.0
    %223 = vmatprep.subr.mxu0 0.0
    %224 = vmatpush2.msra.mxu0 0.0
    %225 = vmatprep.subr.mxu0 0.0
    %226 = vmatpush2.msra.mxu0 0.0
    %227 = vmatprep.subr.mxu0 0.0
    %228 = vmatpush2.msra.mxu0 0.0
    %229 = vmatprep.subr.mxu0 0.0
    %230 = vmatpush2.msra.mxu0 0.0
    %231 = vmatprep.subr.mxu0 0.0
    %232 = vmatpush2.msra.mxu0 0.0
    %233 = vmatprep.mubr.f32.mxu0 0.0
    %234 = vmatmul.mubr.f32.gmra.mxu0 %v167
    %v235 = vpop.f32.mrf.mxu0
    %v236 = vadd.f32 0.0, %v235
    %v237 = vpop.f32.mrf.mxu0
    %238 = vdwg.mxu0
    %v239 = vadd.f32 %v160, %v236
    %v240 = vld [vmem:[#allocation7] sm:$0x3]
    %v241 = vld [vmem:[#allocation13] sm:$0xff]
    %v242 = vld [vmem:[#allocation13 + $0x8] sm:$0xff]
    %v243 = vld [vmem:[#allocation13 + $0x10] sm:$0xff]
    %v244 = vld [vmem:[#allocation13 + $0x18] sm:$0xff]
    %245 = vmatprep.subr.mxu0 0.0
    %246 = vmatpush1.msra.mxu0 0.0
    %247 = vmatprep.subr.mxu0 0.0
    %248 = vmatpush1.msra.mxu0 0.0
    %249 = vmatprep.subr.mxu0 0.0
    %250 = vmatpush1.msra.mxu0 0.0
    %251 = vmatprep.subr.mxu0 0.0
    %252 = vmatpush1.msra.mxu0 0.0
    %253 = vmatprep.subr.mxu0 0.0
    %254 = vmatpush1.msra.mxu0 0.0
    %255 = vmatprep.subr.mxu0 0.0
    %256 = vmatpush1.msra.mxu0 0.0
    %257 = vmatprep.subr.mxu0 0.0
    %258 = vmatpush1.msra.mxu0 0.0
    %259 = vmatprep.subr.mxu0 0.0
    %260 = vmatpush1.msra.mxu0 0.0
    %261 = vmatprep.subr.mxu0 0.0
    %262 = vmatpush1.msra.mxu0 0.0
    %263 = vmatprep.subr.mxu0 0.0
    %264 = vmatpush1.msra.mxu0 0.0
    %265 = vmatprep.subr.mxu0 0.0
    %266 = vmatpush1.msra.mxu0 0.0
    %267 = vmatprep.subr.mxu0 0.0
    %268 = vmatpush1.msra.mxu0 0.0
    %269 = vmatprep.subr.mxu0 0.0
    %270 = vmatpush1.msra.mxu0 %v244
    %271 = vmatprep.subr.mxu0 0.0
    %272 = vmatpush1.msra.mxu0 %v243
    %273 = vmatprep.subr.mxu0 0.0
    %274 = vmatpush1.msra.mxu0 %v242
    %275 = vmatprep.subr.mxu0 0.0
    %276 = vmatpush1.msra.mxu0 %v241
    %277 = vmatprep.subr.mxu0 0.0
    %278 = vmatpush2.msra.mxu0 0.0
    %279 = vmatprep.subr.mxu0 0.0
    %280 = vmatpush2.msra.mxu0 0.0
    %281 = vmatprep.subr.mxu0 0.0
    %282 = vmatpush2.msra.mxu0 0.0
    %283 = vmatprep.subr.mxu0 0.0
    %284 = vmatpush2.msra.mxu0 0.0
    %285 = vmatprep.subr.mxu0 0.0
    %286 = vmatpush2.msra.mxu0 0.0
    %287 = vmatprep.subr.mxu0 0.0
    %288 = vmatpush2.msra.mxu0 0.0
    %289 = vmatprep.subr.mxu0 0.0
    %290 = vmatpush2.msra.mxu0 0.0
    %291 = vmatprep.subr.mxu0 0.0
    %292 = vmatpush2.msra.mxu0 0.0
    %293 = vmatprep.subr.mxu0 0.0
    %294 = vmatpush2.msra.mxu0 0.0
    %295 = vmatprep.subr.mxu0 0.0
    %296 = vmatpush2.msra.mxu0 0.0
    %297 = vmatprep.subr.mxu0 0.0
    %298 = vmatpush2.msra.mxu0 0.0
    %299 = vmatprep.subr.mxu0 0.0
    %300 = vmatpush2.msra.mxu0 0.0
    %301 = vmatprep.subr.mxu0 0.0
    %302 = vmatpush2.msra.mxu0 0.0
    %303 = vmatprep.subr.mxu0 0.0
    %304 = vmatpush2.msra.mxu0 0.0
    %305 = vmatprep.subr.mxu0 0.0
    %306 = vmatpush2.msra.mxu0 0.0
    %307 = vmatprep.subr.mxu0 0.0
    %308 = vmatpush2.msra.mxu0 0.0
    %309 = vmatprep.mubr.f32.mxu0 0.0
    %310 = vmatmul.mubr.f32.gmra.mxu0 %v167
    %v311 = vpop.f32.mrf.mxu0
    %v312 = vadd.f32 0.0, %v311
    %v313 = vpop.f32.mrf.mxu0
    %314 = vdwg.mxu0
    %v315 = vadd.f32 %v240, %v312
    %v316 = vld [vmem:[#allocation9] sm:$0x3]
    %v317 = vld [vmem:[#allocation15] sm:$0xff]
    %v318 = vld [vmem:[#allocation15 + $0x8] sm:$0xff]
    %v319 = vld [vmem:[#allocation15 + $0x10] sm:$0xff]
    %v320 = vld [vmem:[#allocation15 + $0x18] sm:$0xff]
    %321 = vmatprep.subr.mxu0 0.0
    %322 = vmatpush1.msra.mxu0 0.0
    %323 = vmatprep.subr.mxu0 0.0
    %324 = vmatpush1.msra.mxu0 0.0
    %325 = vmatprep.subr.mxu0 0.0
    %326 = vmatpush1.msra.mxu0 0.0
    %327 = vmatprep.subr.mxu0 0.0
    %328 = vmatpush1.msra.mxu0 0.0
    %329 = vmatprep.subr.mxu0 0.0
    %330 = vmatpush1.msra.mxu0 0.0
    %331 = vmatprep.subr.mxu0 0.0
    %332 = vmatpush1.msra.mxu0 0.0
    %333 = vmatprep.subr.mxu0 0.0
    %334 = vmatpush1.msra.mxu0 0.0
    %335 = vmatprep.subr.mxu0 0.0
    %336 = vmatpush1.msra.mxu0 0.0
    %337 = vmatprep.subr.mxu0 0.0
    %338 = vmatpush1.msra.mxu0 0.0
    %339 = vmatprep.subr.mxu0 0.0
    %340 = vmatpush1.msra.mxu0 0.0
    %341 = vmatprep.subr.mxu0 0.0
    %342 = vmatpush1.msra.mxu0 0.0
    %343 = vmatprep.subr.mxu0 0.0
    %344 = vmatpush1.msra.mxu0 0.0
    %345 = vmatprep.subr.mxu0 0.0
    %346 = vmatpush1.msra.mxu0 %v320
    %347 = vmatprep.subr.mxu0 0.0
    %348 = vmatpush1.msra.mxu0 %v319
    %349 = vmatprep.subr.mxu0 0.0
    %350 = vmatpush1.msra.mxu0 %v318
    %351 = vmatprep.subr.mxu0 0.0
    %352 = vmatpush1.msra.mxu0 %v317
    %353 = vmatprep.subr.mxu0 0.0
    %354 = vmatpush2.msra.mxu0 0.0
    %355 = vmatprep.subr.mxu0 0.0
    %356 = vmatpush2.msra.mxu0 0.0
    %357 = vmatprep.subr.mxu0 0.0
    %358 = vmatpush2.msra.mxu0 0.0
    %359 = vmatprep.subr.mxu0 0.0
    %360 = vmatpush2.msra.mxu0 0.0
    %361 = vmatprep.subr.mxu0 0.0
    %362 = vmatpush2.msra.mxu0 0.0
    %363 = vmatprep.subr.mxu0 0.0
    %364 = vmatpush2.msra.mxu0 0.0
    %365 = vmatprep.subr.mxu0 0.0
    %366 = vmatpush2.msra.mxu0 0.0
    %367 = vmatprep.subr.mxu0 0.0
    %368 = vmatpush2.msra.mxu0 0.0
    %369 = vmatprep.subr.mxu0 0.0
    %370 = vmatpush2.msra.mxu0 0.0
    %371 = vmatprep.subr.mxu0 0.0
    %372 = vmatpush2.msra.mxu0 0.0
    %373 = vmatprep.subr.mxu0 0.0
    %374 = vmatpush2.msra.mxu0 0.0
    %375 = vmatprep.subr.mxu0 0.0
    %376 = vmatpush2.msra.mxu0 0.0
    %377 = vmatprep.subr.mxu0 0.0
    %378 = vmatpush2.msra.mxu0 0.0
    %379 = vmatprep.subr.mxu0 0.0
    %380 = vmatpush2.msra.mxu0 0.0
    %381 = vmatprep.subr.mxu0 0.0
    %382 = vmatpush2.msra.mxu0 0.0
    %383 = vmatprep.subr.mxu0 0.0
    %384 = vmatpush2.msra.mxu0 0.0
    %385 = vmatprep.mubr.f32.mxu0 0.0
    %386 = vmatmul.mubr.f32.gmra.mxu0 %v167
    %v387 = vpop.f32.mrf.mxu0
    %v388 = vadd.f32 0.0, %v387
    %v389 = vpop.f32.mrf.mxu0
    %390 = vdwg.mxu0
    %v391 = vadd.f32 %v316, %v388
    %v392 = vld [vmem:[#allocation10] sm:$0x3]
    %v393 = vld [vmem:[#allocation16] sm:$0xff]
    %v394 = vld [vmem:[#allocation16 + $0x8] sm:$0xff]
    %v395 = vld [vmem:[#allocation16 + $0x10] sm:$0xff]
    %v396 = vld [vmem:[#allocation16 + $0x18] sm:$0xff]
    %397 = vmatprep.subr.mxu0 0.0
    %398 = vmatpush1.msra.mxu0 0.0
    %399 = vmatprep.subr.mxu0 0.0
    %400 = vmatpush1.msra.mxu0 0.0
    %401 = vmatprep.subr.mxu0 0.0
    %402 = vmatpush1.msra.mxu0 0.0
    %403 = vmatprep.subr.mxu0 0.0
    %404 = vmatpush1.msra.mxu0 0.0
    %405 = vmatprep.subr.mxu0 0.0
    %406 = vmatpush1.msra.mxu0 0.0
    %407 = vmatprep.subr.mxu0 0.0
    %408 = vmatpush1.msra.mxu0 0.0
    %409 = vmatprep.subr.mxu0 0.0
    %410 = vmatpush1.msra.mxu0 0.0
    %411 = vmatprep.subr.mxu0 0.0
    %412 = vmatpush1.msra.mxu0 0.0
    %413 = vmatprep.subr.mxu0 0.0
    %414 = vmatpush1.msra.mxu0 0.0
    %415 = vmatprep.subr.mxu0 0.0
    %416 = vmatpush1.msra.mxu0 0.0
    %417 = vmatprep.subr.mxu0 0.0
    %418 = vmatpush1.msra.mxu0 0.0
    %419 = vmatprep.subr.mxu0 0.0
    %420 = vmatpush1.msra.mxu0 0.0
    %421 = vmatprep.subr.mxu0 0.0
    %422 = vmatpush1.msra.mxu0 %v396
    %423 = vmatprep.subr.mxu0 0.0
    %424 = vmatpush1.msra.mxu0 %v395
    %425 = vmatprep.subr.mxu0 0.0
    %426 = vmatpush1.msra.mxu0 %v394
    %427 = vmatprep.subr.mxu0 0.0
    %428 = vmatpush1.msra.mxu0 %v393
    %429 = vmatprep.subr.mxu0 0.0
    %430 = vmatpush2.msra.mxu0 0.0
    %431 = vmatprep.subr.mxu0 0.0
    %432 = vmatpush2.msra.mxu0 0.0
    %433 = vmatprep.subr.mxu0 0.0
    %434 = vmatpush2.msra.mxu0 0.0
    %435 = vmatprep.subr.mxu0 0.0
    %436 = vmatpush2.msra.mxu0 0.0
    %437 = vmatprep.subr.mxu0 0.0
    %438 = vmatpush2.msra.mxu0 0.0
    %439 = vmatprep.subr.mxu0 0.0
    %440 = vmatpush2.msra.mxu0 0.0
    %441 = vmatprep.subr.mxu0 0.0
    %442 = vmatpush2.msra.mxu0 0.0
    %443 = vmatprep.subr.mxu0 0.0
    %444 = vmatpush2.msra.mxu0 0.0
    %445 = vmatprep.subr.mxu0 0.0
    %446 = vmatpush2.msra.mxu0 0.0
    %447 = vmatprep.subr.mxu0 0.0
    %448 = vmatpush2.msra.mxu0 0.0
    %449 = vmatprep.subr.mxu0 0.0
    %450 = vmatpush2.msra.mxu0 0.0
    %451 = vmatprep.subr.mxu0 0.0
    %452 = vmatpush2.msra.mxu0 0.0
    %453 = vmatprep.subr.mxu0 0.0
    %454 = vmatpush2.msra.mxu0 0.0
    %455 = vmatprep.subr.mxu0 0.0
    %456 = vmatpush2.msra.mxu0 0.0
    %457 = vmatprep.subr.mxu0 0.0
    %458 = vmatpush2.msra.mxu0 0.0
    %459 = vmatprep.subr.mxu0 0.0
    %460 = vmatpush2.msra.mxu0 0.0
    %461 = vmatprep.mubr.f32.mxu0 0.0
    %462 = vmatmul.mubr.f32.gmra.mxu0 %v167
    %v463 = vpop.f32.mrf.mxu0
    %v464 = vadd.f32 0.0, %v463
    %v465 = vpop.f32.mrf.mxu0
    %466 = vdwg.mxu0
    %v467 = vadd.f32 %v392, %v464
    %v468 = vxor.u32 %v239, 2147483648
    %v469 = vmul.f32 %v468, 1.442695
    %v470 = vpow.pop %v469
    %v471 = vadd.f32 %v470, 1.0
    %v472 = vrcp.pop %v471
    %v473 = vmul.f32 1.0, %v472
    %v474 = vxor.u32 %v315, 2147483648
    %v475 = vmul.f32 %v474, 1.442695
    %v476 = vpow.pop %v475
    %v477 = vadd.f32 %v476, 1.0
    %v478 = vrcp.pop %v477
    %v479 = vmul.f32 1.0, %v478
    %v480 = vtanh.pop %v391
    %v481 = vxor.u32 %v467, 2147483648
    %v482 = vmul.f32 %v481, 1.442695
    %v483 = vpow.pop %v482
    %v484 = vadd.f32 %v483, 1.0
    %v485 = vrcp.pop %v484
    %v486 = vmul.f32 1.0, %v485
    %v487 = vmul.f32 %v479, %v159
    %v488 = vmul.f32 %v473, %v480
    %v489 = vadd.f32 %v487, %v488
    %v490 = vtanh.pop %v489
    %v491 = vmul.f32 %v486, %v490
    %vm492 = vcmask 254976
    %493 = vst.msk [vmem:[#allocation2] sm:$0x3] %vm492, %v491
    %494 = vst.msk [vmem:[#allocation3] sm:$0x3] %vm492, %v489
    %495 = vst.msk [vmem:[#allocation18] sm:$0x3] %vm492, %v491
    %v496 = vld [vmem:[#allocation2] sm:$0x3]
    %v497 = vld [vmem:[#allocation3] sm:$0x3]
    %s498 = scalar_lea.vmem [#allocation4], 2
    %v499 = vld [vmem:[%s498] sm:$0x3]
    %v500 = vld [vmem:[#allocation12] sm:$0xff]
    %v501 = vld [vmem:[#allocation12 + $0x8] sm:$0xff]
    %v502 = vld [vmem:[#allocation12 + $0x10] sm:$0xff]
    %v503 = vld [vmem:[#allocation12 + $0x18] sm:$0xff]
    %v505 = vsel %vm165, %v496, 0
    %507 = vmatprep.subr.mxu0 0.0
    %508 = vmatpush1.msra.mxu0 0.0
    %509 = vmatprep.subr.mxu0 0.0
    %510 = vmatpush1.msra.mxu0 0.0
    %511 = vmatprep.subr.mxu0 0.0
    %512 = vmatpush1.msra.mxu0 0.0
    %513 = vmatprep.subr.mxu0 0.0
    %514 = vmatpush1.msra.mxu0 0.0
    %515 = vmatprep.subr.mxu0 0.0
    %516 = vmatpush1.msra.mxu0 0.0
    %517 = vmatprep.subr.mxu0 0.0
    %518 = vmatpush1.msra.mxu0 0.0
    %519 = vmatprep.subr.mxu0 0.0
    %520 = vmatpush1.msra.mxu0 0.0
    %521 = vmatprep.subr.mxu0 0.0
    %522 = vmatpush1.msra.mxu0 0.0
    %523 = vmatprep.subr.mxu0 0.0
    %524 = vmatpush1.msra.mxu0 0.0
    %525 = vmatprep.subr.mxu0 0.0
    %526 = vmatpush1.msra.mxu0 0.0
    %527 = vmatprep.subr.mxu0 0.0
    %528 = vmatpush1.msra.mxu0 0.0
    %529 = vmatprep.subr.mxu0 0.0
    %530 = vmatpush1.msra.mxu0 0.0
    %531 = vmatprep.subr.mxu0 0.0
    %532 = vmatpush1.msra.mxu0 %v503
    %533 = vmatprep.subr.mxu0 0.0
    %534 = vmatpush1.msra.mxu0 %v502
    %535 = vmatprep.subr.mxu0 0.0
    %536 = vmatpush1.msra.mxu0 %v501
    %537 = vmatprep.subr.mxu0 0.0
    %538 = vmatpush1.msra.mxu0 %v500
    %539 = vmatprep.subr.mxu0 0.0
    %540 = vmatpush2.msra.mxu0 0.0
    %541 = vmatprep.subr.mxu0 0.0
    %542 = vmatpush2.msra.mxu0 0.0
    %543 = vmatprep.subr.mxu0 0.0
    %544 = vmatpush2.msra.mxu0 0.0
    %545 = vmatprep.subr.mxu0 0.0
    %546 = vmatpush2.msra.mxu0 0.0
    %547 = vmatprep.subr.mxu0 0.0
    %548 = vmatpush2.msra.mxu0 0.0
    %549 = vmatprep.subr.mxu0 0.0
    %550 = vmatpush2.msra.mxu0 0.0
    %551 = vmatprep.subr.mxu0 0.0
    %552 = vmatpush2.msra.mxu0 0.0
    %553 = vmatprep.subr.mxu0 0.0
    %554 = vmatpush2.msra.mxu0 0.0
    %555 = vmatprep.subr.mxu0 0.0
    %556 = vmatpush2.msra.mxu0 0.0
    %557 = vmatprep.subr.mxu0 0.0
    %558 = vmatpush2.msra.mxu0 0.0
    %559 = vmatprep.subr.mxu0 0.0
    %560 = vmatpush2.msra.mxu0 0.0
    %561 = vmatprep.subr.mxu0 0.0
    %562 = vmatpush2.msra.mxu0 0.0
    %563 = vmatprep.subr.mxu0 0.0
    %564 = vmatpush2.msra.mxu0 0.0
    %565 = vmatprep.subr.mxu0 0.0
    %566 = vmatpush2.msra.mxu0 0.0
    %567 = vmatprep.subr.mxu0 0.0
    %568 = vmatpush2.msra.mxu0 0.0
    %569 = vmatprep.subr.mxu0 0.0
    %570 = vmatpush2.msra.mxu0 0.0
    %571 = vmatprep.mubr.f32.mxu0 0.0
    %572 = vmatmul.mubr.f32.gmra.mxu0 %v505
    %v573 = vpop.f32.mrf.mxu0
    %v574 = vadd.f32 0.0, %v573
    %v575 = vpop.f32.mrf.mxu0
    %576 = vdwg.mxu0
    %v577 = vadd.f32 %v499, %v574
    %s578 = scalar_lea.vmem [#allocation7], 2
    %v579 = vld [vmem:[%s578] sm:$0x3]
    %v580 = vld [vmem:[#allocation13] sm:$0xff]
    %v581 = vld [vmem:[#allocation13 + $0x8] sm:$0xff]
    %v582 = vld [vmem:[#allocation13 + $0x10] sm:$0xff]
    %v583 = vld [vmem:[#allocation13 + $0x18] sm:$0xff]
    %584 = vmatprep.subr.mxu0 0.0
    %585 = vmatpush1.msra.mxu0 0.0
    %586 = vmatprep.subr.mxu0 0.0
    %587 = vmatpush1.msra.mxu0 0.0
    %588 = vmatprep.subr.mxu0 0.0
    %589 = vmatpush1.msra.mxu0 0.0
    %590 = vmatprep.subr.mxu0 0.0
    %591 = vmatpush1.msra.mxu0 0.0
    %592 = vmatprep.subr.mxu0 0.0
    %593 = vmatpush1.msra.mxu0 0.0
    %594 = vmatprep.subr.mxu0 0.0
    %595 = vmatpush1.msra.mxu0 0.0
    %596 = vmatprep.subr.mxu0 0.0
    %597 = vmatpush1.msra.mxu0 0.0
    %598 = vmatprep.subr.mxu0 0.0
    %599 = vmatpush1.msra.mxu0 0.0
    %600 = vmatprep.subr.mxu0 0.0
    %601 = vmatpush1.msra.mxu0 0.0
    %602 = vmatprep.subr.mxu0 0.0
    %603 = vmatpush1.msra.mxu0 0.0
    %604 = vmatprep.subr.mxu0 0.0
    %605 = vmatpush1.msra.mxu0 0.0
    %606 = vmatprep.subr.mxu0 0.0
    %607 = vmatpush1.msra.mxu0 0.0
    %608 = vmatprep.subr.mxu0 0.0
    %609 = vmatpush1.msra.mxu0 %v583
    %610 = vmatprep.subr.mxu0 0.0
    %611 = vmatpush1.msra.mxu0 %v582
    %612 = vmatprep.subr.mxu0 0.0
    %613 = vmatpush1.msra.mxu0 %v581
    %614 = vmatprep.subr.mxu0 0.0
    %615 = vmatpush1.msra.mxu0 %v580
    %616 = vmatprep.subr.mxu0 0.0
    %617 = vmatpush2.msra.mxu0 0.0
    %618 = vmatprep.subr.mxu0 0.0
    %619 = vmatpush2.msra.mxu0 0.0
    %620 = vmatprep.subr.mxu0 0.0
    %621 = vmatpush2.msra.mxu0 0.0
    %622 = vmatprep.subr.mxu0 0.0
    %623 = vmatpush2.msra.mxu0 0.0
    %624 = vmatprep.subr.mxu0 0.0
    %625 = vmatpush2.msra.mxu0 0.0
    %626 = vmatprep.subr.mxu0 0.0
    %627 = vmatpush2.msra.mxu0 0.0
    %628 = vmatprep.subr.mxu0 0.0
    %629 = vmatpush2.msra.mxu0 0.0
    %630 = vmatprep.subr.mxu0 0.0
    %631 = vmatpush2.msra.mxu0 0.0
    %632 = vmatprep.subr.mxu0 0.0
    %633 = vmatpush2.msra.mxu0 0.0
    %634 = vmatprep.subr.mxu0 0.0
    %635 = vmatpush2.msra.mxu0 0.0
    %636 = vmatprep.subr.mxu0 0.0
    %637 = vmatpush2.msra.mxu0 0.0
    %638 = vmatprep.subr.mxu0 0.0
    %639 = vmatpush2.msra.mxu0 0.0
    %640 = vmatprep.subr.mxu0 0.0
    %641 = vmatpush2.msra.mxu0 0.0
    %642 = vmatprep.subr.mxu0 0.0
    %643 = vmatpush2.msra.mxu0 0.0
    %644 = vmatprep.subr.mxu0 0.0
    %645 = vmatpush2.msra.mxu0 0.0
    %646 = vmatprep.subr.mxu0 0.0
    %647 = vmatpush2.msra.mxu0 0.0
    %648 = vmatprep.mubr.f32.mxu0 0.0
    %649 = vmatmul.mubr.f32.gmra.mxu0 %v505
    %v650 = vpop.f32.mrf.mxu0
    %v651 = vadd.f32 0.0, %v650
    %v652 = vpop.f32.mrf.mxu0
    %653 = vdwg.mxu0
    %v654 = vadd.f32 %v579, %v651
    %s655 = scalar_lea.vmem [#allocation9], 2
    %v656 = vld [vmem:[%s655] sm:$0x3]
    %v657 = vld [vmem:[#allocation15] sm:$0xff]
    %v658 = vld [vmem:[#allocation15 + $0x8] sm:$0xff]
    %v659 = vld [vmem:[#allocation15 + $0x10] sm:$0xff]
    %v660 = vld [vmem:[#allocation15 + $0x18] sm:$0xff]
    %661 = vmatprep.subr.mxu0 0.0
    %662 = vmatpush1.msra.mxu0 0.0
    %663 = vmatprep.subr.mxu0 0.0
    %664 = vmatpush1.msra.mxu0 0.0
    %665 = vmatprep.subr.mxu0 0.0
    %666 = vmatpush1.msra.mxu0 0.0
    %667 = vmatprep.subr.mxu0 0.0
    %668 = vmatpush1.msra.mxu0 0.0
    %669 = vmatprep.subr.mxu0 0.0
    %670 = vmatpush1.msra.mxu0 0.0
    %671 = vmatprep.subr.mxu0 0.0
    %672 = vmatpush1.msra.mxu0 0.0
    %673 = vmatprep.subr.mxu0 0.0
    %674 = vmatpush1.msra.mxu0 0.0
    %675 = vmatprep.subr.mxu0 0.0
    %676 = vmatpush1.msra.mxu0 0.0
    %677 = vmatprep.subr.mxu0 0.0
    %678 = vmatpush1.msra.mxu0 0.0
    %679 = vmatprep.subr.mxu0 0.0
    %680 = vmatpush1.msra.mxu0 0.0
    %681 = vmatprep.subr.mxu0 0.0
    %682 = vmatpush1.msra.mxu0 0.0
    %683 = vmatprep.subr.mxu0 0.0
    %684 = vmatpush1.msra.mxu0 0.0
    %685 = vmatprep.subr.mxu0 0.0
    %686 = vmatpush1.msra.mxu0 %v660
    %687 = vmatprep.subr.mxu0 0.0
    %688 = vmatpush1.msra.mxu0 %v659
    %689 = vmatprep.subr.mxu0 0.0
    %690 = vmatpush1.msra.mxu0 %v658
    %691 = vmatprep.subr.mxu0 0.0
    %692 = vmatpush1.msra.mxu0 %v657
    %693 = vmatprep.subr.mxu0 0.0
    %694 = vmatpush2.msra.mxu0 0.0
    %695 = vmatprep.subr.mxu0 0.0
    %696 = vmatpush2.msra.mxu0 0.0
    %697 = vmatprep.subr.mxu0 0.0
    %698 = vmatpush2.msra.mxu0 0.0
    %699 = vmatprep.subr.mxu0 0.0
    %700 = vmatpush2.msra.mxu0 0.0
    %701 = vmatprep.subr.mxu0 0.0
    %702 = vmatpush2.msra.mxu0 0.0
    %703 = vmatprep.subr.mxu0 0.0
    %704 = vmatpush2.msra.mxu0 0.0
    %705 = vmatprep.subr.mxu0 0.0
    %706 = vmatpush2.msra.mxu0 0.0
    %707 = vmatprep.subr.mxu0 0.0
    %708 = vmatpush2.msra.mxu0 0.0
    %709 = vmatprep.subr.mxu0 0.0
    %710 = vmatpush2.msra.mxu0 0.0
    %711 = vmatprep.subr.mxu0 0.0
    %712 = vmatpush2.msra.mxu0 0.0
    %713 = vmatprep.subr.mxu0 0.0
    %714 = vmatpush2.msra.mxu0 0.0
    %715 = vmatprep.subr.mxu0 0.0
    %716 = vmatpush2.msra.mxu0 0.0
    %717 = vmatprep.subr.mxu0 0.0
    %718 = vmatpush2.msra.mxu0 0.0
    %719 = vmatprep.subr.mxu0 0.0
    %720 = vmatpush2.msra.mxu0 0.0
    %721 = vmatprep.subr.mxu0 0.0
    %722 = vmatpush2.msra.mxu0 0.0
    %723 = vmatprep.subr.mxu0 0.0
    %724 = vmatpush2.msra.mxu0 0.0
    %725 = vmatprep.mubr.f32.mxu0 0.0
    %726 = vmatmul.mubr.f32.gmra.mxu0 %v505
    %v727 = vpop.f32.mrf.mxu0
    %v728 = vadd.f32 0.0, %v727
    %v729 = vpop.f32.mrf.mxu0
    %730 = vdwg.mxu0
    %v731 = vadd.f32 %v656, %v728
    %s732 = scalar_lea.vmem [#allocation10], 2
    %v733 = vld [vmem:[%s732] sm:$0x3]
    %v734 = vld [vmem:[#allocation16] sm:$0xff]
    %v735 = vld [vmem:[#allocation16 + $0x8] sm:$0xff]
    %v736 = vld [vmem:[#allocation16 + $0x10] sm:$0xff]
    %v737 = vld [vmem:[#allocation16 + $0x18] sm:$0xff]
    %738 = vmatprep.subr.mxu0 0.0
    %739 = vmatpush1.msra.mxu0 0.0
    %740 = vmatprep.subr.mxu0 0.0
    %741 = vmatpush1.msra.mxu0 0.0
    %742 = vmatprep.subr.mxu0 0.0
    %743 = vmatpush1.msra.mxu0 0.0
    %744 = vmatprep.subr.mxu0 0.0
    %745 = vmatpush1.msra.mxu0 0.0
    %746 = vmatprep.subr.mxu0 0.0
    %747 = vmatpush1.msra.mxu0 0.0
    %748 = vmatprep.subr.mxu0 0.0
    %749 = vmatpush1.msra.mxu0 0.0
    %750 = vmatprep.subr.mxu0 0.0
    %751 = vmatpush1.msra.mxu0 0.0
    %752 = vmatprep.subr.mxu0 0.0
    %753 = vmatpush1.msra.mxu0 0.0
    %754 = vmatprep.subr.mxu0 0.0
    %755 = vmatpush1.msra.mxu0 0.0
    %756 = vmatprep.subr.mxu0 0.0
    %757 = vmatpush1.msra.mxu0 0.0
    %758 = vmatprep.subr.mxu0 0.0
    %759 = vmatpush1.msra.mxu0 0.0
    %760 = vmatprep.subr.mxu0 0.0
    %761 = vmatpush1.msra.mxu0 0.0
    %762 = vmatprep.subr.mxu0 0.0
    %763 = vmatpush1.msra.mxu0 %v737
    %764 = vmatprep.subr.mxu0 0.0
    %765 = vmatpush1.msra.mxu0 %v736
    %766 = vmatprep.subr.mxu0 0.0
    %767 = vmatpush1.msra.mxu0 %v735
    %768 = vmatprep.subr.mxu0 0.0
    %769 = vmatpush1.msra.mxu0 %v734
    %770 = vmatprep.subr.mxu0 0.0
    %771 = vmatpush2.msra.mxu0 0.0
    %772 = vmatprep.subr.mxu0 0.0
    %773 = vmatpush2.msra.mxu0 0.0
    %774 = vmatprep.subr.mxu0 0.0
    %775 = vmatpush2.msra.mxu0 0.0
    %776 = vmatprep.subr.mxu0 0.0
    %777 = vmatpush2.msra.mxu0 0.0
    %778 = vmatprep.subr.mxu0 0.0
    %779 = vmatpush2.msra.mxu0 0.0
    %780 = vmatprep.subr.mxu0 0.0
    %781 = vmatpush2.msra.mxu0 0.0
    %782 = vmatprep.subr.mxu0 0.0
    %783 = vmatpush2.msra.mxu0 0.0
    %784 = vmatprep.subr.mxu0 0.0
    %785 = vmatpush2.msra.mxu0 0.0
    %786 = vmatprep.subr.mxu0 0.0
    %787 = vmatpush2.msra.mxu0 0.0
    %788 = vmatprep.subr.mxu0 0.0
    %789 = vmatpush2.msra.mxu0 0.0
    %790 = vmatprep.subr.mxu0 0.0
    %791 = vmatpush2.msra.mxu0 0.0
    %792 = vmatprep.subr.mxu0 0.0
    %793 = vmatpush2.msra.mxu0 0.0
    %794 = vmatprep.subr.mxu0 0.0
    %795 = vmatpush2.msra.mxu0 0.0
    %796 = vmatprep.subr.mxu0 0.0
    %797 = vmatpush2.msra.mxu0 0.0
    %798 = vmatprep.subr.mxu0 0.0
    %799 = vmatpush2.msra.mxu0 0.0
    %800 = vmatprep.subr.mxu0 0.0
    %801 = vmatpush2.msra.mxu0 0.0
    %802 = vmatprep.mubr.f32.mxu0 0.0
    %803 = vmatmul.mubr.f32.gmra.mxu0 %v505
    %v804 = vpop.f32.mrf.mxu0
    %v805 = vadd.f32 0.0, %v804
    %v806 = vpop.f32.mrf.mxu0
    %807 = vdwg.mxu0
    %v808 = vadd.f32 %v733, %v805
    %v809 = vxor.u32 %v577, 2147483648
    %v810 = vmul.f32 %v809, 1.442695
    %v811 = vpow.pop %v810
    %v812 = vadd.f32 %v811, 1.0
    %v813 = vrcp.pop %v812
    %v814 = vmul.f32 1.0, %v813
    %v815 = vxor.u32 %v654, 2147483648
    %v816 = vmul.f32 %v815, 1.442695
    %v817 = vpow.pop %v816
    %v818 = vadd.f32 %v817, 1.0
    %v819 = vrcp.pop %v818
    %v820 = vmul.f32 1.0, %v819
    %v821 = vtanh.pop %v731
    %v822 = vxor.u32 %v808, 2147483648
    %v823 = vmul.f32 %v822, 1.442695
    %v824 = vpow.pop %v823
    %v825 = vadd.f32 %v824, 1.0
    %v826 = vrcp.pop %v825
    %v827 = vmul.f32 1.0, %v826
    %v828 = vmul.f32 %v820, %v497
    %v829 = vmul.f32 %v814, %v821
    %v830 = vadd.f32 %v828, %v829
    %v831 = vtanh.pop %v830
    %v832 = vmul.f32 %v827, %v831
    %833 = vst.msk [vmem:[#allocation2] sm:$0x3] %vm492, %v832
    %834 = vst.msk [vmem:[#allocation3] sm:$0x3] %vm492, %v830
    %s835 = scalar_lea.vmem [#allocation18], 2
    %836 = vst.msk [vmem:[%s835] sm:$0x3] %vm492, %v832
    %v837 = vld [vmem:[#allocation2] sm:$0x3]
    %v838 = vld [vmem:[#allocation3] sm:$0x3]
    %s839 = scalar_lea.vmem [#allocation4], 4
    %v840 = vld [vmem:[%s839] sm:$0x3]
    %v841 = vld [vmem:[#allocation12] sm:$0xff]
    %v842 = vld [vmem:[#allocation12 + $0x8] sm:$0xff]
    %v843 = vld [vmem:[#allocation12 + $0x10] sm:$0xff]
    %v844 = vld [vmem:[#allocation12 + $0x18] sm:$0xff]
    %v846 = vsel %vm165, %v837, 0
    %848 = vmatprep.subr.mxu0 0.0
    %849 = vmatpush1.msra.mxu0 0.0
    %850 = vmatprep.subr.mxu0 0.0
    %851 = vmatpush1.msra.mxu0 0.0
    %852 = vmatprep.subr.mxu0 0.0
    %853 = vmatpush1.msra.mxu0 0.0
    %854 = vmatprep.subr.mxu0 0.0
    %855 = vmatpush1.msra.mxu0 0.0
    %856 = vmatprep.subr.mxu0 0.0
    %857 = vmatpush1.msra.mxu0 0.0
    %858 = vmatprep.subr.mxu0 0.0
    %859 = vmatpush1.msra.mxu0 0.0
    %860 = vmatprep.subr.mxu0 0.0
    %861 = vmatpush1.msra.mxu0 0.0
    %862 = vmatprep.subr.mxu0 0.0
    %863 = vmatpush1.msra.mxu0 0.0
    %864 = vmatprep.subr.mxu0 0.0
    %865 = vmatpush1.msra.mxu0 0.0
    %866 = vmatprep.subr.mxu0 0.0
    %867 = vmatpush1.msra.mxu0 0.0
    %868 = vmatprep.subr.mxu0 0.0
    %869 = vmatpush1.msra.mxu0 0.0
    %870 = vmatprep.subr.mxu0 0.0
    %871 = vmatpush1.msra.mxu0 0.0
    %872 = vmatprep.subr.mxu0 0.0
    %873 = vmatpush1.msra.mxu0 %v844
    %874 = vmatprep.subr.mxu0 0.0
    %875 = vmatpush1.msra.mxu0 %v843
    %876 = vmatprep.subr.mxu0 0.0
    %877 = vmatpush1.msra.mxu0 %v842
    %878 = vmatprep.subr.mxu0 0.0
    %879 = vmatpush1.msra.mxu0 %v841
    %880 = vmatprep.subr.mxu0 0.0
    %881 = vmatpush2.msra.mxu0 0.0
    %882 = vmatprep.subr.mxu0 0.0
    %883 = vmatpush2.msra.mxu0 0.0
    %884 = vmatprep.subr.mxu0 0.0
    %885 = vmatpush2.msra.mxu0 0.0
    %886 = vmatprep.subr.mxu0 0.0
    %887 = vmatpush2.msra.mxu0 0.0
    %888 = vmatprep.subr.mxu0 0.0
    %889 = vmatpush2.msra.mxu0 0.0
    %890 = vmatprep.subr.mxu0 0.0
    %891 = vmatpush2.msra.mxu0 0.0
    %892 = vmatprep.subr.mxu0 0.0
    %893 = vmatpush2.msra.mxu0 0.0
    %894 = vmatprep.subr.mxu0 0.0
    %895 = vmatpush2.msra.mxu0 0.0
    %896 = vmatprep.subr.mxu0 0.0
    %897 = vmatpush2.msra.mxu0 0.0
    %898 = vmatprep.subr.mxu0 0.0
    %899 = vmatpush2.msra.mxu0 0.0
    %900 = vmatprep.subr.mxu0 0.0
    %901 = vmatpush2.msra.mxu0 0.0
    %902 = vmatprep.subr.mxu0 0.0
    %903 = vmatpush2.msra.mxu0 0.0
    %904 = vmatprep.subr.mxu0 0.0
    %905 = vmatpush2.msra.mxu0 0.0
    %906 = vmatprep.subr.mxu0 0.0
    %907 = vmatpush2.msra.mxu0 0.0
    %908 = vmatprep.subr.mxu0 0.0
    %909 = vmatpush2.msra.mxu0 0.0
    %910 = vmatprep.subr.mxu0 0.0
    %911 = vmatpush2.msra.mxu0 0.0
    %912 = vmatprep.mubr.f32.mxu0 0.0
    %913 = vmatmul.mubr.f32.gmra.mxu0 %v846
    %v914 = vpop.f32.mrf.mxu0
    %v915 = vadd.f32 0.0, %v914
    %v916 = vpop.f32.mrf.mxu0
    %917 = vdwg.mxu0
    %v918 = vadd.f32 %v840, %v915
    %s919 = scalar_lea.vmem [#allocation7], 4
    %v920 = vld [vmem:[%s919] sm:$0x3]
    %v921 = vld [vmem:[#allocation13] sm:$0xff]
    %v922 = vld [vmem:[#allocation13 + $0x8] sm:$0xff]
    %v923 = vld [vmem:[#allocation13 + $0x10] sm:$0xff]
    %v924 = vld [vmem:[#allocation13 + $0x18] sm:$0xff]
    %925 = vmatprep.subr.mxu0 0.0
    %926 = vmatpush1.msra.mxu0 0.0
    %927 = vmatprep.subr.mxu0 0.0
    %928 = vmatpush1.msra.mxu0 0.0
    %929 = vmatprep.subr.mxu0 0.0
    %930 = vmatpush1.msra.mxu0 0.0
    %931 = vmatprep.subr.mxu0 0.0
    %932 = vmatpush1.msra.mxu0 0.0
    %933 = vmatprep.subr.mxu0 0.0
    %934 = vmatpush1.msra.mxu0 0.0
    %935 = vmatprep.subr.mxu0 0.0
    %936 = vmatpush1.msra.mxu0 0.0
    %937 = vmatprep.subr.mxu0 0.0
    %938 = vmatpush1.msra.mxu0 0.0
    %939 = vmatprep.subr.mxu0 0.0
    %940 = vmatpush1.msra.mxu0 0.0
    %941 = vmatprep.subr.mxu0 0.0
    %942 = vmatpush1.msra.mxu0 0.0
    %943 = vmatprep.subr.mxu0 0.0
    %944 = vmatpush1.msra.mxu0 0.0
    %945 = vmatprep.subr.mxu0 0.0
    %946 = vmatpush1.msra.mxu0 0.0
    %947 = vmatprep.subr.mxu0 0.0
    %948 = vmatpush1.msra.mxu0 0.0
    %949 = vmatprep.subr.mxu0 0.0
    %950 = vmatpush1.msra.mxu0 %v924
    %951 = vmatprep.subr.mxu0 0.0
    %952 = vmatpush1.msra.mxu0 %v923
    %953 = vmatprep.subr.mxu0 0.0
    %954 = vmatpush1.msra.mxu0 %v922
    %955 = vmatprep.subr.mxu0 0.0
    %956 = vmatpush1.msra.mxu0 %v921
    %957 = vmatprep.subr.mxu0 0.0
    %958 = vmatpush2.msra.mxu0 0.0
    %959 = vmatprep.subr.mxu0 0.0
    %960 = vmatpush2.msra.mxu0 0.0
    %961 = vmatprep.subr.mxu0 0.0
    %962 = vmatpush2.msra.mxu0 0.0
    %963 = vmatprep.subr.mxu0 0.0
    %964 = vmatpush2.msra.mxu0 0.0
    %965 = vmatprep.subr.mxu0 0.0
    %966 = vmatpush2.msra.mxu0 0.0
    %967 = vmatprep.subr.mxu0 0.0
    %968 = vmatpush2.msra.mxu0 0.0
    %969 = vmatprep.subr.mxu0 0.0
    %970 = vmatpush2.msra.mxu0 0.0
    %971 = vmatprep.subr.mxu0 0.0
    %972 = vmatpush2.msra.mxu0 0.0
    %973 = vmatprep.subr.mxu0 0.0
    %974 = vmatpush2.msra.mxu0 0.0
    %975 = vmatprep.subr.mxu0 0.0
    %976 = vmatpush2.msra.mxu0 0.0
    %977 = vmatprep.subr.mxu0 0.0
    %978 = vmatpush2.msra.mxu0 0.0
    %979 = vmatprep.subr.mxu0 0.0
    %980 = vmatpush2.msra.mxu0 0.0
    %981 = vmatprep.subr.mxu0 0.0
    %982 = vmatpush2.msra.mxu0 0.0
    %983 = vmatprep.subr.mxu0 0.0
    %984 = vmatpush2.msra.mxu0 0.0
    %985 = vmatprep.subr.mxu0 0.0
    %986 = vmatpush2.msra.mxu0 0.0
    %987 = vmatprep.subr.mxu0 0.0
    %988 = vmatpush2.msra.mxu0 0.0
    %989 = vmatprep.mubr.f32.mxu0 0.0
    %990 = vmatmul.mubr.f32.gmra.mxu0 %v846
    %v991 = vpop.f32.mrf.mxu0
    %v992 = vadd.f32 0.0, %v991
    %v993 = vpop.f32.mrf.mxu0
    %994 = vdwg.mxu0
    %v995 = vadd.f32 %v920, %v992
    %s996 = scalar_lea.vmem [#allocation9], 4
    %v997 = vld [vmem:[%s996] sm:$0x3]
    %v998 = vld [vmem:[#allocation15] sm:$0xff]
    %v999 = vld [vmem:[#allocation15 + $0x8] sm:$0xff]
    %v1000 = vld [vmem:[#allocation15 + $0x10] sm:$0xff]
    %v1001 = vld [vmem:[#allocation15 + $0x18] sm:$0xff]
    %1002 = vmatprep.subr.mxu0 0.0
    %1003 = vmatpush1.msra.mxu0 0.0
    %1004 = vmatprep.subr.mxu0 0.0
    %1005 = vmatpush1.msra.mxu0 0.0
    %1006 = vmatprep.subr.mxu0 0.0
    %1007 = vmatpush1.msra.mxu0 0.0
    %1008 = vmatprep.subr.mxu0 0.0
    %1009 = vmatpush1.msra.mxu0 0.0
    %1010 = vmatprep.subr.mxu0 0.0
    %1011 = vmatpush1.msra.mxu0 0.0
    %1012 = vmatprep.subr.mxu0 0.0
    %1013 = vmatpush1.msra.mxu0 0.0
    %1014 = vmatprep.subr.mxu0 0.0
    %1015 = vmatpush1.msra.mxu0 0.0
    %1016 = vmatprep.subr.mxu0 0.0
    %1017 = vmatpush1.msra.mxu0 0.0
    %1018 = vmatprep.subr.mxu0 0.0
    %1019 = vmatpush1.msra.mxu0 0.0
    %1020 = vmatprep.subr.mxu0 0.0
    %1021 = vmatpush1.msra.mxu0 0.0
    %1022 = vmatprep.subr.mxu0 0.0
    %1023 = vmatpush1.msra.mxu0 0.0
    %1024 = vmatprep.subr.mxu0 0.0
    %1025 = vmatpush1.msra.mxu0 0.0
    %1026 = vmatprep.subr.mxu0 0.0
    %1027 = vmatpush1.msra.mxu0 %v1001
    %1028 = vmatprep.subr.mxu0 0.0
    %1029 = vmatpush1.msra.mxu0 %v1000
    %1030 = vmatprep.subr.mxu0 0.0
    %1031 = vmatpush1.msra.mxu0 %v999
    %1032 = vmatprep.subr.mxu0 0.0
    %1033 = vmatpush1.msra.mxu0 %v998
    %1034 = vmatprep.subr.mxu0 0.0
    %1035 = vmatpush2.msra.mxu0 0.0
    %1036 = vmatprep.subr.mxu0 0.0
    %1037 = vmatpush2.msra.mxu0 0.0
    %1038 = vmatprep.subr.mxu0 0.0
    %1039 = vmatpush2.msra.mxu0 0.0
    %1040 = vmatprep.subr.mxu0 0.0
    %1041 = vmatpush2.msra.mxu0 0.0
    %1042 = vmatprep.subr.mxu0 0.0
    %1043 = vmatpush2.msra.mxu0 0.0
    %1044 = vmatprep.subr.mxu0 0.0
    %1045 = vmatpush2.msra.mxu0 0.0
    %1046 = vmatprep.subr.mxu0 0.0
    %1047 = vmatpush2.msra.mxu0 0.0
    %1048 = vmatprep.subr.mxu0 0.0
    %1049 = vmatpush2.msra.mxu0 0.0
    %1050 = vmatprep.subr.mxu0 0.0
    %1051 = vmatpush2.msra.mxu0 0.0
    %1052 = vmatprep.subr.mxu0 0.0
    %1053 = vmatpush2.msra.mxu0 0.0
    %1054 = vmatprep.subr.mxu0 0.0
    %1055 = vmatpush2.msra.mxu0 0.0
    %1056 = vmatprep.subr.mxu0 0.0
    %1057 = vmatpush2.msra.mxu0 0.0
    %1058 = vmatprep.subr.mxu0 0.0
    %1059 = vmatpush2.msra.mxu0 0.0
    %1060 = vmatprep.subr.mxu0 0.0
    %1061 = vmatpush2.msra.mxu0 0.0
    %1062 = vmatprep.subr.mxu0 0.0
    %1063 = vmatpush2.msra.mxu0 0.0
    %1064 = vmatprep.subr.mxu0 0.0
    %1065 = vmatpush2.msra.mxu0 0.0
    %1066 = vmatprep.mubr.f32.mxu0 0.0
    %1067 = vmatmul.mubr.f32.gmra.mxu0 %v846
    %v1068 = vpop.f32.mrf.mxu0
    %v1069 = vadd.f32 0.0, %v1068
    %v1070 = vpop.f32.mrf.mxu0
    %1071 = vdwg.mxu0
    %v1072 = vadd.f32 %v997, %v1069
    %s1073 = scalar_lea.vmem [#allocation10], 4
    %v1074 = vld [vmem:[%s1073] sm:$0x3]
    %v1075 = vld [vmem:[#allocation16] sm:$0xff]
    %v1076 = vld [vmem:[#allocation16 + $0x8] sm:$0xff]
    %v1077 = vld [vmem:[#allocation16 + $0x10] sm:$0xff]
    %v1078 = vld [vmem:[#allocation16 + $0x18] sm:$0xff]
    %1079 = vmatprep.subr.mxu0 0.0
    %1080 = vmatpush1.msra.mxu0 0.0
    %1081 = vmatprep.subr.mxu0 0.0
    %1082 = vmatpush1.msra.mxu0 0.0
    %1083 = vmatprep.subr.mxu0 0.0
    %1084 = vmatpush1.msra.mxu0 0.0
    %1085 = vmatprep.subr.mxu0 0.0
    %1086 = vmatpush1.msra.mxu0 0.0
    %1087 = vmatprep.subr.mxu0 0.0
    %1088 = vmatpush1.msra.mxu0 0.0
    %1089 = vmatprep.subr.mxu0 0.0
    %1090 = vmatpush1.msra.mxu0 0.0
    %1091 = vmatprep.subr.mxu0 0.0
    %1092 = vmatpush1.msra.mxu0 0.0
    %1093 = vmatprep.subr.mxu0 0.0
    %1094 = vmatpush1.msra.mxu0 0.0
    %1095 = vmatprep.subr.mxu0 0.0
    %1096 = vmatpush1.msra.mxu0 0.0
    %1097 = vmatprep.subr.mxu0 0.0
    %1098 = vmatpush1.msra.mxu0 0.0
    %1099 = vmatprep.subr.mxu0 0.0
    %1100 = vmatpush1.msra.mxu0 0.0
    %1101 = vmatprep.subr.mxu0 0.0
    %1102 = vmatpush1.msra.mxu0 0.0
    %1103 = vmatprep.subr.mxu0 0.0
    %1104 = vmatpush1.msra.mxu0 %v1078
    %1105 = vmatprep.subr.mxu0 0.0
    %1106 = vmatpush1.msra.mxu0 %v1077
    %1107 = vmatprep.subr.mxu0 0.0
    %1108 = vmatpush1.msra.mxu0 %v1076
    %1109 = vmatprep.subr.mxu0 0.0
    %1110 = vmatpush1.msra.mxu0 %v1075
    %1111 = vmatprep.subr.mxu0 0.0
    %1112 = vmatpush2.msra.mxu0 0.0
    %1113 = vmatprep.subr.mxu0 0.0
    %1114 = vmatpush2.msra.mxu0 0.0
    %1115 = vmatprep.subr.mxu0 0.0
    %1116 = vmatpush2.msra.mxu0 0.0
    %1117 = vmatprep.subr.mxu0 0.0
    %1118 = vmatpush2.msra.mxu0 0.0
    %1119 = vmatprep.subr.mxu0 0.0
    %1120 = vmatpush2.msra.mxu0 0.0
    %1121 = vmatprep.subr.mxu0 0.0
    %1122 = vmatpush2.msra.mxu0 0.0
    %1123 = vmatprep.subr.mxu0 0.0
    %1124 = vmatpush2.msra.mxu0 0.0
    %1125 = vmatprep.subr.mxu0 0.0
    %1126 = vmatpush2.msra.mxu0 0.0
    %1127 = vmatprep.subr.mxu0 0.0
    %1128 = vmatpush2.msra.mxu0 0.0
    %1129 = vmatprep.subr.mxu0 0.0
    %1130 = vmatpush2.msra.mxu0 0.0
    %1131 = vmatprep.subr.mxu0 0.0
    %1132 = vmatpush2.msra.mxu0 0.0
    %1133 = vmatprep.subr.mxu0 0.0
    %1134 = vmatpush2.msra.mxu0 0.0
    %1135 = vmatprep.subr.mxu0 0.0
    %1136 = vmatpush2.msra.mxu0 0.0
    %1137 = vmatprep.subr.mxu0 0.0
    %1138 = vmatpush2.msra.mxu0 0.0
    %1139 = vmatprep.subr.mxu0 0.0
    %1140 = vmatpush2.msra.mxu0 0.0
    %1141 = vmatprep.subr.mxu0 0.0
    %1142 = vmatpush2.msra.mxu0 0.0
    %1143 = vmatprep.mubr.f32.mxu0 0.0
    %1144 = vmatmul.mubr.f32.gmra.mxu0 %v846
    %v1145 = vpop.f32.mrf.mxu0
    %v1146 = vadd.f32 0.0, %v1145
    %v1147 = vpop.f32.mrf.mxu0
    %1148 = vdwg.mxu0
    %v1149 = vadd.f32 %v1074, %v1146
    %v1150 = vxor.u32 %v918, 2147483648
    %v1151 = vmul.f32 %v1150, 1.442695
    %v1152 = vpow.pop %v1151
    %v1153 = vadd.f32 %v1152, 1.0
    %v1154 = vrcp.pop %v1153
    %v1155 = vmul.f32 1.0, %v1154
    %v1156 = vxor.u32 %v995, 2147483648
    %v1157 = vmul.f32 %v1156, 1.442695
    %v1158 = vpow.pop %v1157
    %v1159 = vadd.f32 %v1158, 1.0
    %v1160 = vrcp.pop %v1159
    %v1161 = vmul.f32 1.0, %v1160
    %v1162 = vtanh.pop %v1072
    %v1163 = vxor.u32 %v1149, 2147483648
    %v1164 = vmul.f32 %v1163, 1.442695
    %v1165 = vpow.pop %v1164
    %v1166 = vadd.f32 %v1165, 1.0
    %v1167 = vrcp.pop %v1166
    %v1168 = vmul.f32 1.0, %v1167
    %v1169 = vmul.f32 %v1161, %v838
    %v1170 = vmul.f32 %v1155, %v1162
    %v1171 = vadd.f32 %v1169, %v1170
    %v1172 = vtanh.pop %v1171
    %v1173 = vmul.f32 %v1168, %v1172
    %1174 = vst.msk [vmem:[#allocation2] sm:$0x3] %vm492, %v1173
    %1175 = vst.msk [vmem:[#allocation3] sm:$0x3] %vm492, %v1171
    %s1176 = scalar_lea.vmem [#allocation18], 4
    %1177 = vst.msk [vmem:[%s1176] sm:$0x3] %vm492, %v1173
    %v1178 = vld [vmem:[#allocation2] sm:$0x3]
    %v1179 = vld [vmem:[#allocation3] sm:$0x3]
    %s1180 = scalar_lea.vmem [#allocation4], 6
    %v1181 = vld [vmem:[%s1180] sm:$0x3]
    %v1182 = vld [vmem:[#allocation12] sm:$0xff]
    %v1183 = vld [vmem:[#allocation12 + $0x8] sm:$0xff]
    %v1184 = vld [vmem:[#allocation12 + $0x10] sm:$0xff]
    %v1185 = vld [vmem:[#allocation12 + $0x18] sm:$0xff]
    %v1187 = vsel %vm165, %v1178, 0
    %1189 = vmatprep.subr.mxu0 0.0
    %1190 = vmatpush1.msra.mxu0 0.0
    %1191 = vmatprep.subr.mxu0 0.0
    %1192 = vmatpush1.msra.mxu0 0.0
    %1193 = vmatprep.subr.mxu0 0.0
    %1194 = vmatpush1.msra.mxu0 0.0
    %1195 = vmatprep.subr.mxu0 0.0
    %1196 = vmatpush1.msra.mxu0 0.0
    %1197 = vmatprep.subr.mxu0 0.0
    %1198 = vmatpush1.msra.mxu0 0.0
    %1199 = vmatprep.subr.mxu0 0.0
    %1200 = vmatpush1.msra.mxu0 0.0
    %1201 = vmatprep.subr.mxu0 0.0
    %1202 = vmatpush1.msra.mxu0 0.0
    %1203 = vmatprep.subr.mxu0 0.0
    %1204 = vmatpush1.msra.mxu0 0.0
    %1205 = vmatprep.subr.mxu0 0.0
    %1206 = vmatpush1.msra.mxu0 0.0
    %1207 = vmatprep.subr.mxu0 0.0
    %1208 = vmatpush1.msra.mxu0 0.0
    %1209 = vmatprep.subr.mxu0 0.0
    %1210 = vmatpush1.msra.mxu0 0.0
    %1211 = vmatprep.subr.mxu0 0.0
    %1212 = vmatpush1.msra.mxu0 0.0
    %1213 = vmatprep.subr.mxu0 0.0
    %1214 = vmatpush1.msra.mxu0 %v1185
    %1215 = vmatprep.subr.mxu0 0.0
    %1216 = vmatpush1.msra.mxu0 %v1184
    %1217 = vmatprep.subr.mxu0 0.0
    %1218 = vmatpush1.msra.mxu0 %v1183
    %1219 = vmatprep.subr.mxu0 0.0
    %1220 = vmatpush1.msra.mxu0 %v1182
    %1221 = vmatprep.subr.mxu0 0.0
    %1222 = vmatpush2.msra.mxu0 0.0
    %1223 = vmatprep.subr.mxu0 0.0
    %1224 = vmatpush2.msra.mxu0 0.0
    %1225 = vmatprep.subr.mxu0 0.0
    %1226 = vmatpush2.msra.mxu0 0.0
    %1227 = vmatprep.subr.mxu0 0.0
    %1228 = vmatpush2.msra.mxu0 0.0
    %1229 = vmatprep.subr.mxu0 0.0
    %1230 = vmatpush2.msra.mxu0 0.0
    %1231 = vmatprep.subr.mxu0 0.0
    %1232 = vmatpush2.msra.mxu0 0.0
    %1233 = vmatprep.subr.mxu0 0.0
    %1234 = vmatpush2.msra.mxu0 0.0
    %1235 = vmatprep.subr.mxu0 0.0
    %1236 = vmatpush2.msra.mxu0 0.0
    %1237 = vmatprep.subr.mxu0 0.0
    %1238 = vmatpush2.msra.mxu0 0.0
    %1239 = vmatprep.subr.mxu0 0.0
    %1240 = vmatpush2.msra.mxu0 0.0
    %1241 = vmatprep.subr.mxu0 0.0
    %1242 = vmatpush2.msra.mxu0 0.0
    %1243 = vmatprep.subr.mxu0 0.0
    %1244 = vmatpush2.msra.mxu0 0.0
    %1245 = vmatprep.subr.mxu0 0.0
    %1246 = vmatpush2.msra.mxu0 0.0
    %1247 = vmatprep.subr.mxu0 0.0
    %1248 = vmatpush2.msra.mxu0 0.0
    %1249 = vmatprep.subr.mxu0 0.0
    %1250 = vmatpush2.msra.mxu0 0.0
    %1251 = vmatprep.subr.mxu0 0.0
    %1252 = vmatpush2.msra.mxu0 0.0
    %1253 = vmatprep.mubr.f32.mxu0 0.0
    %1254 = vmatmul.mubr.f32.gmra.mxu0 %v1187
    %v1255 = vpop.f32.mrf.mxu0
    %v1256 = vadd.f32 0.0, %v1255
    %v1257 = vpop.f32.mrf.mxu0
    %1258 = vdwg.mxu0
    %v1259 = vadd.f32 %v1181, %v1256
    %s1260 = scalar_lea.vmem [#allocation7], 6
    %v1261 = vld [vmem:[%s1260] sm:$0x3]
    %v1262 = vld [vmem:[#allocation13] sm:$0xff]
    %v1263 = vld [vmem:[#allocation13 + $0x8] sm:$0xff]
    %v1264 = vld [vmem:[#allocation13 + $0x10] sm:$0xff]
    %v1265 = vld [vmem:[#allocation13 + $0x18] sm:$0xff]
    %1266 = vmatprep.subr.mxu0 0.0
    %1267 = vmatpush1.msra.mxu0 0.0
    %1268 = vmatprep.subr.mxu0 0.0
    %1269 = vmatpush1.msra.mxu0 0.0
    %1270 = vmatprep.subr.mxu0 0.0
    %1271 = vmatpush1.msra.mxu0 0.0
    %1272 = vmatprep.subr.mxu0 0.0
    %1273 = vmatpush1.msra.mxu0 0.0
    %1274 = vmatprep.subr.mxu0 0.0
    %1275 = vmatpush1.msra.mxu0 0.0
    %1276 = vmatprep.subr.mxu0 0.0
    %1277 = vmatpush1.msra.mxu0 0.0
    %1278 = vmatprep.subr.mxu0 0.0
    %1279 = vmatpush1.msra.mxu0 0.0
    %1280 = vmatprep.subr.mxu0 0.0
    %1281 = vmatpush1.msra.mxu0 0.0
    %1282 = vmatprep.subr.mxu0 0.0
    %1283 = vmatpush1.msra.mxu0 0.0
    %1284 = vmatprep.subr.mxu0 0.0
    %1285 = vmatpush1.msra.mxu0 0.0
    %1286 = vmatprep.subr.mxu0 0.0
    %1287 = vmatpush1.msra.mxu0 0.0
    %1288 = vmatprep.subr.mxu0 0.0
    %1289 = vmatpush1.msra.mxu0 0.0
    %1290 = vmatprep.subr.mxu0 0.0
    %1291 = vmatpush1.msra.mxu0 %v1265
    %1292 = vmatprep.subr.mxu0 0.0
    %1293 = vmatpush1.msra.mxu0 %v1264
    %1294 = vmatprep.subr.mxu0 0.0
    %1295 = vmatpush1.msra.mxu0 %v1263
    %1296 = vmatprep.subr.mxu0 0.0
    %1297 = vmatpush1.msra.mxu0 %v1262
    %1298 = vmatprep.subr.mxu0 0.0
    %1299 = vmatpush2.msra.mxu0 0.0
    %1300 = vmatprep.subr.mxu0 0.0
    %1301 = vmatpush2.msra.mxu0 0.0
    %1302 = vmatprep.subr.mxu0 0.0
    %1303 = vmatpush2.msra.mxu0 0.0
    %1304 = vmatprep.subr.mxu0 0.0
    %1305 = vmatpush2.msra.mxu0 0.0
    %1306 = vmatprep.subr.mxu0 0.0
    %1307 = vmatpush2.msra.mxu0 0.0
    %1308 = vmatprep.subr.mxu0 0.0
    %1309 = vmatpush2.msra.mxu0 0.0
    %1310 = vmatprep.subr.mxu0 0.0
    %1311 = vmatpush2.msra.mxu0 0.0
    %1312 = vmatprep.subr.mxu0 0.0
    %1313 = vmatpush2.msra.mxu0 0.0
    %1314 = vmatprep.subr.mxu0 0.0
    %1315 = vmatpush2.msra.mxu0 0.0
    %1316 = vmatprep.subr.mxu0 0.0
    %1317 = vmatpush2.msra.mxu0 0.0
    %1318 = vmatprep.subr.mxu0 0.0
    %1319 = vmatpush2.msra.mxu0 0.0
    %1320 = vmatprep.subr.mxu0 0.0
    %1321 = vmatpush2.msra.mxu0 0.0
    %1322 = vmatprep.subr.mxu0 0.0
    %1323 = vmatpush2.msra.mxu0 0.0
    %1324 = vmatprep.subr.mxu0 0.0
    %1325 = vmatpush2.msra.mxu0 0.0
    %1326 = vmatprep.subr.mxu0 0.0
    %1327 = vmatpush2.msra.mxu0 0.0
    %1328 = vmatprep.subr.mxu0 0.0
    %1329 = vmatpush2.msra.mxu0 0.0
    %1330 = vmatprep.mubr.f32.mxu0 0.0
    %1331 = vmatmul.mubr.f32.gmra.mxu0 %v1187
    %v1332 = vpop.f32.mrf.mxu0
    %v1333 = vadd.f32 0.0, %v1332
    %v1334 = vpop.f32.mrf.mxu0
    %1335 = vdwg.mxu0
    %v1336 = vadd.f32 %v1261, %v1333
    %s1337 = scalar_lea.vmem [#allocation9], 6
    %v1338 = vld [vmem:[%s1337] sm:$0x3]
    %v1339 = vld [vmem:[#allocation15] sm:$0xff]
    %v1340 = vld [vmem:[#allocation15 + $0x8] sm:$0xff]
    %v1341 = vld [vmem:[#allocation15 + $0x10] sm:$0xff]
    %v1342 = vld [vmem:[#allocation15 + $0x18] sm:$0xff]
    %1343 = vmatprep.subr.mxu0 0.0
    %1344 = vmatpush1.msra.mxu0 0.0
    %1345 = vmatprep.subr.mxu0 0.0
    %1346 = vmatpush1.msra.mxu0 0.0
    %1347 = vmatprep.subr.mxu0 0.0
    %1348 = vmatpush1.msra.mxu0 0.0
    %1349 = vmatprep.subr.mxu0 0.0
    %1350 = vmatpush1.msra.mxu0 0.0
    %1351 = vmatprep.subr.mxu0 0.0
    %1352 = vmatpush1.msra.mxu0 0.0
    %1353 = vmatprep.subr.mxu0 0.0
    %1354 = vmatpush1.msra.mxu0 0.0
    %1355 = vmatprep.subr.mxu0 0.0
    %1356 = vmatpush1.msra.mxu0 0.0
    %1357 = vmatprep.subr.mxu0 0.0
    %1358 = vmatpush1.msra.mxu0 0.0
    %1359 = vmatprep.subr.mxu0 0.0
    %1360 = vmatpush1.msra.mxu0 0.0
    %1361 = vmatprep.subr.mxu0 0.0
    %1362 = vmatpush1.msra.mxu0 0.0
    %1363 = vmatprep.subr.mxu0 0.0
    %1364 = vmatpush1.msra.mxu0 0.0
    %1365 = vmatprep.subr.mxu0 0.0
    %1366 = vmatpush1.msra.mxu0 0.0
    %1367 = vmatprep.subr.mxu0 0.0
    %1368 = vmatpush1.msra.mxu0 %v1342
    %1369 = vmatprep.subr.mxu0 0.0
    %1370 = vmatpush1.msra.mxu0 %v1341
    %1371 = vmatprep.subr.mxu0 0.0
    %1372 = vmatpush1.msra.mxu0 %v1340
    %1373 = vmatprep.subr.mxu0 0.0
    %1374 = vmatpush1.msra.mxu0 %v1339
    %1375 = vmatprep.subr.mxu0 0.0
    %1376 = vmatpush2.msra.mxu0 0.0
    %1377 = vmatprep.subr.mxu0 0.0
    %1378 = vmatpush2.msra.mxu0 0.0
    %1379 = vmatprep.subr.mxu0 0.0
    %1380 = vmatpush2.msra.mxu0 0.0
    %1381 = vmatprep.subr.mxu0 0.0
    %1382 = vmatpush2.msra.mxu0 0.0
    %1383 = vmatprep.subr.mxu0 0.0
    %1384 = vmatpush2.msra.mxu0 0.0
    %1385 = vmatprep.subr.mxu0 0.0
    %1386 = vmatpush2.msra.mxu0 0.0
    %1387 = vmatprep.subr.mxu0 0.0
    %1388 = vmatpush2.msra.mxu0 0.0
    %1389 = vmatprep.subr.mxu0 0.0
    %1390 = vmatpush2.msra.mxu0 0.0
    %1391 = vmatprep.subr.mxu0 0.0
    %1392 = vmatpush2.msra.mxu0 0.0
    %1393 = vmatprep.subr.mxu0 0.0
    %1394 = vmatpush2.msra.mxu0 0.0
    %1395 = vmatprep.subr.mxu0 0.0
    %1396 = vmatpush2.msra.mxu0 0.0
    %1397 = vmatprep.subr.mxu0 0.0
    %1398 = vmatpush2.msra.mxu0 0.0
    %1399 = vmatprep.subr.mxu0 0.0
    %1400 = vmatpush2.msra.mxu0 0.0
    %1401 = vmatprep.subr.mxu0 0.0
    %1402 = vmatpush2.msra.mxu0 0.0
    %1403 = vmatprep.subr.mxu0 0.0
    %1404 = vmatpush2.msra.mxu0 0.0
    %1405 = vmatprep.subr.mxu0 0.0
    %1406 = vmatpush2.msra.mxu0 0.0
    %1407 = vmatprep.mubr.f32.mxu0 0.0
    %1408 = vmatmul.mubr.f32.gmra.mxu0 %v1187
    %v1409 = vpop.f32.mrf.mxu0
    %v1410 = vadd.f32 0.0, %v1409
    %v1411 = vpop.f32.mrf.mxu0
    %1412 = vdwg.mxu0
    %v1413 = vadd.f32 %v1338, %v1410
    %s1414 = scalar_lea.vmem [#allocation10], 6
    %v1415 = vld [vmem:[%s1414] sm:$0x3]
    %v1416 = vld [vmem:[#allocation16] sm:$0xff]
    %v1417 = vld [vmem:[#allocation16 + $0x8] sm:$0xff]
    %v1418 = vld [vmem:[#allocation16 + $0x10] sm:$0xff]
    %v1419 = vld [vmem:[#allocation16 + $0x18] sm:$0xff]
    %1420 = vmatprep.subr.mxu0 0.0
    %1421 = vmatpush1.msra.mxu0 0.0
    %1422 = vmatprep.subr.mxu0 0.0
    %1423 = vmatpush1.msra.mxu0 0.0
    %1424 = vmatprep.subr.mxu0 0.0
    %1425 = vmatpush1.msra.mxu0 0.0
    %1426 = vmatprep.subr.mxu0 0.0
    %1427 = vmatpush1.msra.mxu0 0.0
    %1428 = vmatprep.subr.mxu0 0.0
    %1429 = vmatpush1.msra.mxu0 0.0
    %1430 = vmatprep.subr.mxu0 0.0
    %1431 = vmatpush1.msra.mxu0 0.0
    %1432 = vmatprep.subr.mxu0 0.0
    %1433 = vmatpush1.msra.mxu0 0.0
    %1434 = vmatprep.subr.mxu0 0.0
    %1435 = vmatpush1.msra.mxu0 0.0
    %1436 = vmatprep.subr.mxu0 0.0
    %1437 = vmatpush1.msra.mxu0 0.0
    %1438 = vmatprep.subr.mxu0 0.0
    %1439 = vmatpush1.msra.mxu0 0.0
    %1440 = vmatprep.subr.mxu0 0.0
    %1441 = vmatpush1.msra.mxu0 0.0
    %1442 = vmatprep.subr.mxu0 0.0
    %1443 = vmatpush1.msra.mxu0 0.0
    %1444 = vmatprep.subr.mxu0 0.0
    %1445 = vmatpush1.msra.mxu0 %v1419
    %1446 = vmatprep.subr.mxu0 0.0
    %1447 = vmatpush1.msra.mxu0 %v1418
    %1448 = vmatprep.subr.mxu0 0.0
    %1449 = vmatpush1.msra.mxu0 %v1417
    %1450 = vmatprep.subr.mxu0 0.0
    %1451 = vmatpush1.msra.mxu0 %v1416
    %1452 = vmatprep.subr.mxu0 0.0
    %1453 = vmatpush2.msra.mxu0 0.0
    %1454 = vmatprep.subr.mxu0 0.0
    %1455 = vmatpush2.msra.mxu0 0.0
    %1456 = vmatprep.subr.mxu0 0.0
    %1457 = vmatpush2.msra.mxu0 0.0
    %1458 = vmatprep.subr.mxu0 0.0
    %1459 = vmatpush2.msra.mxu0 0.0
    %1460 = vmatprep.subr.mxu0 0.0
    %1461 = vmatpush2.msra.mxu0 0.0
    %1462 = vmatprep.subr.mxu0 0.0
    %1463 = vmatpush2.msra.mxu0 0.0
    %1464 = vmatprep.subr.mxu0 0.0
    %1465 = vmatpush2.msra.mxu0 0.0
    %1466 = vmatprep.subr.mxu0 0.0
    %1467 = vmatpush2.msra.mxu0 0.0
    %1468 = vmatprep.subr.mxu0 0.0
    %1469 = vmatpush2.msra.mxu0 0.0
    %1470 = vmatprep.subr.mxu0 0.0
    %1471 = vmatpush2.msra.mxu0 0.0
    %1472 = vmatprep.subr.mxu0 0.0
    %1473 = vmatpush2.msra.mxu0 0.0
    %1474 = vmatprep.subr.mxu0 0.0
    %1475 = vmatpush2.msra.mxu0 0.0
    %1476 = vmatprep.subr.mxu0 0.0
    %1477 = vmatpush2.msra.mxu0 0.0
    %1478 = vmatprep.subr.mxu0 0.0
    %1479 = vmatpush2.msra.mxu0 0.0
    %1480 = vmatprep.subr.mxu0 0.0
    %1481 = vmatpush2.msra.mxu0 0.0
    %1482 = vmatprep.subr.mxu0 0.0
    %1483 = vmatpush2.msra.mxu0 0.0
    %1484 = vmatprep.mubr.f32.mxu0 0.0
    %1485 = vmatmul.mubr.f32.gmra.mxu0 %v1187
    %v1486 = vpop.f32.mrf.mxu0
    %v1487 = vadd.f32 0.0, %v1486
    %v1488 = vpop.f32.mrf.mxu0
    %1489 = vdwg.mxu0
    %v1490 = vadd.f32 %v1415, %v1487
    %v1491 = vxor.u32 %v1259, 2147483648
    %v1492 = vmul.f32 %v1491, 1.442695
    %v1493 = vpow.pop %v1492
    %v1494 = vadd.f32 %v1493, 1.0
    %v1495 = vrcp.pop %v1494
    %v1496 = vmul.f32 1.0, %v1495
    %v1497 = vxor.u32 %v1336, 2147483648
    %v1498 = vmul.f32 %v1497, 1.442695
    %v1499 = vpow.pop %v1498
    %v1500 = vadd.f32 %v1499, 1.0
    %v1501 = vrcp.pop %v1500
    %v1502 = vmul.f32 1.0, %v1501
    %v1503 = vtanh.pop %v1413
    %v1504 = vxor.u32 %v1490, 2147483648
    %v1505 = vmul.f32 %v1504, 1.442695
    %v1506 = vpow.pop %v1505
    %v1507 = vadd.f32 %v1506, 1.0
    %v1508 = vrcp.pop %v1507
    %v1509 = vmul.f32 1.0, %v1508
    %v1510 = vmul.f32 %v1502, %v1179
    %v1511 = vmul.f32 %v1496, %v1503
    %v1512 = vadd.f32 %v1510, %v1511
    %v1513 = vtanh.pop %v1512
    %v1514 = vmul.f32 %v1509, %v1513
    %1515 = vst.msk [vmem:[#allocation2] sm:$0x3] %vm492, %v1514
    %1516 = vst.msk [vmem:[#allocation3] sm:$0x3] %vm492, %v1512
    %s1517 = scalar_lea.vmem [#allocation18], 6
    %1518 = vst.msk [vmem:[%s1517] sm:$0x3] %vm492, %v1514
    %v1519 = vld [vmem:[#allocation2] sm:$0x3]
    %v1520 = vld [vmem:[#allocation3] sm:$0x3]
    %s1521 = scalar_lea.vmem [#allocation4], 8
    %v1522 = vld [vmem:[%s1521] sm:$0x3]
    %v1523 = vld [vmem:[#allocation12] sm:$0xff]
    %v1524 = vld [vmem:[#allocation12 + $0x8] sm:$0xff]
    %v1525 = vld [vmem:[#allocation12 + $0x10] sm:$0xff]
    %v1526 = vld [vmem:[#allocation12 + $0x18] sm:$0xff]
    %v1528 = vsel %vm165, %v1519, 0
    %1530 = vmatprep.subr.mxu0 0.0
    %1531 = vmatpush1.msra.mxu0 0.0
    %1532 = vmatprep.subr.mxu0 0.0
    %1533 = vmatpush1.msra.mxu0 0.0
    %1534 = vmatprep.subr.mxu0 0.0
    %1535 = vmatpush1.msra.mxu0 0.0
    %1536 = vmatprep.subr.mxu0 0.0
    %1537 = vmatpush1.msra.mxu0 0.0
    %1538 = vmatprep.subr.mxu0 0.0
    %1539 = vmatpush1.msra.mxu0 0.0
    %1540 = vmatprep.subr.mxu0 0.0
    %1541 = vmatpush1.msra.mxu0 0.0
    %1542 = vmatprep.subr.mxu0 0.0
    %1543 = vmatpush1.msra.mxu0 0.0
    %1544 = vmatprep.subr.mxu0 0.0
    %1545 = vmatpush1.msra.mxu0 0.0
    %1546 = vmatprep.subr.mxu0 0.0
    %1547 = vmatpush1.msra.mxu0 0.0
    %1548 = vmatprep.subr.mxu0 0.0
    %1549 = vmatpush1.msra.mxu0 0.0
    %1550 = vmatprep.subr.mxu0 0.0
    %1551 = vmatpush1.msra.mxu0 0.0
    %1552 = vmatprep.subr.mxu0 0.0
    %1553 = vmatpush1.msra.mxu0 0.0
    %1554 = vmatprep.subr.mxu0 0.0
    %1555 = vmatpush1.msra.mxu0 %v1526
    %1556 = vmatprep.subr.mxu0 0.0
    %1557 = vmatpush1.msra.mxu0 %v1525
    %1558 = vmatprep.subr.mxu0 0.0
    %1559 = vmatpush1.msra.mxu0 %v1524
    %1560 = vmatprep.subr.mxu0 0.0
    %1561 = vmatpush1.msra.mxu0 %v1523
    %1562 = vmatprep.subr.mxu0 0.0
    %1563 = vmatpush2.msra.mxu0 0.0
    %1564 = vmatprep.subr.mxu0 0.0
    %1565 = vmatpush2.msra.mxu0 0.0
    %1566 = vmatprep.subr.mxu0 0.0
    %1567 = vmatpush2.msra.mxu0 0.0
    %1568 = vmatprep.subr.mxu0 0.0
    %1569 = vmatpush2.msra.mxu0 0.0
    %1570 = vmatprep.subr.mxu0 0.0
    %1571 = vmatpush2.msra.mxu0 0.0
    %1572 = vmatprep.subr.mxu0 0.0
    %1573 = vmatpush2.msra.mxu0 0.0
    %1574 = vmatprep.subr.mxu0 0.0
    %1575 = vmatpush2.msra.mxu0 0.0
    %1576 = vmatprep.subr.mxu0 0.0
    %1577 = vmatpush2.msra.mxu0 0.0
    %1578 = vmatprep.subr.mxu0 0.0
    %1579 = vmatpush2.msra.mxu0 0.0
    %1580 = vmatprep.subr.mxu0 0.0
    %1581 = vmatpush2.msra.mxu0 0.0
    %1582 = vmatprep.subr.mxu0 0.0
    %1583 = vmatpush2.msra.mxu0 0.0
    %1584 = vmatprep.subr.mxu0 0.0
    %1585 = vmatpush2.msra.mxu0 0.0
    %1586 = vmatprep.subr.mxu0 0.0
    %1587 = vmatpush2.msra.mxu0 0.0
    %1588 = vmatprep.subr.mxu0 0.0
    %1589 = vmatpush2.msra.mxu0 0.0
    %1590 = vmatprep.subr.mxu0 0.0
    %1591 = vmatpush2.msra.mxu0 0.0
    %1592 = vmatprep.subr.mxu0 0.0
    %1593 = vmatpush2.msra.mxu0 0.0
    %1594 = vmatprep.mubr.f32.mxu0 0.0
    %1595 = vmatmul.mubr.f32.gmra.mxu0 %v1528
    %v1596 = vpop.f32.mrf.mxu0
    %v1597 = vadd.f32 0.0, %v1596
    %v1598 = vpop.f32.mrf.mxu0
    %1599 = vdwg.mxu0
    %v1600 = vadd.f32 %v1522, %v1597
    %s1601 = scalar_lea.vmem [#allocation7], 8
    %v1602 = vld [vmem:[%s1601] sm:$0x3]
    %v1603 = vld [vmem:[#allocation13] sm:$0xff]
    %v1604 = vld [vmem:[#allocation13 + $0x8] sm:$0xff]
    %v1605 = vld [vmem:[#allocation13 + $0x10] sm:$0xff]
    %v1606 = vld [vmem:[#allocation13 + $0x18] sm:$0xff]
    %1607 = vmatprep.subr.mxu0 0.0
    %1608 = vmatpush1.msra.mxu0 0.0
    %1609 = vmatprep.subr.mxu0 0.0
    %1610 = vmatpush1.msra.mxu0 0.0
    %1611 = vmatprep.subr.mxu0 0.0
    %1612 = vmatpush1.msra.mxu0 0.0
    %1613 = vmatprep.subr.mxu0 0.0
    %1614 = vmatpush1.msra.mxu0 0.0
    %1615 = vmatprep.subr.mxu0 0.0
    %1616 = vmatpush1.msra.mxu0 0.0
    %1617 = vmatprep.subr.mxu0 0.0
    %1618 = vmatpush1.msra.mxu0 0.0
    %1619 = vmatprep.subr.mxu0 0.0
    %1620 = vmatpush1.msra.mxu0 0.0
    %1621 = vmatprep.subr.mxu0 0.0
    %1622 = vmatpush1.msra.mxu0 0.0
    %1623 = vmatprep.subr.mxu0 0.0
    %1624 = vmatpush1.msra.mxu0 0.0
    %1625 = vmatprep.subr.mxu0 0.0
    %1626 = vmatpush1.msra.mxu0 0.0
    %1627 = vmatprep.subr.mxu0 0.0
    %1628 = vmatpush1.msra.mxu0 0.0
    %1629 = vmatprep.subr.mxu0 0.0
    %1630 = vmatpush1.msra.mxu0 0.0
    %1631 = vmatprep.subr.mxu0 0.0
    %1632 = vmatpush1.msra.mxu0 %v1606
    %1633 = vmatprep.subr.mxu0 0.0
    %1634 = vmatpush1.msra.mxu0 %v1605
    %1635 = vmatprep.subr.mxu0 0.0
    %1636 = vmatpush1.msra.mxu0 %v1604
    %1637 = vmatprep.subr.mxu0 0.0
    %1638 = vmatpush1.msra.mxu0 %v1603
    %1639 = vmatprep.subr.mxu0 0.0
    %1640 = vmatpush2.msra.mxu0 0.0
    %1641 = vmatprep.subr.mxu0 0.0
    %1642 = vmatpush2.msra.mxu0 0.0
    %1643 = vmatprep.subr.mxu0 0.0
    %1644 = vmatpush2.msra.mxu0 0.0
    %1645 = vmatprep.subr.mxu0 0.0
    %1646 = vmatpush2.msra.mxu0 0.0
    %1647 = vmatprep.subr.mxu0 0.0
    %1648 = vmatpush2.msra.mxu0 0.0
    %1649 = vmatprep.subr.mxu0 0.0
    %1650 = vmatpush2.msra.mxu0 0.0
    %1651 = vmatprep.subr.mxu0 0.0
    %1652 = vmatpush2.msra.mxu0 0.0
    %1653 = vmatprep.subr.mxu0 0.0
    %1654 = vmatpush2.msra.mxu0 0.0
    %1655 = vmatprep.subr.mxu0 0.0
    %1656 = vmatpush2.msra.mxu0 0.0
    %1657 = vmatprep.subr.mxu0 0.0
    %1658 = vmatpush2.msra.mxu0 0.0
    %1659 = vmatprep.subr.mxu0 0.0
    %1660 = vmatpush2.msra.mxu0 0.0
    %1661 = vmatprep.subr.mxu0 0.0
    %1662 = vmatpush2.msra.mxu0 0.0
    %1663 = vmatprep.subr.mxu0 0.0
    %1664 = vmatpush2.msra.mxu0 0.0
    %1665 = vmatprep.subr.mxu0 0.0
    %1666 = vmatpush2.msra.mxu0 0.0
    %1667 = vmatprep.subr.mxu0 0.0
    %1668 = vmatpush2.msra.mxu0 0.0
    %1669 = vmatprep.subr.mxu0 0.0
    %1670 = vmatpush2.msra.mxu0 0.0
    %1671 = vmatprep.mubr.f32.mxu0 0.0
    %1672 = vmatmul.mubr.f32.gmra.mxu0 %v1528
    %v1673 = vpop.f32.mrf.mxu0
    %v1674 = vadd.f32 0.0, %v1673
    %v1675 = vpop.f32.mrf.mxu0
    %1676 = vdwg.mxu0
    %v1677 = vadd.f32 %v1602, %v1674
    %s1678 = scalar_lea.vmem [#allocation9], 8
    %v1679 = vld [vmem:[%s1678] sm:$0x3]
    %v1680 = vld [vmem:[#allocation15] sm:$0xff]
    %v1681 = vld [vmem:[#allocation15 + $0x8] sm:$0xff]
    %v1682 = vld [vmem:[#allocation15 + $0x10] sm:$0xff]
    %v1683 = vld [vmem:[#allocation15 + $0x18] sm:$0xff]
    %1684 = vmatprep.subr.mxu0 0.0
    %1685 = vmatpush1.msra.mxu0 0.0
    %1686 = vmatprep.subr.mxu0 0.0
    %1687 = vmatpush1.msra.mxu0 0.0
    %1688 = vmatprep.subr.mxu0 0.0
    %1689 = vmatpush1.msra.mxu0 0.0
    %1690 = vmatprep.subr.mxu0 0.0
    %1691 = vmatpush1.msra.mxu0 0.0
    %1692 = vmatprep.subr.mxu0 0.0
    %1693 = vmatpush1.msra.mxu0 0.0
    %1694 = vmatprep.subr.mxu0 0.0
    %1695 = vmatpush1.msra.mxu0 0.0
    %1696 = vmatprep.subr.mxu0 0.0
    %1697 = vmatpush1.msra.mxu0 0.0
    %1698 = vmatprep.subr.mxu0 0.0
    %1699 = vmatpush1.msra.mxu0 0.0
    %1700 = vmatprep.subr.mxu0 0.0
    %1701 = vmatpush1.msra.mxu0 0.0
    %1702 = vmatprep.subr.mxu0 0.0
    %1703 = vmatpush1.msra.mxu0 0.0
    %1704 = vmatprep.subr.mxu0 0.0
    %1705 = vmatpush1.msra.mxu0 0.0
    %1706 = vmatprep.subr.mxu0 0.0
    %1707 = vmatpush1.msra.mxu0 0.0
    %1708 = vmatprep.subr.mxu0 0.0
    %1709 = vmatpush1.msra.mxu0 %v1683
    %1710 = vmatprep.subr.mxu0 0.0
    %1711 = vmatpush1.msra.mxu0 %v1682
    %1712 = vmatprep.subr.mxu0 0.0
    %1713 = vmatpush1.msra.mxu0 %v1681
    %1714 = vmatprep.subr.mxu0 0.0
    %1715 = vmatpush1.msra.mxu0 %v1680
    %1716 = vmatprep.subr.mxu0 0.0
    %1717 = vmatpush2.msra.mxu0 0.0
    %1718 = vmatprep.subr.mxu0 0.0
    %1719 = vmatpush2.msra.mxu0 0.0
    %1720 = vmatprep.subr.mxu0 0.0
    %1721 = vmatpush2.msra.mxu0 0.0
    %1722 = vmatprep.subr.mxu0 0.0
    %1723 = vmatpush2.msra.mxu0 0.0
    %1724 = vmatprep.subr.mxu0 0.0
    %1725 = vmatpush2.msra.mxu0 0.0
    %1726 = vmatprep.subr.mxu0 0.0
    %1727 = vmatpush2.msra.mxu0 0.0
    %1728 = vmatprep.subr.mxu0 0.0
    %1729 = vmatpush2.msra.mxu0 0.0
    %1730 = vmatprep.subr.mxu0 0.0
    %1731 = vmatpush2.msra.mxu0 0.0
    %1732 = vmatprep.subr.mxu0 0.0
    %1733 = vmatpush2.msra.mxu0 0.0
    %1734 = vmatprep.subr.mxu0 0.0
    %1735 = vmatpush2.msra.mxu0 0.0
    %1736 = vmatprep.subr.mxu0 0.0
    %1737 = vmatpush2.msra.mxu0 0.0
    %1738 = vmatprep.subr.mxu0 0.0
    %1739 = vmatpush2.msra.mxu0 0.0
    %1740 = vmatprep.subr.mxu0 0.0
    %1741 = vmatpush2.msra.mxu0 0.0
    %1742 = vmatprep.subr.mxu0 0.0
    %1743 = vmatpush2.msra.mxu0 0.0
    %1744 = vmatprep.subr.mxu0 0.0
    %1745 = vmatpush2.msra.mxu0 0.0
    %1746 = vmatprep.subr.mxu0 0.0
    %1747 = vmatpush2.msra.mxu0 0.0
    %1748 = vmatprep.mubr.f32.mxu0 0.0
    %1749 = vmatmul.mubr.f32.gmra.mxu0 %v1528
    %v1750 = vpop.f32.mrf.mxu0
    %v1751 = vadd.f32 0.0, %v1750
    %v1752 = vpop.f32.mrf.mxu0
    %1753 = vdwg.mxu0
    %v1754 = vadd.f32 %v1679, %v1751
    %s1755 = scalar_lea.vmem [#allocation10], 8
    %v1756 = vld [vmem:[%s1755] sm:$0x3]
    %v1757 = vld [vmem:[#allocation16] sm:$0xff]
    %v1758 = vld [vmem:[#allocation16 + $0x8] sm:$0xff]
    %v1759 = vld [vmem:[#allocation16 + $0x10] sm:$0xff]
    %v1760 = vld [vmem:[#allocation16 + $0x18] sm:$0xff]
    %1761 = vmatprep.subr.mxu0 0.0
    %1762 = vmatpush1.msra.mxu0 0.0
    %1763 = vmatprep.subr.mxu0 0.0
    %1764 = vmatpush1.msra.mxu0 0.0
    %1765 = vmatprep.subr.mxu0 0.0
    %1766 = vmatpush1.msra.mxu0 0.0
    %1767 = vmatprep.subr.mxu0 0.0
    %1768 = vmatpush1.msra.mxu0 0.0
    %1769 = vmatprep.subr.mxu0 0.0
    %1770 = vmatpush1.msra.mxu0 0.0
    %1771 = vmatprep.subr.mxu0 0.0
    %1772 = vmatpush1.msra.mxu0 0.0
    %1773 = vmatprep.subr.mxu0 0.0
    %1774 = vmatpush1.msra.mxu0 0.0
    %1775 = vmatprep.subr.mxu0 0.0
    %1776 = vmatpush1.msra.mxu0 0.0
    %1777 = vmatprep.subr.mxu0 0.0
    %1778 = vmatpush1.msra.mxu0 0.0
    %1779 = vmatprep.subr.mxu0 0.0
    %1780 = vmatpush1.msra.mxu0 0.0
    %1781 = vmatprep.subr.mxu0 0.0
    %1782 = vmatpush1.msra.mxu0 0.0
    %1783 = vmatprep.subr.mxu0 0.0
    %1784 = vmatpush1.msra.mxu0 0.0
    %1785 = vmatprep.subr.mxu0 0.0
    %1786 = vmatpush1.msra.mxu0 %v1760
    %1787 = vmatprep.subr.mxu0 0.0
    %1788 = vmatpush1.msra.mxu0 %v1759
    %1789 = vmatprep.subr.mxu0 0.0
    %1790 = vmatpush1.msra.mxu0 %v1758
    %1791 = vmatprep.subr.mxu0 0.0
    %1792 = vmatpush1.msra.mxu0 %v1757
    %1793 = vmatprep.subr.mxu0 0.0
    %1794 = vmatpush2.msra.mxu0 0.0
    %1795 = vmatprep.subr.mxu0 0.0
    %1796 = vmatpush2.msra.mxu0 0.0
    %1797 = vmatprep.subr.mxu0 0.0
    %1798 = vmatpush2.msra.mxu0 0.0
    %1799 = vmatprep.subr.mxu0 0.0
    %1800 = vmatpush2.msra.mxu0 0.0
    %1801 = vmatprep.subr.mxu0 0.0
    %1802 = vmatpush2.msra.mxu0 0.0
    %1803 = vmatprep.subr.mxu0 0.0
    %1804 = vmatpush2.msra.mxu0 0.0
    %1805 = vmatprep.subr.mxu0 0.0
    %1806 = vmatpush2.msra.mxu0 0.0
    %1807 = vmatprep.subr.mxu0 0.0
    %1808 = vmatpush2.msra.mxu0 0.0
    %1809 = vmatprep.subr.mxu0 0.0
    %1810 = vmatpush2.msra.mxu0 0.0
    %1811 = vmatprep.subr.mxu0 0.0
    %1812 = vmatpush2.msra.mxu0 0.0
    %1813 = vmatprep.subr.mxu0 0.0
    %1814 = vmatpush2.msra.mxu0 0.0
    %1815 = vmatprep.subr.mxu0 0.0
    %1816 = vmatpush2.msra.mxu0 0.0
    %1817 = vmatprep.subr.mxu0 0.0
    %1818 = vmatpush2.msra.mxu0 0.0
    %1819 = vmatprep.subr.mxu0 0.0
    %1820 = vmatpush2.msra.mxu0 0.0
    %1821 = vmatprep.subr.mxu0 0.0
    %1822 = vmatpush2.msra.mxu0 0.0
    %1823 = vmatprep.subr.mxu0 0.0
    %1824 = vmatpush2.msra.mxu0 0.0
    %1825 = vmatprep.mubr.f32.mxu0 0.0
    %1826 = vmatmul.mubr.f32.gmra.mxu0 %v1528
    %v1827 = vpop.f32.mrf.mxu0
    %v1828 = vadd.f32 0.0, %v1827
    %v1829 = vpop.f32.mrf.mxu0
    %1830 = vdwg.mxu0
    %v1831 = vadd.f32 %v1756, %v1828
    %v1832 = vxor.u32 %v1600, 2147483648
    %v1833 = vmul.f32 %v1832, 1.442695
    %v1834 = vpow.pop %v1833
    %v1835 = vadd.f32 %v1834, 1.0
    %v1836 = vrcp.pop %v1835
    %v1837 = vmul.f32 1.0, %v1836
    %v1838 = vxor.u32 %v1677, 2147483648
    %v1839 = vmul.f32 %v1838, 1.442695
    %v1840 = vpow.pop %v1839
    %v1841 = vadd.f32 %v1840, 1.0
    %v1842 = vrcp.pop %v1841
    %v1843 = vmul.f32 1.0, %v1842
    %v1844 = vtanh.pop %v1754
    %v1845 = vxor.u32 %v1831, 2147483648
    %v1846 = vmul.f32 %v1845, 1.442695
    %v1847 = vpow.pop %v1846
    %v1848 = vadd.f32 %v1847, 1.0
    %v1849 = vrcp.pop %v1848
    %v1850 = vmul.f32 1.0, %v1849
    %v1851 = vmul.f32 %v1843, %v1520
    %v1852 = vmul.f32 %v1837, %v1844
    %v1853 = vadd.f32 %v1851, %v1852
    %v1854 = vtanh.pop %v1853
    %v1855 = vmul.f32 %v1850, %v1854
    %1856 = vst.msk [vmem:[#allocation2] sm:$0x3] %vm492, %v1855
    %1857 = vst.msk [vmem:[#allocation3] sm:$0x3] %vm492, %v1853
    %s1858 = scalar_lea.vmem [#allocation18], 8
    %1859 = vst.msk [vmem:[%s1858] sm:$0x3] %vm492, %v1855
    %v1860 = vld [vmem:[#allocation2] sm:$0x3]
    %v1861 = vld [vmem:[#allocation3] sm:$0x3]
    %s1862 = scalar_lea.vmem [#allocation4], 10
    %v1863 = vld [vmem:[%s1862] sm:$0x3]
    %v1864 = vld [vmem:[#allocation12] sm:$0xff]
    %v1865 = vld [vmem:[#allocation12 + $0x8] sm:$0xff]
    %v1866 = vld [vmem:[#allocation12 + $0x10] sm:$0xff]
    %v1867 = vld [vmem:[#allocation12 + $0x18] sm:$0xff]
    %v1869 = vsel %vm165, %v1860, 0
    %1871 = vmatprep.subr.mxu0 0.0
    %1872 = vmatpush1.msra.mxu0 0.0
    %1873 = vmatprep.subr.mxu0 0.0
    %1874 = vmatpush1.msra.mxu0 0.0
    %1875 = vmatprep.subr.mxu0 0.0
    %1876 = vmatpush1.msra.mxu0 0.0
    %1877 = vmatprep.subr.mxu0 0.0
    %1878 = vmatpush1.msra.mxu0 0.0
    %1879 = vmatprep.subr.mxu0 0.0
    %1880 = vmatpush1.msra.mxu0 0.0
    %1881 = vmatprep.subr.mxu0 0.0
    %1882 = vmatpush1.msra.mxu0 0.0
    %1883 = vmatprep.subr.mxu0 0.0
    %1884 = vmatpush1.msra.mxu0 0.0
    %1885 = vmatprep.subr.mxu0 0.0
    %1886 = vmatpush1.msra.mxu0 0.0
    %1887 = vmatprep.subr.mxu0 0.0
    %1888 = vmatpush1.msra.mxu0 0.0
    %1889 = vmatprep.subr.mxu0 0.0
    %1890 = vmatpush1.msra.mxu0 0.0
    %1891 = vmatprep.subr.mxu0 0.0
    %1892 = vmatpush1.msra.mxu0 0.0
    %1893 = vmatprep.subr.mxu0 0.0
    %1894 = vmatpush1.msra.mxu0 0.0
    %1895 = vmatprep.subr.mxu0 0.0
    %1896 = vmatpush1.msra.mxu0 %v1867
    %1897 = vmatprep.subr.mxu0 0.0
    %1898 = vmatpush1.msra.mxu0 %v1866
    %1899 = vmatprep.subr.mxu0 0.0
    %1900 = vmatpush1.msra.mxu0 %v1865
    %1901 = vmatprep.subr.mxu0 0.0
    %1902 = vmatpush1.msra.mxu0 %v1864
    %1903 = vmatprep.subr.mxu0 0.0
    %1904 = vmatpush2.msra.mxu0 0.0
    %1905 = vmatprep.subr.mxu0 0.0
    %1906 = vmatpush2.msra.mxu0 0.0
    %1907 = vmatprep.subr.mxu0 0.0
    %1908 = vmatpush2.msra.mxu0 0.0
    %1909 = vmatprep.subr.mxu0 0.0
    %1910 = vmatpush2.msra.mxu0 0.0
    %1911 = vmatprep.subr.mxu0 0.0
    %1912 = vmatpush2.msra.mxu0 0.0
    %1913 = vmatprep.subr.mxu0 0.0
    %1914 = vmatpush2.msra.mxu0 0.0
    %1915 = vmatprep.subr.mxu0 0.0
    %1916 = vmatpush2.msra.mxu0 0.0
    %1917 = vmatprep.subr.mxu0 0.0
    %1918 = vmatpush2.msra.mxu0 0.0
    %1919 = vmatprep.subr.mxu0 0.0
    %1920 = vmatpush2.msra.mxu0 0.0
    %1921 = vmatprep.subr.mxu0 0.0
    %1922 = vmatpush2.msra.mxu0 0.0
    %1923 = vmatprep.subr.mxu0 0.0
    %1924 = vmatpush2.msra.mxu0 0.0
    %1925 = vmatprep.subr.mxu0 0.0
    %1926 = vmatpush2.msra.mxu0 0.0
    %1927 = vmatprep.subr.mxu0 0.0
    %1928 = vmatpush2.msra.mxu0 0.0
    %1929 = vmatprep.subr.mxu0 0.0
    %1930 = vmatpush2.msra.mxu0 0.0
    %1931 = vmatprep.subr.mxu0 0.0
    %1932 = vmatpush2.msra.mxu0 0.0
    %1933 = vmatprep.subr.mxu0 0.0
    %1934 = vmatpush2.msra.mxu0 0.0
    %1935 = vmatprep.mubr.f32.mxu0 0.0
    %1936 = vmatmul.mubr.f32.gmra.mxu0 %v1869
    %v1937 = vpop.f32.mrf.mxu0
    %v1938 = vadd.f32 0.0, %v1937
    %v1939 = vpop.f32.mrf.mxu0
    %1940 = vdwg.mxu0
    %v1941 = vadd.f32 %v1863, %v1938
    %s1942 = scalar_lea.vmem [#allocation7], 10
    %v1943 = vld [vmem:[%s1942] sm:$0x3]
    %v1944 = vld [vmem:[#allocation13] sm:$0xff]
    %v1945 = vld [vmem:[#allocation13 + $0x8] sm:$0xff]
    %v1946 = vld [vmem:[#allocation13 + $0x10] sm:$0xff]
    %v1947 = vld [vmem:[#allocation13 + $0x18] sm:$0xff]
    %1948 = vmatprep.subr.mxu0 0.0
    %1949 = vmatpush1.msra.mxu0 0.0
    %1950 = vmatprep.subr.mxu0 0.0
    %1951 = vmatpush1.msra.mxu0 0.0
    %1952 = vmatprep.subr.mxu0 0.0
    %1953 = vmatpush1.msra.mxu0 0.0
    %1954 = vmatprep.subr.mxu0 0.0
    %1955 = vmatpush1.msra.mxu0 0.0
    %1956 = vmatprep.subr.mxu0 0.0
    %1957 = vmatpush1.msra.mxu0 0.0
    %1958 = vmatprep.subr.mxu0 0.0
    %1959 = vmatpush1.msra.mxu0 0.0
    %1960 = vmatprep.subr.mxu0 0.0
    %1961 = vmatpush1.msra.mxu0 0.0
    %1962 = vmatprep.subr.mxu0 0.0
    %1963 = vmatpush1.msra.mxu0 0.0
    %1964 = vmatprep.subr.mxu0 0.0
    %1965 = vmatpush1.msra.mxu0 0.0
    %1966 = vmatprep.subr.mxu0 0.0
    %1967 = vmatpush1.msra.mxu0 0.0
    %1968 = vmatprep.subr.mxu0 0.0
    %1969 = vmatpush1.msra.mxu0 0.0
    %1970 = vmatprep.subr.mxu0 0.0
    %1971 = vmatpush1.msra.mxu0 0.0
    %1972 = vmatprep.subr.mxu0 0.0
    %1973 = vmatpush1.msra.mxu0 %v1947
    %1974 = vmatprep.subr.mxu0 0.0
    %1975 = vmatpush1.msra.mxu0 %v1946
    %1976 = vmatprep.subr.mxu0 0.0
    %1977 = vmatpush1.msra.mxu0 %v1945
    %1978 = vmatprep.subr.mxu0 0.0
    %1979 = vmatpush1.msra.mxu0 %v1944
    %1980 = vmatprep.subr.mxu0 0.0
    %1981 = vmatpush2.msra.mxu0 0.0
    %1982 = vmatprep.subr.mxu0 0.0
    %1983 = vmatpush2.msra.mxu0 0.0
    %1984 = vmatprep.subr.mxu0 0.0
    %1985 = vmatpush2.msra.mxu0 0.0
    %1986 = vmatprep.subr.mxu0 0.0
    %1987 = vmatpush2.msra.mxu0 0.0
    %1988 = vmatprep.subr.mxu0 0.0
    %1989 = vmatpush2.msra.mxu0 0.0
    %1990 = vmatprep.subr.mxu0 0.0
    %1991 = vmatpush2.msra.mxu0 0.0
    %1992 = vmatprep.subr.mxu0 0.0
    %1993 = vmatpush2.msra.mxu0 0.0
    %1994 = vmatprep.subr.mxu0 0.0
    %1995 = vmatpush2.msra.mxu0 0.0
    %1996 = vmatprep.subr.mxu0 0.0
    %1997 = vmatpush2.msra.mxu0 0.0
    %1998 = vmatprep.subr.mxu0 0.0
    %1999 = vmatpush2.msra.mxu0 0.0
    %2000 = vmatprep.subr.mxu0 0.0
    %2001 = vmatpush2.msra.mxu0 0.0
    %2002 = vmatprep.subr.mxu0 0.0
    %2003 = vmatpush2.msra.mxu0 0.0
    %2004 = vmatprep.subr.mxu0 0.0
    %2005 = vmatpush2.msra.mxu0 0.0
    %2006 = vmatprep.subr.mxu0 0.0
    %2007 = vmatpush2.msra.mxu0 0.0
    %2008 = vmatprep.subr.mxu0 0.0
    %2009 = vmatpush2.msra.mxu0 0.0
    %2010 = vmatprep.subr.mxu0 0.0
    %2011 = vmatpush2.msra.mxu0 0.0
    %2012 = vmatprep.mubr.f32.mxu0 0.0
    %2013 = vmatmul.mubr.f32.gmra.mxu0 %v1869
    %v2014 = vpop.f32.mrf.mxu0
    %v2015 = vadd.f32 0.0, %v2014
    %v2016 = vpop.f32.mrf.mxu0
    %2017 = vdwg.mxu0
    %v2018 = vadd.f32 %v1943, %v2015
    %s2019 = scalar_lea.vmem [#allocation9], 10
    %v2020 = vld [vmem:[%s2019] sm:$0x3]
    %v2021 = vld [vmem:[#allocation15] sm:$0xff]
    %v2022 = vld [vmem:[#allocation15 + $0x8] sm:$0xff]
    %v2023 = vld [vmem:[#allocation15 + $0x10] sm:$0xff]
    %v2024 = vld [vmem:[#allocation15 + $0x18] sm:$0xff]
    %2025 = vmatprep.subr.mxu0 0.0
    %2026 = vmatpush1.msra.mxu0 0.0
    %2027 = vmatprep.subr.mxu0 0.0
    %2028 = vmatpush1.msra.mxu0 0.0
    %2029 = vmatprep.subr.mxu0 0.0
    %2030 = vmatpush1.msra.mxu0 0.0
    %2031 = vmatprep.subr.mxu0 0.0
    %2032 = vmatpush1.msra.mxu0 0.0
    %2033 = vmatprep.subr.mxu0 0.0
    %2034 = vmatpush1.msra.mxu0 0.0
    %2035 = vmatprep.subr.mxu0 0.0
    %2036 = vmatpush1.msra.mxu0 0.0
    %2037 = vmatprep.subr.mxu0 0.0
    %2038 = vmatpush1.msra.mxu0 0.0
    %2039 = vmatprep.subr.mxu0 0.0
    %2040 = vmatpush1.msra.mxu0 0.0
    %2041 = vmatprep.subr.mxu0 0.0
    %2042 = vmatpush1.msra.mxu0 0.0
    %2043 = vmatprep.subr.mxu0 0.0
    %2044 = vmatpush1.msra.mxu0 0.0
    %2045 = vmatprep.subr.mxu0 0.0
    %2046 = vmatpush1.msra.mxu0 0.0
    %2047 = vmatprep.subr.mxu0 0.0
    %2048 = vmatpush1.msra.mxu0 0.0
    %2049 = vmatprep.subr.mxu0 0.0
    %2050 = vmatpush1.msra.mxu0 %v2024
    %2051 = vmatprep.subr.mxu0 0.0
    %2052 = vmatpush1.msra.mxu0 %v2023
    %2053 = vmatprep.subr.mxu0 0.0
    %2054 = vmatpush1.msra.mxu0 %v2022
    %2055 = vmatprep.subr.mxu0 0.0
    %2056 = vmatpush1.msra.mxu0 %v2021
    %2057 = vmatprep.subr.mxu0 0.0
    %2058 = vmatpush2.msra.mxu0 0.0
    %2059 = vmatprep.subr.mxu0 0.0
    %2060 = vmatpush2.msra.mxu0 0.0
    %2061 = vmatprep.subr.mxu0 0.0
    %2062 = vmatpush2.msra.mxu0 0.0
    %2063 = vmatprep.subr.mxu0 0.0
    %2064 = vmatpush2.msra.mxu0 0.0
    %2065 = vmatprep.subr.mxu0 0.0
    %2066 = vmatpush2.msra.mxu0 0.0
    %2067 = vmatprep.subr.mxu0 0.0
    %2068 = vmatpush2.msra.mxu0 0.0
    %2069 = vmatprep.subr.mxu0 0.0
    %2070 = vmatpush2.msra.mxu0 0.0
    %2071 = vmatprep.subr.mxu0 0.0
    %2072 = vmatpush2.msra.mxu0 0.0
    %2073 = vmatprep.subr.mxu0 0.0
    %2074 = vmatpush2.msra.mxu0 0.0
    %2075 = vmatprep.subr.mxu0 0.0
    %2076 = vmatpush2.msra.mxu0 0.0
    %2077 = vmatprep.subr.mxu0 0.0
    %2078 = vmatpush2.msra.mxu0 0.0
    %2079 = vmatprep.subr.mxu0 0.0
    %2080 = vmatpush2.msra.mxu0 0.0
    %2081 = vmatprep.subr.mxu0 0.0
    %2082 = vmatpush2.msra.mxu0 0.0
    %2083 = vmatprep.subr.mxu0 0.0
    %2084 = vmatpush2.msra.mxu0 0.0
    %2085 = vmatprep.subr.mxu0 0.0
    %2086 = vmatpush2.msra.mxu0 0.0
    %2087 = vmatprep.subr.mxu0 0.0
    %2088 = vmatpush2.msra.mxu0 0.0
    %2089 = vmatprep.mubr.f32.mxu0 0.0
    %2090 = vmatmul.mubr.f32.gmra.mxu0 %v1869
    %v2091 = vpop.f32.mrf.mxu0
    %v2092 = vadd.f32 0.0, %v2091
    %v2093 = vpop.f32.mrf.mxu0
    %2094 = vdwg.mxu0
    %v2095 = vadd.f32 %v2020, %v2092
    %s2096 = scalar_lea.vmem [#allocation10], 10
    %v2097 = vld [vmem:[%s2096] sm:$0x3]
    %v2098 = vld [vmem:[#allocation16] sm:$0xff]
    %v2099 = vld [vmem:[#allocation16 + $0x8] sm:$0xff]
    %v2100 = vld [vmem:[#allocation16 + $0x10] sm:$0xff]
    %v2101 = vld [vmem:[#allocation16 + $0x18] sm:$0xff]
    %2102 = vmatprep.subr.mxu0 0.0
    %2103 = vmatpush1.msra.mxu0 0.0
    %2104 = vmatprep.subr.mxu0 0.0
    %2105 = vmatpush1.msra.mxu0 0.0
    %2106 = vmatprep.subr.mxu0 0.0
    %2107 = vmatpush1.msra.mxu0 0.0
    %2108 = vmatprep.subr.mxu0 0.0
    %2109 = vmatpush1.msra.mxu0 0.0
    %2110 = vmatprep.subr.mxu0 0.0
    %2111 = vmatpush1.msra.mxu0 0.0
    %2112 = vmatprep.subr.mxu0 0.0
    %2113 = vmatpush1.msra.mxu0 0.0
    %2114 = vmatprep.subr.mxu0 0.0
    %2115 = vmatpush1.msra.mxu0 0.0
    %2116 = vmatprep.subr.mxu0 0.0
    %2117 = vmatpush1.msra.mxu0 0.0
    %2118 = vmatprep.subr.mxu0 0.0
    %2119 = vmatpush1.msra.mxu0 0.0
    %2120 = vmatprep.subr.mxu0 0.0
    %2121 = vmatpush1.msra.mxu0 0.0
    %2122 = vmatprep.subr.mxu0 0.0
    %2123 = vmatpush1.msra.mxu0 0.0
    %2124 = vmatprep.subr.mxu0 0.0
    %2125 = vmatpush1.msra.mxu0 0.0
    %2126 = vmatprep.subr.mxu0 0.0
    %2127 = vmatpush1.msra.mxu0 %v2101
    %2128 = vmatprep.subr.mxu0 0.0
    %2129 = vmatpush1.msra.mxu0 %v2100
    %2130 = vmatprep.subr.mxu0 0.0
    %2131 = vmatpush1.msra.mxu0 %v2099
    %2132 = vmatprep.subr.mxu0 0.0
    %2133 = vmatpush1.msra.mxu0 %v2098
    %2134 = vmatprep.subr.mxu0 0.0
    %2135 = vmatpush2.msra.mxu0 0.0
    %2136 = vmatprep.subr.mxu0 0.0
    %2137 = vmatpush2.msra.mxu0 0.0
    %2138 = vmatprep.subr.mxu0 0.0
    %2139 = vmatpush2.msra.mxu0 0.0
    %2140 = vmatprep.subr.mxu0 0.0
    %2141 = vmatpush2.msra.mxu0 0.0
    %2142 = vmatprep.subr.mxu0 0.0
    %2143 = vmatpush2.msra.mxu0 0.0
    %2144 = vmatprep.subr.mxu0 0.0
    %2145 = vmatpush2.msra.mxu0 0.0
    %2146 = vmatprep.subr.mxu0 0.0
    %2147 = vmatpush2.msra.mxu0 0.0
    %2148 = vmatprep.subr.mxu0 0.0
    %2149 = vmatpush2.msra.mxu0 0.0
    %2150 = vmatprep.subr.mxu0 0.0
    %2151 = vmatpush2.msra.mxu0 0.0
    %2152 = vmatprep.subr.mxu0 0.0
    %2153 = vmatpush2.msra.mxu0 0.0
    %2154 = vmatprep.subr.mxu0 0.0
    %2155 = vmatpush2.msra.mxu0 0.0
    %2156 = vmatprep.subr.mxu0 0.0
    %2157 = vmatpush2.msra.mxu0 0.0
    %2158 = vmatprep.subr.mxu0 0.0
    %2159 = vmatpush2.msra.mxu0 0.0
    %2160 = vmatprep.subr.mxu0 0.0
    %2161 = vmatpush2.msra.mxu0 0.0
    %2162 = vmatprep.subr.mxu0 0.0
    %2163 = vmatpush2.msra.mxu0 0.0
    %2164 = vmatprep.subr.mxu0 0.0
    %2165 = vmatpush2.msra.mxu0 0.0
    %2166 = vmatprep.mubr.f32.mxu0 0.0
    %2167 = vmatmul.mubr.f32.gmra.mxu0 %v1869
    %v2168 = vpop.f32.mrf.mxu0
    %v2169 = vadd.f32 0.0, %v2168
    %v2170 = vpop.f32.mrf.mxu0
    %2171 = vdwg.mxu0
    %v2172 = vadd.f32 %v2097, %v2169
    %v2173 = vxor.u32 %v1941, 2147483648
    %v2174 = vmul.f32 %v2173, 1.442695
    %v2175 = vpow.pop %v2174
    %v2176 = vadd.f32 %v2175, 1.0
    %v2177 = vrcp.pop %v2176
    %v2178 = vmul.f32 1.0, %v2177
    %v2179 = vxor.u32 %v2018, 2147483648
    %v2180 = vmul.f32 %v2179, 1.442695
    %v2181 = vpow.pop %v2180
    %v2182 = vadd.f32 %v2181, 1.0
    %v2183 = vrcp.pop %v2182
    %v2184 = vmul.f32 1.0, %v2183
    %v2185 = vtanh.pop %v2095
    %v2186 = vxor.u32 %v2172, 2147483648
    %v2187 = vmul.f32 %v2186, 1.442695
    %v2188 = vpow.pop %v2187
    %v2189 = vadd.f32 %v2188, 1.0
    %v2190 = vrcp.pop %v2189
    %v2191 = vmul.f32 1.0, %v2190
    %v2192 = vmul.f32 %v2184, %v1861
    %v2193 = vmul.f32 %v2178, %v2185
    %v2194 = vadd.f32 %v2192, %v2193
    %v2195 = vtanh.pop %v2194
    %v2196 = vmul.f32 %v2191, %v2195
    %2197 = vst.msk [vmem:[#allocation2] sm:$0x3] %vm492, %v2196
    %2198 = vst.msk [vmem:[#allocation3] sm:$0x3] %vm492, %v2194
    %s2199 = scalar_lea.vmem [#allocation18], 10
    %2200 = vst.msk [vmem:[%s2199] sm:$0x3] %vm492, %v2196
    %v2201 = vld [vmem:[#allocation2] sm:$0x3]
    %v2202 = vld [vmem:[#allocation3] sm:$0x3]
    %s2203 = scalar_lea.vmem [#allocation4], 12
    %v2204 = vld [vmem:[%s2203] sm:$0x3]
    %v2205 = vld [vmem:[#allocation12] sm:$0xff]
    %v2206 = vld [vmem:[#allocation12 + $0x8] sm:$0xff]
    %v2207 = vld [vmem:[#allocation12 + $0x10] sm:$0xff]
    %v2208 = vld [vmem:[#allocation12 + $0x18] sm:$0xff]
    %v2210 = vsel %vm165, %v2201, 0
    %2212 = vmatprep.subr.mxu0 0.0
    %2213 = vmatpush1.msra.mxu0 0.0
    %2214 = vmatprep.subr.mxu0 0.0
    %2215 = vmatpush1.msra.mxu0 0.0
    %2216 = vmatprep.subr.mxu0 0.0
    %2217 = vmatpush1.msra.mxu0 0.0
    %2218 = vmatprep.subr.mxu0 0.0
    %2219 = vmatpush1.msra.mxu0 0.0
    %2220 = vmatprep.subr.mxu0 0.0
    %2221 = vmatpush1.msra.mxu0 0.0
    %2222 = vmatprep.subr.mxu0 0.0
    %2223 = vmatpush1.msra.mxu0 0.0
    %2224 = vmatprep.subr.mxu0 0.0
    %2225 = vmatpush1.msra.mxu0 0.0
    %2226 = vmatprep.subr.mxu0 0.0
    %2227 = vmatpush1.msra.mxu0 0.0
    %2228 = vmatprep.subr.mxu0 0.0
    %2229 = vmatpush1.msra.mxu0 0.0
    %2230 = vmatprep.subr.mxu0 0.0
    %2231 = vmatpush1.msra.mxu0 0.0
    %2232 = vmatprep.subr.mxu0 0.0
    %2233 = vmatpush1.msra.mxu0 0.0
    %2234 = vmatprep.subr.mxu0 0.0
    %2235 = vmatpush1.msra.mxu0 0.0
    %2236 = vmatprep.subr.mxu0 0.0
    %2237 = vmatpush1.msra.mxu0 %v2208
    %2238 = vmatprep.subr.mxu0 0.0
    %2239 = vmatpush1.msra.mxu0 %v2207
    %2240 = vmatprep.subr.mxu0 0.0
    %2241 = vmatpush1.msra.mxu0 %v2206
    %2242 = vmatprep.subr.mxu0 0.0
    %2243 = vmatpush1.msra.mxu0 %v2205
    %2244 = vmatprep.subr.mxu0 0.0
    %2245 = vmatpush2.msra.mxu0 0.0
    %2246 = vmatprep.subr.mxu0 0.0
    %2247 = vmatpush2.msra.mxu0 0.0
    %2248 = vmatprep.subr.mxu0 0.0
    %2249 = vmatpush2.msra.mxu0 0.0
    %2250 = vmatprep.subr.mxu0 0.0
    %2251 = vmatpush2.msra.mxu0 0.0
    %2252 = vmatprep.subr.mxu0 0.0
    %2253 = vmatpush2.msra.mxu0 0.0
    %2254 = vmatprep.subr.mxu0 0.0
    %2255 = vmatpush2.msra.mxu0 0.0
    %2256 = vmatprep.subr.mxu0 0.0
    %2257 = vmatpush2.msra.mxu0 0.0
    %2258 = vmatprep.subr.mxu0 0.0
    %2259 = vmatpush2.msra.mxu0 0.0
    %2260 = vmatprep.subr.mxu0 0.0
    %2261 = vmatpush2.msra.mxu0 0.0
    %2262 = vmatprep.subr.mxu0 0.0
    %2263 = vmatpush2.msra.mxu0 0.0
    %2264 = vmatprep.subr.mxu0 0.0
    %2265 = vmatpush2.msra.mxu0 0.0
    %2266 = vmatprep.subr.mxu0 0.0
    %2267 = vmatpush2.msra.mxu0 0.0
    %2268 = vmatprep.subr.mxu0 0.0
    %2269 = vmatpush2.msra.mxu0 0.0
    %2270 = vmatprep.subr.mxu0 0.0
    %2271 = vmatpush2.msra.mxu0 0.0
    %2272 = vmatprep.subr.mxu0 0.0
    %2273 = vmatpush2.msra.mxu0 0.0
    %2274 = vmatprep.subr.mxu0 0.0
    %2275 = vmatpush2.msra.mxu0 0.0
    %2276 = vmatprep.mubr.f32.mxu0 0.0
    %2277 = vmatmul.mubr.f32.gmra.mxu0 %v2210
    %v2278 = vpop.f32.mrf.mxu0
    %v2279 = vadd.f32 0.0, %v2278
    %v2280 = vpop.f32.mrf.mxu0
    %2281 = vdwg.mxu0
    %v2282 = vadd.f32 %v2204, %v2279
    %s2283 = scalar_lea.vmem [#allocation7], 12
    %v2284 = vld [vmem:[%s2283] sm:$0x3]
    %v2285 = vld [vmem:[#allocation13] sm:$0xff]
    %v2286 = vld [vmem:[#allocation13 + $0x8] sm:$0xff]
    %v2287 = vld [vmem:[#allocation13 + $0x10] sm:$0xff]
    %v2288 = vld [vmem:[#allocation13 + $0x18] sm:$0xff]
    %2289 = vmatprep.subr.mxu0 0.0
    %2290 = vmatpush1.msra.mxu0 0.0
    %2291 = vmatprep.subr.mxu0 0.0
    %2292 = vmatpush1.msra.mxu0 0.0
    %2293 = vmatprep.subr.mxu0 0.0
    %2294 = vmatpush1.msra.mxu0 0.0
    %2295 = vmatprep.subr.mxu0 0.0
    %2296 = vmatpush1.msra.mxu0 0.0
    %2297 = vmatprep.subr.mxu0 0.0
    %2298 = vmatpush1.msra.mxu0 0.0
    %2299 = vmatprep.subr.mxu0 0.0
    %2300 = vmatpush1.msra.mxu0 0.0
    %2301 = vmatprep.subr.mxu0 0.0
    %2302 = vmatpush1.msra.mxu0 0.0
    %2303 = vmatprep.subr.mxu0 0.0
    %2304 = vmatpush1.msra.mxu0 0.0
    %2305 = vmatprep.subr.mxu0 0.0
    %2306 = vmatpush1.msra.mxu0 0.0
    %2307 = vmatprep.subr.mxu0 0.0
    %2308 = vmatpush1.msra.mxu0 0.0
    %2309 = vmatprep.subr.mxu0 0.0
    %2310 = vmatpush1.msra.mxu0 0.0
    %2311 = vmatprep.subr.mxu0 0.0
    %2312 = vmatpush1.msra.mxu0 0.0
    %2313 = vmatprep.subr.mxu0 0.0
    %2314 = vmatpush1.msra.mxu0 %v2288
    %2315 = vmatprep.subr.mxu0 0.0
    %2316 = vmatpush1.msra.mxu0 %v2287
    %2317 = vmatprep.subr.mxu0 0.0
    %2318 = vmatpush1.msra.mxu0 %v2286
    %2319 = vmatprep.subr.mxu0 0.0
    %2320 = vmatpush1.msra.mxu0 %v2285
    %2321 = vmatprep.subr.mxu0 0.0
    %2322 = vmatpush2.msra.mxu0 0.0
    %2323 = vmatprep.subr.mxu0 0.0
    %2324 = vmatpush2.msra.mxu0 0.0
    %2325 = vmatprep.subr.mxu0 0.0
    %2326 = vmatpush2.msra.mxu0 0.0
    %2327 = vmatprep.subr.mxu0 0.0
    %2328 = vmatpush2.msra.mxu0 0.0
    %2329 = vmatprep.subr.mxu0 0.0
    %2330 = vmatpush2.msra.mxu0 0.0
    %2331 = vmatprep.subr.mxu0 0.0
    %2332 = vmatpush2.msra.mxu0 0.0
    %2333 = vmatprep.subr.mxu0 0.0
    %2334 = vmatpush2.msra.mxu0 0.0
    %2335 = vmatprep.subr.mxu0 0.0
    %2336 = vmatpush2.msra.mxu0 0.0
    %2337 = vmatprep.subr.mxu0 0.0
    %2338 = vmatpush2.msra.mxu0 0.0
    %2339 = vmatprep.subr.mxu0 0.0
    %2340 = vmatpush2.msra.mxu0 0.0
    %2341 = vmatprep.subr.mxu0 0.0
    %2342 = vmatpush2.msra.mxu0 0.0
    %2343 = vmatprep.subr.mxu0 0.0
    %2344 = vmatpush2.msra.mxu0 0.0
    %2345 = vmatprep.subr.mxu0 0.0
    %2346 = vmatpush2.msra.mxu0 0.0
    %2347 = vmatprep.subr.mxu0 0.0
    %2348 = vmatpush2.msra.mxu0 0.0
    %2349 = vmatprep.subr.mxu0 0.0
    %2350 = vmatpush2.msra.mxu0 0.0
    %2351 = vmatprep.subr.mxu0 0.0
    %2352 = vmatpush2.msra.mxu0 0.0
    %2353 = vmatprep.mubr.f32.mxu0 0.0
    %2354 = vmatmul.mubr.f32.gmra.mxu0 %v2210
    %v2355 = vpop.f32.mrf.mxu0
    %v2356 = vadd.f32 0.0, %v2355
    %v2357 = vpop.f32.mrf.mxu0
    %2358 = vdwg.mxu0
    %v2359 = vadd.f32 %v2284, %v2356
    %s2360 = scalar_lea.vmem [#allocation9], 12
    %v2361 = vld [vmem:[%s2360] sm:$0x3]
    %v2362 = vld [vmem:[#allocation15] sm:$0xff]
    %v2363 = vld [vmem:[#allocation15 + $0x8] sm:$0xff]
    %v2364 = vld [vmem:[#allocation15 + $0x10] sm:$0xff]
    %v2365 = vld [vmem:[#allocation15 + $0x18] sm:$0xff]
    %2366 = vmatprep.subr.mxu0 0.0
    %2367 = vmatpush1.msra.mxu0 0.0
    %2368 = vmatprep.subr.mxu0 0.0
    %2369 = vmatpush1.msra.mxu0 0.0
    %2370 = vmatprep.subr.mxu0 0.0
    %2371 = vmatpush1.msra.mxu0 0.0
    %2372 = vmatprep.subr.mxu0 0.0
    %2373 = vmatpush1.msra.mxu0 0.0
    %2374 = vmatprep.subr.mxu0 0.0
    %2375 = vmatpush1.msra.mxu0 0.0
    %2376 = vmatprep.subr.mxu0 0.0
    %2377 = vmatpush1.msra.mxu0 0.0
    %2378 = vmatprep.subr.mxu0 0.0
    %2379 = vmatpush1.msra.mxu0 0.0
    %2380 = vmatprep.subr.mxu0 0.0
    %2381 = vmatpush1.msra.mxu0 0.0
    %2382 = vmatprep.subr.mxu0 0.0
    %2383 = vmatpush1.msra.mxu0 0.0
    %2384 = vmatprep.subr.mxu0 0.0
    %2385 = vmatpush1.msra.mxu0 0.0
    %2386 = vmatprep.subr.mxu0 0.0
    %2387 = vmatpush1.msra.mxu0 0.0
    %2388 = vmatprep.subr.mxu0 0.0
    %2389 = vmatpush1.msra.mxu0 0.0
    %2390 = vmatprep.subr.mxu0 0.0
    %2391 = vmatpush1.msra.mxu0 %v2365
    %2392 = vmatprep.subr.mxu0 0.0
    %2393 = vmatpush1.msra.mxu0 %v2364
    %2394 = vmatprep.subr.mxu0 0.0
    %2395 = vmatpush1.msra.mxu0 %v2363
    %2396 = vmatprep.subr.mxu0 0.0
    %2397 = vmatpush1.msra.mxu0 %v2362
    %2398 = vmatprep.subr.mxu0 0.0
    %2399 = vmatpush2.msra.mxu0 0.0
    %2400 = vmatprep.subr.mxu0 0.0
    %2401 = vmatpush2.msra.mxu0 0.0
    %2402 = vmatprep.subr.mxu0 0.0
    %2403 = vmatpush2.msra.mxu0 0.0
    %2404 = vmatprep.subr.mxu0 0.0
    %2405 = vmatpush2.msra.mxu0 0.0
    %2406 = vmatprep.subr.mxu0 0.0
    %2407 = vmatpush2.msra.mxu0 0.0
    %2408 = vmatprep.subr.mxu0 0.0
    %2409 = vmatpush2.msra.mxu0 0.0
    %2410 = vmatprep.subr.mxu0 0.0
    %2411 = vmatpush2.msra.mxu0 0.0
    %2412 = vmatprep.subr.mxu0 0.0
    %2413 = vmatpush2.msra.mxu0 0.0
    %2414 = vmatprep.subr.mxu0 0.0
    %2415 = vmatpush2.msra.mxu0 0.0
    %2416 = vmatprep.subr.mxu0 0.0
    %2417 = vmatpush2.msra.mxu0 0.0
    %2418 = vmatprep.subr.mxu0 0.0
    %2419 = vmatpush2.msra.mxu0 0.0
    %2420 = vmatprep.subr.mxu0 0.0
    %2421 = vmatpush2.msra.mxu0 0.0
    %2422 = vmatprep.subr.mxu0 0.0
    %2423 = vmatpush2.msra.mxu0 0.0
    %2424 = vmatprep.subr.mxu0 0.0
    %2425 = vmatpush2.msra.mxu0 0.0
    %2426 = vmatprep.subr.mxu0 0.0
    %2427 = vmatpush2.msra.mxu0 0.0
    %2428 = vmatprep.subr.mxu0 0.0
    %2429 = vmatpush2.msra.mxu0 0.0
    %2430 = vmatprep.mubr.f32.mxu0 0.0
    %2431 = vmatmul.mubr.f32.gmra.mxu0 %v2210
    %v2432 = vpop.f32.mrf.mxu0
    %v2433 = vadd.f32 0.0, %v2432
    %v2434 = vpop.f32.mrf.mxu0
    %2435 = vdwg.mxu0
    %v2436 = vadd.f32 %v2361, %v2433
    %s2437 = scalar_lea.vmem [#allocation10], 12
    %v2438 = vld [vmem:[%s2437] sm:$0x3]
    %v2439 = vld [vmem:[#allocation16] sm:$0xff]
    %v2440 = vld [vmem:[#allocation16 + $0x8] sm:$0xff]
    %v2441 = vld [vmem:[#allocation16 + $0x10] sm:$0xff]
    %v2442 = vld [vmem:[#allocation16 + $0x18] sm:$0xff]
    %2443 = vmatprep.subr.mxu0 0.0
    %2444 = vmatpush1.msra.mxu0 0.0
    %2445 = vmatprep.subr.mxu0 0.0
    %2446 = vmatpush1.msra.mxu0 0.0
    %2447 = vmatprep.subr.mxu0 0.0
    %2448 = vmatpush1.msra.mxu0 0.0
    %2449 = vmatprep.subr.mxu0 0.0
    %2450 = vmatpush1.msra.mxu0 0.0
    %2451 = vmatprep.subr.mxu0 0.0
    %2452 = vmatpush1.msra.mxu0 0.0
    %2453 = vmatprep.subr.mxu0 0.0
    %2454 = vmatpush1.msra.mxu0 0.0
    %2455 = vmatprep.subr.mxu0 0.0
    %2456 = vmatpush1.msra.mxu0 0.0
    %2457 = vmatprep.subr.mxu0 0.0
    %2458 = vmatpush1.msra.mxu0 0.0
    %2459 = vmatprep.subr.mxu0 0.0
    %2460 = vmatpush1.msra.mxu0 0.0
    %2461 = vmatprep.subr.mxu0 0.0
    %2462 = vmatpush1.msra.mxu0 0.0
    %2463 = vmatprep.subr.mxu0 0.0
    %2464 = vmatpush1.msra.mxu0 0.0
    %2465 = vmatprep.subr.mxu0 0.0
    %2466 = vmatpush1.msra.mxu0 0.0
    %2467 = vmatprep.subr.mxu0 0.0
    %2468 = vmatpush1.msra.mxu0 %v2442
    %2469 = vmatprep.subr.mxu0 0.0
    %2470 = vmatpush1.msra.mxu0 %v2441
    %2471 = vmatprep.subr.mxu0 0.0
    %2472 = vmatpush1.msra.mxu0 %v2440
    %2473 = vmatprep.subr.mxu0 0.0
    %2474 = vmatpush1.msra.mxu0 %v2439
    %2475 = vmatprep.subr.mxu0 0.0
    %2476 = vmatpush2.msra.mxu0 0.0
    %2477 = vmatprep.subr.mxu0 0.0
    %2478 = vmatpush2.msra.mxu0 0.0
    %2479 = vmatprep.subr.mxu0 0.0
    %2480 = vmatpush2.msra.mxu0 0.0
    %2481 = vmatprep.subr.mxu0 0.0
    %2482 = vmatpush2.msra.mxu0 0.0
    %2483 = vmatprep.subr.mxu0 0.0
    %2484 = vmatpush2.msra.mxu0 0.0
    %2485 = vmatprep.subr.mxu0 0.0
    %2486 = vmatpush2.msra.mxu0 0.0
    %2487 = vmatprep.subr.mxu0 0.0
    %2488 = vmatpush2.msra.mxu0 0.0
    %2489 = vmatprep.subr.mxu0 0.0
    %2490 = vmatpush2.msra.mxu0 0.0
    %2491 = vmatprep.subr.mxu0 0.0
    %2492 = vmatpush2.msra.mxu0 0.0
    %2493 = vmatprep.subr.mxu0 0.0
    %2494 = vmatpush2.msra.mxu0 0.0
    %2495 = vmatprep.subr.mxu0 0.0
    %2496 = vmatpush2.msra.mxu0 0.0
    %2497 = vmatprep.subr.mxu0 0.0
    %2498 = vmatpush2.msra.mxu0 0.0
    %2499 = vmatprep.subr.mxu0 0.0
    %2500 = vmatpush2.msra.mxu0 0.0
    %2501 = vmatprep.subr.mxu0 0.0
    %2502 = vmatpush2.msra.mxu0 0.0
    %2503 = vmatprep.subr.mxu0 0.0
    %2504 = vmatpush2.msra.mxu0 0.0
    %2505 = vmatprep.subr.mxu0 0.0
    %2506 = vmatpush2.msra.mxu0 0.0
    %2507 = vmatprep.mubr.f32.mxu0 0.0
    %2508 = vmatmul.mubr.f32.gmra.mxu0 %v2210
    %v2509 = vpop.f32.mrf.mxu0
    %v2510 = vadd.f32 0.0, %v2509
    %v2511 = vpop.f32.mrf.mxu0
    %2512 = vdwg.mxu0
    %v2513 = vadd.f32 %v2438, %v2510
    %v2514 = vxor.u32 %v2282, 2147483648
    %v2515 = vmul.f32 %v2514, 1.442695
    %v2516 = vpow.pop %v2515
    %v2517 = vadd.f32 %v2516, 1.0
    %v2518 = vrcp.pop %v2517
    %v2519 = vmul.f32 1.0, %v2518
    %v2520 = vxor.u32 %v2359, 2147483648
    %v2521 = vmul.f32 %v2520, 1.442695
    %v2522 = vpow.pop %v2521
    %v2523 = vadd.f32 %v2522, 1.0
    %v2524 = vrcp.pop %v2523
    %v2525 = vmul.f32 1.0, %v2524
    %v2526 = vtanh.pop %v2436
    %v2527 = vxor.u32 %v2513, 2147483648
    %v2528 = vmul.f32 %v2527, 1.442695
    %v2529 = vpow.pop %v2528
    %v2530 = vadd.f32 %v2529, 1.0
    %v2531 = vrcp.pop %v2530
    %v2532 = vmul.f32 1.0, %v2531
    %v2533 = vmul.f32 %v2525, %v2202
    %v2534 = vmul.f32 %v2519, %v2526
    %v2535 = vadd.f32 %v2533, %v2534
    %v2536 = vtanh.pop %v2535
    %v2537 = vmul.f32 %v2532, %v2536
    %2538 = vst.msk [vmem:[#allocation2] sm:$0x3] %vm492, %v2537
    %2539 = vst.msk [vmem:[#allocation3] sm:$0x3] %vm492, %v2535
    %s2540 = scalar_lea.vmem [#allocation18], 12
    %2541 = vst.msk [vmem:[%s2540] sm:$0x3] %vm492, %v2537
    %v2542 = vld [vmem:[#allocation2] sm:$0x3]
    %v2543 = vld [vmem:[#allocation3] sm:$0x3]
    %s2544 = scalar_lea.vmem [#allocation4], 14
    %v2545 = vld [vmem:[%s2544] sm:$0x3]
    %v2546 = vld [vmem:[#allocation12] sm:$0xff]
    %v2547 = vld [vmem:[#allocation12 + $0x8] sm:$0xff]
    %v2548 = vld [vmem:[#allocation12 + $0x10] sm:$0xff]
    %v2549 = vld [vmem:[#allocation12 + $0x18] sm:$0xff]
    %v2551 = vsel %vm165, %v2542, 0
    %2553 = vmatprep.subr.mxu0 0.0
    %2554 = vmatpush1.msra.mxu0 0.0
    %2555 = vmatprep.subr.mxu0 0.0
    %2556 = vmatpush1.msra.mxu0 0.0
    %2557 = vmatprep.subr.mxu0 0.0
    %2558 = vmatpush1.msra.mxu0 0.0
    %2559 = vmatprep.subr.mxu0 0.0
    %2560 = vmatpush1.msra.mxu0 0.0
    %2561 = vmatprep.subr.mxu0 0.0
    %2562 = vmatpush1.msra.mxu0 0.0
    %2563 = vmatprep.subr.mxu0 0.0
    %2564 = vmatpush1.msra.mxu0 0.0
    %2565 = vmatprep.subr.mxu0 0.0
    %2566 = vmatpush1.msra.mxu0 0.0
    %2567 = vmatprep.subr.mxu0 0.0
    %2568 = vmatpush1.msra.mxu0 0.0
    %2569 = vmatprep.subr.mxu0 0.0
    %2570 = vmatpush1.msra.mxu0 0.0
    %2571 = vmatprep.subr.mxu0 0.0
    %2572 = vmatpush1.msra.mxu0 0.0
    %2573 = vmatprep.subr.mxu0 0.0
    %2574 = vmatpush1.msra.mxu0 0.0
    %2575 = vmatprep.subr.mxu0 0.0
    %2576 = vmatpush1.msra.mxu0 0.0
    %2577 = vmatprep.subr.mxu0 0.0
    %2578 = vmatpush1.msra.mxu0 %v2549
    %2579 = vmatprep.subr.mxu0 0.0
    %2580 = vmatpush1.msra.mxu0 %v2548
    %2581 = vmatprep.subr.mxu0 0.0
    %2582 = vmatpush1.msra.mxu0 %v2547
    %2583 = vmatprep.subr.mxu0 0.0
    %2584 = vmatpush1.msra.mxu0 %v2546
    %2585 = vmatprep.subr.mxu0 0.0
    %2586 = vmatpush2.msra.mxu0 0.0
    %2587 = vmatprep.subr.mxu0 0.0
    %2588 = vmatpush2.msra.mxu0 0.0
    %2589 = vmatprep.subr.mxu0 0.0
    %2590 = vmatpush2.msra.mxu0 0.0
    %2591 = vmatprep.subr.mxu0 0.0
    %2592 = vmatpush2.msra.mxu0 0.0
    %2593 = vmatprep.subr.mxu0 0.0
    %2594 = vmatpush2.msra.mxu0 0.0
    %2595 = vmatprep.subr.mxu0 0.0
    %2596 = vmatpush2.msra.mxu0 0.0
    %2597 = vmatprep.subr.mxu0 0.0
    %2598 = vmatpush2.msra.mxu0 0.0
    %2599 = vmatprep.subr.mxu0 0.0
    %2600 = vmatpush2.msra.mxu0 0.0
    %2601 = vmatprep.subr.mxu0 0.0
    %2602 = vmatpush2.msra.mxu0 0.0
    %2603 = vmatprep.subr.mxu0 0.0
    %2604 = vmatpush2.msra.mxu0 0.0
    %2605 = vmatprep.subr.mxu0 0.0
    %2606 = vmatpush2.msra.mxu0 0.0
    %2607 = vmatprep.subr.mxu0 0.0
    %2608 = vmatpush2.msra.mxu0 0.0
    %2609 = vmatprep.subr.mxu0 0.0
    %2610 = vmatpush2.msra.mxu0 0.0
    %2611 = vmatprep.subr.mxu0 0.0
    %2612 = vmatpush2.msra.mxu0 0.0
    %2613 = vmatprep.subr.mxu0 0.0
    %2614 = vmatpush2.msra.mxu0 0.0
    %2615 = vmatprep.subr.mxu0 0.0
    %2616 = vmatpush2.msra.mxu0 0.0
    %2617 = vmatprep.mubr.f32.mxu0 0.0
    %2618 = vmatmul.mubr.f32.gmra.mxu0 %v2551
    %v2619 = vpop.f32.mrf.mxu0
    %v2620 = vadd.f32 0.0, %v2619
    %v2621 = vpop.f32.mrf.mxu0
    %2622 = vdwg.mxu0
    %v2623 = vadd.f32 %v2545, %v2620
    %s2624 = scalar_lea.vmem [#allocation7], 14
    %v2625 = vld [vmem:[%s2624] sm:$0x3]
    %v2626 = vld [vmem:[#allocation13] sm:$0xff]
    %v2627 = vld [vmem:[#allocation13 + $0x8] sm:$0xff]
    %v2628 = vld [vmem:[#allocation13 + $0x10] sm:$0xff]
    %v2629 = vld [vmem:[#allocation13 + $0x18] sm:$0xff]
    %2630 = vmatprep.subr.mxu0 0.0
    %2631 = vmatpush1.msra.mxu0 0.0
    %2632 = vmatprep.subr.mxu0 0.0
    %2633 = vmatpush1.msra.mxu0 0.0
    %2634 = vmatprep.subr.mxu0 0.0
    %2635 = vmatpush1.msra.mxu0 0.0
    %2636 = vmatprep.subr.mxu0 0.0
    %2637 = vmatpush1.msra.mxu0 0.0
    %2638 = vmatprep.subr.mxu0 0.0
    %2639 = vmatpush1.msra.mxu0 0.0
    %2640 = vmatprep.subr.mxu0 0.0
    %2641 = vmatpush1.msra.mxu0 0.0
    %2642 = vmatprep.subr.mxu0 0.0
    %2643 = vmatpush1.msra.mxu0 0.0
    %2644 = vmatprep.subr.mxu0 0.0
    %2645 = vmatpush1.msra.mxu0 0.0
    %2646 = vmatprep.subr.mxu0 0.0
    %2647 = vmatpush1.msra.mxu0 0.0
    %2648 = vmatprep.subr.mxu0 0.0
    %2649 = vmatpush1.msra.mxu0 0.0
    %2650 = vmatprep.subr.mxu0 0.0
    %2651 = vmatpush1.msra.mxu0 0.0
    %2652 = vmatprep.subr.mxu0 0.0
    %2653 = vmatpush1.msra.mxu0 0.0
    %2654 = vmatprep.subr.mxu0 0.0
    %2655 = vmatpush1.msra.mxu0 %v2629
    %2656 = vmatprep.subr.mxu0 0.0
    %2657 = vmatpush1.msra.mxu0 %v2628
    %2658 = vmatprep.subr.mxu0 0.0
    %2659 = vmatpush1.msra.mxu0 %v2627
    %2660 = vmatprep.subr.mxu0 0.0
    %2661 = vmatpush1.msra.mxu0 %v2626
    %2662 = vmatprep.subr.mxu0 0.0
    %2663 = vmatpush2.msra.mxu0 0.0
    %2664 = vmatprep.subr.mxu0 0.0
    %2665 = vmatpush2.msra.mxu0 0.0
    %2666 = vmatprep.subr.mxu0 0.0
    %2667 = vmatpush2.msra.mxu0 0.0
    %2668 = vmatprep.subr.mxu0 0.0
    %2669 = vmatpush2.msra.mxu0 0.0
    %2670 = vmatprep.subr.mxu0 0.0
    %2671 = vmatpush2.msra.mxu0 0.0
    %2672 = vmatprep.subr.mxu0 0.0
    %2673 = vmatpush2.msra.mxu0 0.0
    %2674 = vmatprep.subr.mxu0 0.0
    %2675 = vmatpush2.msra.mxu0 0.0
    %2676 = vmatprep.subr.mxu0 0.0
    %2677 = vmatpush2.msra.mxu0 0.0
    %2678 = vmatprep.subr.mxu0 0.0
    %2679 = vmatpush2.msra.mxu0 0.0
    %2680 = vmatprep.subr.mxu0 0.0
    %2681 = vmatpush2.msra.mxu0 0.0
    %2682 = vmatprep.subr.mxu0 0.0
    %2683 = vmatpush2.msra.mxu0 0.0
    %2684 = vmatprep.subr.mxu0 0.0
    %2685 = vmatpush2.msra.mxu0 0.0
    %2686 = vmatprep.subr.mxu0 0.0
    %2687 = vmatpush2.msra.mxu0 0.0
    %2688 = vmatprep.subr.mxu0 0.0
    %2689 = vmatpush2.msra.mxu0 0.0
    %2690 = vmatprep.subr.mxu0 0.0
    %2691 = vmatpush2.msra.mxu0 0.0
    %2692 = vmatprep.subr.mxu0 0.0
    %2693 = vmatpush2.msra.mxu0 0.0
    %2694 = vmatprep.mubr.f32.mxu0 0.0
    %2695 = vmatmul.mubr.f32.gmra.mxu0 %v2551
    %v2696 = vpop.f32.mrf.mxu0
    %v2697 = vadd.f32 0.0, %v2696
    %v2698 = vpop.f32.mrf.mxu0
    %2699 = vdwg.mxu0
    %v2700 = vadd.f32 %v2625, %v2697
    %s2701 = scalar_lea.vmem [#allocation9], 14
    %v2702 = vld [vmem:[%s2701] sm:$0x3]
    %v2703 = vld [vmem:[#allocation15] sm:$0xff]
    %v2704 = vld [vmem:[#allocation15 + $0x8] sm:$0xff]
    %v2705 = vld [vmem:[#allocation15 + $0x10] sm:$0xff]
    %v2706 = vld [vmem:[#allocation15 + $0x18] sm:$0xff]
    %2707 = vmatprep.subr.mxu0 0.0
    %2708 = vmatpush1.msra.mxu0 0.0
    %2709 = vmatprep.subr.mxu0 0.0
    %2710 = vmatpush1.msra.mxu0 0.0
    %2711 = vmatprep.subr.mxu0 0.0
    %2712 = vmatpush1.msra.mxu0 0.0
    %2713 = vmatprep.subr.mxu0 0.0
    %2714 = vmatpush1.msra.mxu0 0.0
    %2715 = vmatprep.subr.mxu0 0.0
    %2716 = vmatpush1.msra.mxu0 0.0
    %2717 = vmatprep.subr.mxu0 0.0
    %2718 = vmatpush1.msra.mxu0 0.0
    %2719 = vmatprep.subr.mxu0 0.0
    %2720 = vmatpush1.msra.mxu0 0.0
    %2721 = vmatprep.subr.mxu0 0.0
    %2722 = vmatpush1.msra.mxu0 0.0
    %2723 = vmatprep.subr.mxu0 0.0
    %2724 = vmatpush1.msra.mxu0 0.0
    %2725 = vmatprep.subr.mxu0 0.0
    %2726 = vmatpush1.msra.mxu0 0.0
    %2727 = vmatprep.subr.mxu0 0.0
    %2728 = vmatpush1.msra.mxu0 0.0
    %2729 = vmatprep.subr.mxu0 0.0
    %2730 = vmatpush1.msra.mxu0 0.0
    %2731 = vmatprep.subr.mxu0 0.0
    %2732 = vmatpush1.msra.mxu0 %v2706
    %2733 = vmatprep.subr.mxu0 0.0
    %2734 = vmatpush1.msra.mxu0 %v2705
    %2735 = vmatprep.subr.mxu0 0.0
    %2736 = vmatpush1.msra.mxu0 %v2704
    %2737 = vmatprep.subr.mxu0 0.0
    %2738 = vmatpush1.msra.mxu0 %v2703
    %2739 = vmatprep.subr.mxu0 0.0
    %2740 = vmatpush2.msra.mxu0 0.0
    %2741 = vmatprep.subr.mxu0 0.0
    %2742 = vmatpush2.msra.mxu0 0.0
    %2743 = vmatprep.subr.mxu0 0.0
    %2744 = vmatpush2.msra.mxu0 0.0
    %2745 = vmatprep.subr.mxu0 0.0
    %2746 = vmatpush2.msra.mxu0 0.0
    %2747 = vmatprep.subr.mxu0 0.0
    %2748 = vmatpush2.msra.mxu0 0.0
    %2749 = vmatprep.subr.mxu0 0.0
    %2750 = vmatpush2.msra.mxu0 0.0
    %2751 = vmatprep.subr.mxu0 0.0
    %2752 = vmatpush2.msra.mxu0 0.0
    %2753 = vmatprep.subr.mxu0 0.0
    %2754 = vmatpush2.msra.mxu0 0.0
    %2755 = vmatprep.subr.mxu0 0.0
    %2756 = vmatpush2.msra.mxu0 0.0
    %2757 = vmatprep.subr.mxu0 0.0
    %2758 = vmatpush2.msra.mxu0 0.0
    %2759 = vmatprep.subr.mxu0 0.0
    %2760 = vmatpush2.msra.mxu0 0.0
    %2761 = vmatprep.subr.mxu0 0.0
    %2762 = vmatpush2.msra.mxu0 0.0
    %2763 = vmatprep.subr.mxu0 0.0
    %2764 = vmatpush2.msra.mxu0 0.0
    %2765 = vmatprep.subr.mxu0 0.0
    %2766 = vmatpush2.msra.mxu0 0.0
    %2767 = vmatprep.subr.mxu0 0.0
    %2768 = vmatpush2.msra.mxu0 0.0
    %2769 = vmatprep.subr.mxu0 0.0
    %2770 = vmatpush2.msra.mxu0 0.0
    %2771 = vmatprep.mubr.f32.mxu0 0.0
    %2772 = vmatmul.mubr.f32.gmra.mxu0 %v2551
    %v2773 = vpop.f32.mrf.mxu0
    %v2774 = vadd.f32 0.0, %v2773
    %v2775 = vpop.f32.mrf.mxu0
    %2776 = vdwg.mxu0
    %v2777 = vadd.f32 %v2702, %v2774
    %s2778 = scalar_lea.vmem [#allocation10], 14
    %v2779 = vld [vmem:[%s2778] sm:$0x3]
    %v2780 = vld [vmem:[#allocation16] sm:$0xff]
    %v2781 = vld [vmem:[#allocation16 + $0x8] sm:$0xff]
    %v2782 = vld [vmem:[#allocation16 + $0x10] sm:$0xff]
    %v2783 = vld [vmem:[#allocation16 + $0x18] sm:$0xff]
    %2784 = vmatprep.subr.mxu0 0.0
    %2785 = vmatpush1.msra.mxu0 0.0
    %2786 = vmatprep.subr.mxu0 0.0
    %2787 = vmatpush1.msra.mxu0 0.0
    %2788 = vmatprep.subr.mxu0 0.0
    %2789 = vmatpush1.msra.mxu0 0.0
    %2790 = vmatprep.subr.mxu0 0.0
    %2791 = vmatpush1.msra.mxu0 0.0
    %2792 = vmatprep.subr.mxu0 0.0
    %2793 = vmatpush1.msra.mxu0 0.0
    %2794 = vmatprep.subr.mxu0 0.0
    %2795 = vmatpush1.msra.mxu0 0.0
    %2796 = vmatprep.subr.mxu0 0.0
    %2797 = vmatpush1.msra.mxu0 0.0
    %2798 = vmatprep.subr.mxu0 0.0
    %2799 = vmatpush1.msra.mxu0 0.0
    %2800 = vmatprep.subr.mxu0 0.0
    %2801 = vmatpush1.msra.mxu0 0.0
    %2802 = vmatprep.subr.mxu0 0.0
    %2803 = vmatpush1.msra.mxu0 0.0
    %2804 = vmatprep.subr.mxu0 0.0
    %2805 = vmatpush1.msra.mxu0 0.0
    %2806 = vmatprep.subr.mxu0 0.0
    %2807 = vmatpush1.msra.mxu0 0.0
    %2808 = vmatprep.subr.mxu0 0.0
    %2809 = vmatpush1.msra.mxu0 %v2783
    %2810 = vmatprep.subr.mxu0 0.0
    %2811 = vmatpush1.msra.mxu0 %v2782
    %2812 = vmatprep.subr.mxu0 0.0
    %2813 = vmatpush1.msra.mxu0 %v2781
    %2814 = vmatprep.subr.mxu0 0.0
    %2815 = vmatpush1.msra.mxu0 %v2780
    %2816 = vmatprep.subr.mxu0 0.0
    %2817 = vmatpush2.msra.mxu0 0.0
    %2818 = vmatprep.subr.mxu0 0.0
    %2819 = vmatpush2.msra.mxu0 0.0
    %2820 = vmatprep.subr.mxu0 0.0
    %2821 = vmatpush2.msra.mxu0 0.0
    %2822 = vmatprep.subr.mxu0 0.0
    %2823 = vmatpush2.msra.mxu0 0.0
    %2824 = vmatprep.subr.mxu0 0.0
    %2825 = vmatpush2.msra.mxu0 0.0
    %2826 = vmatprep.subr.mxu0 0.0
    %2827 = vmatpush2.msra.mxu0 0.0
    %2828 = vmatprep.subr.mxu0 0.0
    %2829 = vmatpush2.msra.mxu0 0.0
    %2830 = vmatprep.subr.mxu0 0.0
    %2831 = vmatpush2.msra.mxu0 0.0
    %2832 = vmatprep.subr.mxu0 0.0
    %2833 = vmatpush2.msra.mxu0 0.0
    %2834 = vmatprep.subr.mxu0 0.0
    %2835 = vmatpush2.msra.mxu0 0.0
    %2836 = vmatprep.subr.mxu0 0.0
    %2837 = vmatpush2.msra.mxu0 0.0
    %2838 = vmatprep.subr.mxu0 0.0
    %2839 = vmatpush2.msra.mxu0 0.0
    %2840 = vmatprep.subr.mxu0 0.0
    %2841 = vmatpush2.msra.mxu0 0.0
    %2842 = vmatprep.subr.mxu0 0.0
    %2843 = vmatpush2.msra.mxu0 0.0
    %2844 = vmatprep.subr.mxu0 0.0
    %2845 = vmatpush2.msra.mxu0 0.0
    %2846 = vmatprep.subr.mxu0 0.0
    %2847 = vmatpush2.msra.mxu0 0.0
    %2848 = vmatprep.mubr.f32.mxu0 0.0
    %2849 = vmatmul.mubr.f32.gmra.mxu0 %v2551
    %v2850 = vpop.f32.mrf.mxu0
    %v2851 = vadd.f32 0.0, %v2850
    %v2852 = vpop.f32.mrf.mxu0
    %2853 = vdwg.mxu0
    %v2854 = vadd.f32 %v2779, %v2851
    %v2855 = vxor.u32 %v2623, 2147483648
    %v2856 = vmul.f32 %v2855, 1.442695
    %v2857 = vpow.pop %v2856
    %v2858 = vadd.f32 %v2857, 1.0
    %v2859 = vrcp.pop %v2858
    %v2860 = vmul.f32 1.0, %v2859
    %v2861 = vxor.u32 %v2700, 2147483648
    %v2862 = vmul.f32 %v2861, 1.442695
    %v2863 = vpow.pop %v2862
    %v2864 = vadd.f32 %v2863, 1.0
    %v2865 = vrcp.pop %v2864
    %v2866 = vmul.f32 1.0, %v2865
    %v2867 = vtanh.pop %v2777
    %v2868 = vxor.u32 %v2854, 2147483648
    %v2869 = vmul.f32 %v2868, 1.442695
    %v2870 = vpow.pop %v2869
    %v2871 = vadd.f32 %v2870, 1.0
    %v2872 = vrcp.pop %v2871
    %v2873 = vmul.f32 1.0, %v2872
    %v2874 = vmul.f32 %v2866, %v2543
    %v2875 = vmul.f32 %v2860, %v2867
    %v2876 = vadd.f32 %v2874, %v2875
    %v2877 = vtanh.pop %v2876
    %v2878 = vmul.f32 %v2873, %v2877
    %2879 = vst.msk [vmem:[#allocation2] sm:$0x3] %vm492, %v2878
    %2880 = vst.msk [vmem:[#allocation3] sm:$0x3] %vm492, %v2876
    %s2881 = scalar_lea.vmem [#allocation18], 14
    %2882 = vst.msk [vmem:[%s2881] sm:$0x3] %vm492, %v2878
    // Predicated region
    $region78: #{tpu_custom_call.1} parent=1 // pred_check
      %p2883 = pneg %p149
    $region79: #{tpu_custom_call.1} parent=1 // pred_check_branch
      %2885 = sbr.rel (%p2883) target = $region81
    $region80: #{tpu_custom_call.1} parent=1 // pred_region
      %v2886 = vld [vmem:[#allocation2] sm:$0x3]
      %2887 = vst.msk [vmem:[#allocation19] sm:$0x3] %vm492, %v2886
      %v2888 = vld [vmem:[#allocation3] sm:$0x3]
      %2889 = vst.msk [vmem:[#allocation21] sm:$0x3] %vm492, %v2888
    $region81: #{tpu_custom_call.1} parent=1 // pred_fallthru
      _
    // Predicated region
    $region82: #{tpu_custom_call.1} parent=1 // pred_check
      _
    $region83: #{tpu_custom_call.1} parent=1 // pred_check_branch
      %2891 = sbr.rel (0) target = $region85
    $region84: #{tpu_custom_call.1} parent=1 // pred_region
      %s2893 = ssub.s32 256, 256
      %2894 = vsyncadd [#allocation6], %s2893
      %s2895 = sshll.u32 [#allocation18], 4
      %s2896 = int_to_ptr.vmem [resolvable:$true] %s2895
      %2901 = dma.vmem_to_hbm [thread:$0]  %s2896, 256, %s10, [#allocation6], 32, 32, 2
    $region85: #{tpu_custom_call.1} parent=1 // pred_fallthru
      _
    // Predicated region
    $region86: #{tpu_custom_call.1} parent=1 // pred_check
      _
    $region87: #{tpu_custom_call.1} parent=1 // pred_check_branch
      %2903 = sbr.rel (0) target = $region89
    $region88: #{tpu_custom_call.1} parent=1 // pred_region
      %s2905 = ssub.s32 32, 32
      %2906 = vsyncadd [#allocation20], %s2905
      %s2908 = sshll.u32 [#allocation19], 4
      %s2909 = int_to_ptr.vmem [resolvable:$true] %s2908
      %2911 = dma.vmem_to_hbm [thread:$0]  %s2909, 32, %s11, [#allocation20]
    $region89: #{tpu_custom_call.1} parent=1 // pred_fallthru
      _
    // Predicated region
    $region90: #{tpu_custom_call.1} parent=1 // pred_check
      _
    $region91: #{tpu_custom_call.1} parent=1 // pred_check_branch
      %2913 = sbr.rel (0) target = $region93
    $region92: #{tpu_custom_call.1} parent=1 // pred_region
      %s2915 = ssub.s32 32, 32
      %2916 = vsyncadd [#allocation20], %s2915
      %s2918 = sshll.u32 [#allocation21], 4
      %s2919 = int_to_ptr.vmem [resolvable:$true] %s2918
      %2921 = dma.vmem_to_hbm [thread:$0]  %s2919, 32, %s12, [#allocation20]
    $region93: #{tpu_custom_call.1} parent=1 // pred_fallthru
      _
    // Predicated region
    $region94: #{tpu_custom_call.1} parent=1 // pred_check
      _
    $region95: #{tpu_custom_call.1} parent=1 // pred_check_branch
      %2923 = sbr.rel (0) target = $region97
    $region96: #{tpu_custom_call.1} parent=1 // pred_region
      %2924 = dma.done [#allocation6], 256
    $region97: #{tpu_custom_call.1} parent=1 // pred_fallthru
      _
    // Predicated region
    $region98: #{tpu_custom_call.1} parent=1 // pred_check
      _
    $region99: #{tpu_custom_call.1} parent=1 // pred_check_branch
      %2926 = sbr.rel (0) target = $region101
    $region100: #{tpu_custom_call.1} parent=1 // pred_region
      %2927 = dma.done [#allocation20], 32
    $region101: #{tpu_custom_call.1} parent=1 // pred_fallthru
      _
    // Predicated region
    $region102: #{tpu_custom_call.1} parent=1 // pred_check
      _
    $region103: #{tpu_custom_call.1} parent=1 // pred_check_branch
      %2929 = sbr.rel (0) target = $region105
    $region104: #{tpu_custom_call.1} parent=1 // pred_region
      %2930 = dma.done [#allocation20], 32
    $region105: #{tpu_custom_call.1} parent=1 // pred_fallthru
      _
    %2931 = vsyncpa [#allocation5], 1
    %2932 = vsyncpa [#allocation8], 1
    %2933 = vsyncpa [#allocation11], 1
    %2934 = vsyncpa [#allocation14], 1
    %2935 = vsyncpa [#allocation17], 1
    %2936 = vsyncpa [#allocation6], 1
    %2937 = vsyncpa [#allocation20], 1

</llo_original>
